<compile_context>
chip_gen: v7x
topology: tpu7x:2x2x1
jax: 0.10.0
libtpu: 0.0.40
codegen_flags: <defaults>
</compile_context>

<pallas_src>
import jax
import jax.numpy as jnp
from jax.experimental import pallas as pl
from jax.experimental.pallas import tpu as pltpu


# ---------------------------------------------------------------------------
# kernels
# ---------------------------------------------------------------------------
def _matmul_bias_kernel(x_ref, w_ref, b_ref, o_ref):
    """Single-K-step path: out = x @ w + b (f32 accumulation on the MXU)."""
    o_ref[...] = (jnp.dot(x_ref[...], w_ref[...],
                          preferred_element_type=jnp.float32)
                  + b_ref[...]).astype(o_ref.dtype)


def _matmul_bias_acc_kernel(x_ref, w_ref, b_ref, o_ref, acc_ref):
    """K-tiled fallback: accumulate in VMEM scratch, add bias on the last step."""
    k = pl.program_id(1)

    @pl.when(k == 0)
    def _():
        acc_ref[...] = jnp.zeros_like(acc_ref)

    acc_ref[...] += jnp.dot(x_ref[...], w_ref[...],
                            preferred_element_type=jnp.float32)

    @pl.when(k == pl.num_programs(1) - 1)
    def _():
        o_ref[...] = (acc_ref[...] + b_ref[...]).astype(o_ref.dtype)


# ---------------------------------------------------------------------------
# tiling / VMEM helpers
# ---------------------------------------------------------------------------
def _vmem_budget_bytes():
    """Conservative per-kernel VMEM budget derived from the device (works on v5e/v6e/v7x)."""
    try:
        cap = pltpu.get_tpu_info().vmem_capacity_bytes
    except Exception:
        cap = 32 << 20  # conservative fallback
    # Use at most half of reported capacity, never more than 64 MiB, never less than 16 MiB.
    return max(16 << 20, min(cap // 2, 64 << 20))


def _pick_tile_m(total, cap, align=8):
    """Largest divisor of `total` that is a multiple of `align` and <= cap.
    `total` is always padded to a multiple of `align`, so this never falls back
    to a full-extent block that could blow VMEM."""
    if total <= cap:
        return total
    t = cap - (cap % align)
    while t >= align:
        if total % t == 0:
            return t
        t -= align
    return align


def _pick_tile_k(kp, cap):
    """Largest multiple of 128 dividing kp (kp is pre-padded to a 128 multiple) and <= cap."""
    t = min(kp, cap)
    t -= t % 128
    while t >= 128:
        if kp % t == 0:
            return t
        t -= 128
    return 128


# ---------------------------------------------------------------------------
# pallas_call wrappers
# ---------------------------------------------------------------------------
def _matmul_single(xp, wm, bias2d, *, tm, vmem_limit):
    M, K = xp.shape
    E = wm.shape[1]
    return pl.pallas_call(
        _matmul_bias_kernel,
        out_shape=jax.ShapeDtypeStruct((M, E), jnp.float32),
        grid_spec=pltpu.PrefetchScalarGridSpec(
            num_scalar_prefetch=0,
            grid=(M // tm,),
            in_specs=[
                pl.BlockSpec((tm, K), lambda i: (i, 0)),   # patch rows (bf16)
                pl.BlockSpec((K, E), lambda i: (0, 0)),    # flattened conv weight (bf16, resident)
                pl.BlockSpec((1, E), lambda i: (0, 0)),    # bias (f32, broadcast)
            ],
            out_specs=pl.BlockSpec((tm, E), lambda i: (i, 0)),
        ),
        compiler_params=pltpu.CompilerParams(
            dimension_semantics=("parallel",),
            vmem_limit_bytes=vmem_limit),
    )(xp, wm, bias2d)


def _matmul_tiled(xp, wm, bias2d, *, tm, tk, vmem_limit):
    M, K = xp.shape
    E = wm.shape[1]
    return pl.pallas_call(
        _matmul_bias_acc_kernel,
        out_shape=jax.ShapeDtypeStruct((M, E), jnp.float32),
        grid_spec=pltpu.PrefetchScalarGridSpec(
            num_scalar_prefetch=0,
            grid=(M // tm, K // tk),
            in_specs=[
                pl.BlockSpec((tm, tk), lambda i, k: (i, k)),
                pl.BlockSpec((tk, E), lambda i, k: (k, 0)),
                pl.BlockSpec((1, E), lambda i, k: (0, 0)),
            ],
            out_specs=pl.BlockSpec((tm, E), lambda i, k: (i, 0)),
            scratch_shapes=[pltpu.VMEM((tm, E), jnp.float32)],
        ),
        compiler_params=pltpu.CompilerParams(
            dimension_semantics=("parallel", "arbitrary"),
            vmem_limit_bytes=vmem_limit),
    )(xp, wm, bias2d)


# ---------------------------------------------------------------------------
# parameter prep (hoisted out of the per-call forward) + forward
# ---------------------------------------------------------------------------
def prepare_patch_embed_weight(weight, patch_size, dtype=jnp.bfloat16):
    """nn.Conv2d weight (E, C, P, P) -> pre-flattened (K, E) matmul weight, K = C*P*P.

    Do this ONCE at parameter-load time; the forward takes the result directly so the
    (K, E) copy is not re-materialized in HBM on every call.
    """
    E, C, P1, P2 = weight.shape
    assert P1 == patch_size and P2 == patch_size
    K = C * patch_size * patch_size
    return jnp.asarray(weight).reshape(E, K).T.astype(dtype)


def patch_embed_forward(x, wm, bias, patch_size):
    """x: (B, C, H, W); wm: (C*P*P, E) pre-flattened bf16 weight; bias: (E,).

    Returns (B, Np, E) f32 with Np = (H//P)*(W//P), matching
    `proj(x).flatten(2).transpose(1, 2)`.
    """
    B, C, H, W = x.shape
    P = patch_size
    K, E = wm.shape
    assert K == C * P * P, "weight does not match (C, patch_size)"
    # nn.Conv2d with stride == kernel floors a non-divisible tail; require exact tiling here.
    assert H % P == 0 and W % P == 0, "H and W must be multiples of patch_size"
    Hp, Wp = H // P, W // P
    M = B * Hp * Wp

    # --- patchify (pure layout plumbing, stays in XLA; bf16 halves the HBM round trip) ---
    # (B, C, H, W) -> (B, Hp, Wp, C, P, P) -> (M, K), features flattened in (C, kh, kw)
    # order to match the Conv2d weight flatten in prepare_patch_embed_weight.
    # TODO(synk): fuse the im2col into the kernel via a (1, C, P, W) BlockSpec on x to avoid
    # the xp HBM round trip entirely for ViT-scale inputs.
    xp = x.astype(jnp.bfloat16).reshape(B, C, Hp, P, Wp, P)
    xp = xp.transpose(0, 2, 4, 1, 3, 5).reshape(M, K)

    # pad rows to a sublane multiple so the M tile satisfies the (8, 128) rule
    Mp = ((M + 7) // 8) * 8
    if Mp != M:
        xp = jnp.pad(xp, ((0, Mp - M), (0, 0)))

    bias2d = jnp.asarray(bias, jnp.float32).reshape(1, E)

    budget = _vmem_budget_bytes()
    tm = _pick_tile_m(Mp, 512, 8)
    xb = wb = 2  # bf16 bytes

    # Single-K-step path: double-buffered x slab + resident weight + double-buffered out.
    single_bytes = 2 * tm * K * xb + 2 * K * E * wb + 2 * tm * E * 4 + 2 * E * 4
    if single_bytes <= budget:
        out = _matmul_single(xp, wm, bias2d, tm=tm, vmem_limit=budget)
    else:
        # K-tiled accumulator fallback for very large K / tight VMEM.
        Kp = ((K + 127) // 128) * 128
        if Kp != K:  # zero-pad the contraction axis (zeros contribute nothing to the dot)
            xp = jnp.pad(xp, ((0, 0), (0, Kp - K)))
            wm = jnp.pad(wm, ((0, Kp - K), (0, 0)))
        fixed = 3 * tm * E * 4 + 2 * E * 4            # out (x2) + acc scratch + bias
        tk_cap = max(128, (budget - fixed) // (2 * tm * xb + 2 * E * wb))
        tk = _pick_tile_k(Kp, tk_cap)
        out = _matmul_tiled(xp, wm, bias2d, tm=tm, tk=tk, vmem_limit=budget)

    out = out[:M]
    return out.reshape(B, Hp * Wp, E)


# ---------------------------------------------------------------------------
# demo / self-check
# ---------------------------------------------------------------------------
if __name__ == "__main__":
    key = jax.random.PRNGKey(0)
    kx, kw, kb = jax.random.split(key, 3)

    # small shapes consistent with the module (img 64, patch 16, C_in 32, embed 128)
    B, C, H, W = 2, 32, 64, 64
    P, E = 16, 128

    x = jax.random.normal(kx, (B, C, H, W), jnp.float32)
    weight = jax.random.normal(kw, (E, C, P, P), jnp.float32) * 0.02
    bias = jax.random.normal(kb, (E,), jnp.float32) * 0.02

    # weight prep hoisted out of the forward (done once per parameter set)
    wm = prepare_patch_embed_weight(weight, P)

    out = patch_embed_forward(x, wm, bias, P)
    jax.block_until_ready(out)
    assert out.shape == (B, (H // P) * (W // P), E)

    # reference: same bf16-input / f32-accumulate numerics via XLA conv, then
    # flatten(2).transpose(1, 2)  (kernel intentionally runs the MXU in bf16).
    x_bf = x.astype(jnp.bfloat16).astype(jnp.float32)
    w_bf = weight.astype(jnp.bfloat16).astype(jnp.float32)
    ref = jax.lax.conv_general_dilated(
        x_bf, w_bf, window_strides=(P, P), padding="VALID",
        dimension_numbers=("NCHW", "OIHW", "NCHW"),
        precision=jax.lax.Precision.HIGHEST)
    ref = ref + bias[None, :, None, None]
    ref = ref.reshape(B, E, -1).transpose(0, 2, 1)

    err = float(jnp.max(jnp.abs(out - ref)))
    assert jnp.allclose(out, ref, atol=1e-2, rtol=1e-2), f"max abs err = {err}"
    print("KERNEL_OK")
</pallas_src>

<mosaic_0001>
module attributes {stable_mosaic.version = 11 : i64} {
  func.func @_matmul_bias_kernel(%arg0: i32, %arg1: memref<32x8192xbf16, #tpu.memory_space<vmem>>, %arg2: memref<8192x128xbf16, #tpu.memory_space<vmem>>, %arg3: memref<1x128xf32, #tpu.memory_space<vmem>>, %arg4: memref<32x128xf32, #tpu.memory_space<vmem>>) attributes {dimension_semantics = [#tpu.dimension_semantics<parallel>], iteration_bounds = array<i64: 1>, scalar_prefetch = 0 : i64, scratch_operands = 0 : i64, tpu.core_type = #tpu.core_type<tc>, window_params = [{transform_indices = @transform_0, window_bounds = array<i64: 32, 8192>}, {pipeline_mode = #tpu.pipeline_mode<synchronous>, transform_indices = @transform_1, window_bounds = array<i64: 8192, 128>}, {pipeline_mode = #tpu.pipeline_mode<synchronous>, transform_indices = @transform_2, window_bounds = array<i64: 1, 128>}, {transform_indices = @transform_3, window_bounds = array<i64: 32, 128>}]} {
    %c0 = arith.constant 0 : index
    %c0_0 = arith.constant 0 : index
    %0 = vector.load %arg1[%c0, %c0_0] : memref<32x8192xbf16, #tpu.memory_space<vmem>>, vector<32x8192xbf16>
    %c0_1 = arith.constant 0 : index
    %c0_2 = arith.constant 0 : index
    %1 = vector.load %arg2[%c0_1, %c0_2] : memref<8192x128xbf16, #tpu.memory_space<vmem>>, vector<8192x128xbf16>
    %cst = arith.constant dense<0.000000e+00> : vector<32x128xf32>
    %2 = tpu.matmul %0, %1, %cst {dimension_numbers = #tpu.dot_dimension_numbers<[1], [0], [0], [1], [0, 0, 1, 1], [], []>} : vector<32x8192xbf16>, vector<8192x128xbf16>, vector<32x128xf32> -> vector<32x128xf32>
    %c0_3 = arith.constant 0 : index
    %c0_4 = arith.constant 0 : index
    %3 = vector.load %arg3[%c0_3, %c0_4] : memref<1x128xf32, #tpu.memory_space<vmem>>, vector<1x128xf32>
    %4 = vector.broadcast %3 : vector<1x128xf32> to vector<32x128xf32>
    %5 = arith.addf %2, %4 : vector<32x128xf32>
    %c0_5 = arith.constant 0 : index
    %c0_6 = arith.constant 0 : index
    %6 = vector.load %arg4[%c0_5, %c0_6] : memref<32x128xf32, #tpu.memory_space<vmem>>, vector<32x128xf32>
    tpu.vector_store %arg4[%c0_5, %c0_6], %5 {strides = array<i32>} : memref<32x128xf32, #tpu.memory_space<vmem>>, vector<32x128xf32>,
    return
  }
  func.func @transform_0(%arg0: i32) -> (i32, i32) {
    %c0_i32 = arith.constant 0 : i32
    %c0_i32_0 = arith.constant 0 : i32
    return %arg0, %c0_i32 : i32, i32
  }
  func.func @transform_1(%arg0: i32) -> (i32, i32) {
    %c0_i32 = arith.constant 0 : i32
    %c0_i32_0 = arith.constant 0 : i32
    %c0_i32_1 = arith.constant 0 : i32
    return %c0_i32, %c0_i32_0 : i32, i32
  }
  func.func @transform_2(%arg0: i32) -> (i32, i32) {
    %c0_i32 = arith.constant 0 : i32
    %c0_i32_0 = arith.constant 0 : i32
    %c0_i32_1 = arith.constant 0 : i32
    return %c0_i32, %c0_i32_0 : i32, i32
  }
  func.func @transform_3(%arg0: i32) -> (i32, i32) {
    %c0_i32 = arith.constant 0 : i32
    %c0_i32_0 = arith.constant 0 : i32
    return %arg0, %c0_i32 : i32, i32
  }
}

</mosaic_0001>

<llo_original>
// kernel: tpu_custom_call.1
$region0: #{tpu_custom_call.1}
  #allocation0 [shape = 'u32[]', space=smem, size = 0x4, offset = 0x4, fixed_abs, tag = 'smem constant byte address 0x4 - core index']
  #allocation1 [shape = 'u32[144,128]{1,0:T(1,128)}', space=vmem, size = 0x12000, scoped, tag = 'internal scratch']
  %s0 = inlined_call_operand.hbm [shape: bf16[32,8192], index: 0, kind: input, shape index: {}]
  %s1 = inlined_call_operand.hbm [shape: bf16[8192,128], index: 1, kind: input, shape index: {}]
  %s2 = inlined_call_operand.hbm [shape: f32[1,128], index: 2, kind: input, shape index: {}]
  %s3 = inlined_call_operand.hbm [shape: f32[32,128], index: 3, kind: output, shape index: {}]
  %s4 = sld [smem:[#allocation0]]
  $region34: #{tpu_custom_call.1} parent=0
    _
  %s6 = ssub.s32 1, %s4
  %s7 = scalar_select 0, %s6, %s4
  $region1: #{tpu_custom_call.1} parent=0
    #allocation2 [shape = 'u8[524288]{0}', space=vmem, size = 0x80000, scoped, tag = 'input window, operand 0, single buffered']
    #allocation3 [shape = 's32[1]{0}', space=sflag, size = 0x4, scoped, tag = 'scoped memory for tpu_custom_call.1']
    #allocation4 [shape = 's32[1]{0}', space=sflag, size = 0x4, scoped, tag = 'scoped memory for tpu_custom_call.1']
    #allocation5 [shape = 'u8[2097152]{0}', space=vmem, size = 0x200000, scoped, tag = 'input window, operand 1, single buffered']
    #allocation6 [shape = 's32[1]{0}', space=sflag, size = 0x4, scoped, tag = 'scoped memory for tpu_custom_call.1']
    #allocation7 [shape = 'u8[512]{0}', space=vmem, size = 0x400, scoped, tag = 'input window, operand 2, single buffered']
    #allocation8 [shape = 'u8[16384]{0}', space=vmem, size = 0x4000, scoped, tag = 'output window, operand 0, single buffered']
    %8 = vsyncpa [#allocation3], 0
    %9 = vsyncpa [#allocation6], 0
    %10 = vsyncpa [#allocation4], 0
    // Predicated region
    $region2: #{tpu_custom_call.1} parent=1 // pred_check
      _
    $region3: #{tpu_custom_call.1} parent=1 // pred_check_branch
      %12 = sbr.rel (0) target = $region5
    $region4: #{tpu_custom_call.1} parent=1 // pred_region
      %s14 = ssub.s32 16384, 16384
      %15 = vsyncadd [#allocation3], %s14
      %s16 = sshll.u32 [#allocation2], 4
      %s17 = int_to_ptr.vmem [resolvable:$true] %s16
      %22 = dma.hbm_to_vmem [thread:$0]  %s0, 16384, %s17, [#allocation3], 4096, 4096, 256
    $region5: #{tpu_custom_call.1} parent=1 // pred_fallthru
      _
    // Predicated region
    $region6: #{tpu_custom_call.1} parent=1 // pred_check
      _
    $region7: #{tpu_custom_call.1} parent=1 // pred_check_branch
      %24 = sbr.rel (0) target = $region9
    $region8: #{tpu_custom_call.1} parent=1 // pred_region
      %s26 = ssub.s32 65536, 65536
      %27 = vsyncadd [#allocation6], %s26
      %s28 = sshll.u32 [#allocation5], 4
      %s29 = int_to_ptr.vmem [resolvable:$true] %s28
      %34 = dma.hbm_to_vmem [thread:$0]  %s1, 65536, %s29, [#allocation6], 64, 64, 4
    $region9: #{tpu_custom_call.1} parent=1 // pred_fallthru
      _
    // Predicated region
    $region10: #{tpu_custom_call.1} parent=1 // pred_check
      _
    $region11: #{tpu_custom_call.1} parent=1 // pred_check_branch
      %36 = sbr.rel (0) target = $region13
    $region12: #{tpu_custom_call.1} parent=1 // pred_region
      %s38 = ssub.s32 16, 16
      %39 = vsyncadd [#allocation6], %s38
      %s41 = sshll.u32 [#allocation7], 4
      %s42 = int_to_ptr.vmem [resolvable:$true] %s41
      %44 = dma.hbm_to_vmem [thread:$0]  %s2, 16, %s42, [#allocation6]
    $region13: #{tpu_custom_call.1} parent=1 // pred_fallthru
      _
    // Predicated region
    $region14: #{tpu_custom_call.1} parent=1 // pred_check
      _
    $region15: #{tpu_custom_call.1} parent=1 // pred_check_branch
      %46 = sbr.rel (0) target = $region17
    $region16: #{tpu_custom_call.1} parent=1 // pred_region
      %47 = dma.done [#allocation3], 16384
    $region17: #{tpu_custom_call.1} parent=1 // pred_fallthru
      _
    // Predicated region
    $region18: #{tpu_custom_call.1} parent=1 // pred_check
      _
    $region19: #{tpu_custom_call.1} parent=1 // pred_check_branch
      %49 = sbr.rel (0) target = $region21
    $region20: #{tpu_custom_call.1} parent=1 // pred_region
      %50 = dma.done [#allocation6], 65536
    $region21: #{tpu_custom_call.1} parent=1 // pred_fallthru
      _
    // Predicated region
    $region22: #{tpu_custom_call.1} parent=1 // pred_check
      _
    $region23: #{tpu_custom_call.1} parent=1 // pred_check_branch
      %52 = sbr.rel (0) target = $region25
    $region24: #{tpu_custom_call.1} parent=1 // pred_region
      %53 = dma.done [#allocation6], 16
    $region25: #{tpu_custom_call.1} parent=1 // pred_fallthru
      _
    %v55 = vld [vmem:[#allocation2] sm:$0xff]
    %v56 = vld [vmem:[#allocation2 + $0x8] sm:$0xff]
    %v57 = vld [vmem:[#allocation2 + $0x10] sm:$0xff]
    %v58 = vld [vmem:[#allocation2 + $0x18] sm:$0xff]
    %v59 = vld [vmem:[#allocation2 + $0x20] sm:$0xff]
    %v60 = vld [vmem:[#allocation2 + $0x28] sm:$0xff]
    %v61 = vld [vmem:[#allocation2 + $0x30] sm:$0xff]
    %v62 = vld [vmem:[#allocation2 + $0x38] sm:$0xff]
    %v63 = vld [vmem:[#allocation2 + $0x40] sm:$0xff]
    %v64 = vld [vmem:[#allocation2 + $0x48] sm:$0xff]
    %v65 = vld [vmem:[#allocation2 + $0x50] sm:$0xff]
    %v66 = vld [vmem:[#allocation2 + $0x58] sm:$0xff]
    %v67 = vld [vmem:[#allocation2 + $0x60] sm:$0xff]
    %v68 = vld [vmem:[#allocation2 + $0x68] sm:$0xff]
    %v69 = vld [vmem:[#allocation2 + $0x70] sm:$0xff]
    %v70 = vld [vmem:[#allocation2 + $0x78] sm:$0xff]
    %v71 = vld [vmem:[#allocation2 + $0x80] sm:$0xff]
    %v72 = vld [vmem:[#allocation2 + $0x88] sm:$0xff]
    %v73 = vld [vmem:[#allocation2 + $0x90] sm:$0xff]
    %v74 = vld [vmem:[#allocation2 + $0x98] sm:$0xff]
    %v75 = vld [vmem:[#allocation2 + $0xa0] sm:$0xff]
    %v76 = vld [vmem:[#allocation2 + $0xa8] sm:$0xff]
    %v77 = vld [vmem:[#allocation2 + $0xb0] sm:$0xff]
    %v78 = vld [vmem:[#allocation2 + $0xb8] sm:$0xff]
    %v79 = vld [vmem:[#allocation2 + $0xc0] sm:$0xff]
    %v80 = vld [vmem:[#allocation2 + $0xc8] sm:$0xff]
    %v81 = vld [vmem:[#allocation2 + $0xd0] sm:$0xff]
    %v82 = vld [vmem:[#allocation2 + $0xd8] sm:$0xff]
    %v83 = vld [vmem:[#allocation2 + $0xe0] sm:$0xff]
    %v84 = vld [vmem:[#allocation2 + $0xe8] sm:$0xff]
    %v85 = vld [vmem:[#allocation2 + $0xf0] sm:$0xff]
    %v86 = vld [vmem:[#allocation2 + $0xf8] sm:$0xff]
    %v87 = vld [vmem:[#allocation2 + $0x100] sm:$0xff]
    %v88 = vld [vmem:[#allocation2 + $0x108] sm:$0xff]
    %v89 = vld [vmem:[#allocation2 + $0x110] sm:$0xff]
    %v90 = vld [vmem:[#allocation2 + $0x118] sm:$0xff]
    %v91 = vld [vmem:[#allocation2 + $0x120] sm:$0xff]
    %v92 = vld [vmem:[#allocation2 + $0x128] sm:$0xff]
    %v93 = vld [vmem:[#allocation2 + $0x130] sm:$0xff]
    %v94 = vld [vmem:[#allocation2 + $0x138] sm:$0xff]
    %v95 = vld [vmem:[#allocation2 + $0x140] sm:$0xff]
    %v96 = vld [vmem:[#allocation2 + $0x148] sm:$0xff]
    %v97 = vld [vmem:[#allocation2 + $0x150] sm:$0xff]
    %v98 = vld [vmem:[#allocation2 + $0x158] sm:$0xff]
    %v99 = vld [vmem:[#allocation2 + $0x160] sm:$0xff]
    %v100 = vld [vmem:[#allocation2 + $0x168] sm:$0xff]
    %v101 = vld [vmem:[#allocation2 + $0x170] sm:$0xff]
    %v102 = vld [vmem:[#allocation2 + $0x178] sm:$0xff]
    %v103 = vld [vmem:[#allocation2 + $0x180] sm:$0xff]
    %v104 = vld [vmem:[#allocation2 + $0x188] sm:$0xff]
    %v105 = vld [vmem:[#allocation2 + $0x190] sm:$0xff]
    %v106 = vld [vmem:[#allocation2 + $0x198] sm:$0xff]
    %v107 = vld [vmem:[#allocation2 + $0x1a0] sm:$0xff]
    %v108 = vld [vmem:[#allocation2 + $0x1a8] sm:$0xff]
    %v109 = vld [vmem:[#allocation2 + $0x1b0] sm:$0xff]
    %v110 = vld [vmem:[#allocation2 + $0x1b8] sm:$0xff]
    %v111 = vld [vmem:[#allocation2 + $0x1c0] sm:$0xff]
    %v112 = vld [vmem:[#allocation2 + $0x1c8] sm:$0xff]
    %v113 = vld [vmem:[#allocation2 + $0x1d0] sm:$0xff]
    %v114 = vld [vmem:[#allocation2 + $0x1d8] sm:$0xff]
    %v115 = vld [vmem:[#allocation2 + $0x1e0] sm:$0xff]
    %v116 = vld [vmem:[#allocation2 + $0x1e8] sm:$0xff]
    %v117 = vld [vmem:[#allocation2 + $0x1f0] sm:$0xff]
    %v118 = vld [vmem:[#allocation2 + $0x1f8] sm:$0xff]
    %v119 = vld [vmem:[#allocation2 + $0x200] sm:$0xff]
    %v120 = vld [vmem:[#allocation2 + $0x208] sm:$0xff]
    %v121 = vld [vmem:[#allocation2 + $0x210] sm:$0xff]
    %v122 = vld [vmem:[#allocation2 + $0x218] sm:$0xff]
    %v123 = vld [vmem:[#allocation2 + $0x220] sm:$0xff]
    %v124 = vld [vmem:[#allocation2 + $0x228] sm:$0xff]
    %v125 = vld [vmem:[#allocation2 + $0x230] sm:$0xff]
    %v126 = vld [vmem:[#allocation2 + $0x238] sm:$0xff]
    %v127 = vld [vmem:[#allocation2 + $0x240] sm:$0xff]
    %v128 = vld [vmem:[#allocation2 + $0x248] sm:$0xff]
    %v129 = vld [vmem:[#allocation2 + $0x250] sm:$0xff]
    %v130 = vld [vmem:[#allocation2 + $0x258] sm:$0xff]
    %v131 = vld [vmem:[#allocation2 + $0x260] sm:$0xff]
    %v132 = vld [vmem:[#allocation2 + $0x268] sm:$0xff]
    %v133 = vld [vmem:[#allocation2 + $0x270] sm:$0xff]
    %v134 = vld [vmem:[#allocation2 + $0x278] sm:$0xff]
    %v135 = vld [vmem:[#allocation2 + $0x280] sm:$0xff]
    %v136 = vld [vmem:[#allocation2 + $0x288] sm:$0xff]
    %v137 = vld [vmem:[#allocation2 + $0x290] sm:$0xff]
    %v138 = vld [vmem:[#allocation2 + $0x298] sm:$0xff]
    %v139 = vld [vmem:[#allocation2 + $0x2a0] sm:$0xff]
    %v140 = vld [vmem:[#allocation2 + $0x2a8] sm:$0xff]
    %v141 = vld [vmem:[#allocation2 + $0x2b0] sm:$0xff]
    %v142 = vld [vmem:[#allocation2 + $0x2b8] sm:$0xff]
    %v143 = vld [vmem:[#allocation2 + $0x2c0] sm:$0xff]
    %v144 = vld [vmem:[#allocation2 + $0x2c8] sm:$0xff]
    %v145 = vld [vmem:[#allocation2 + $0x2d0] sm:$0xff]
    %v146 = vld [vmem:[#allocation2 + $0x2d8] sm:$0xff]
    %v147 = vld [vmem:[#allocation2 + $0x2e0] sm:$0xff]
    %v148 = vld [vmem:[#allocation2 + $0x2e8] sm:$0xff]
    %v149 = vld [vmem:[#allocation2 + $0x2f0] sm:$0xff]
    %v150 = vld [vmem:[#allocation2 + $0x2f8] sm:$0xff]
    %v151 = vld [vmem:[#allocation2 + $0x300] sm:$0xff]
    %v152 = vld [vmem:[#allocation2 + $0x308] sm:$0xff]
    %v153 = vld [vmem:[#allocation2 + $0x310] sm:$0xff]
    %v154 = vld [vmem:[#allocation2 + $0x318] sm:$0xff]
    %v155 = vld [vmem:[#allocation2 + $0x320] sm:$0xff]
    %v156 = vld [vmem:[#allocation2 + $0x328] sm:$0xff]
    %v157 = vld [vmem:[#allocation2 + $0x330] sm:$0xff]
    %v158 = vld [vmem:[#allocation2 + $0x338] sm:$0xff]
    %v159 = vld [vmem:[#allocation2 + $0x340] sm:$0xff]
    %v160 = vld [vmem:[#allocation2 + $0x348] sm:$0xff]
    %v161 = vld [vmem:[#allocation2 + $0x350] sm:$0xff]
    %v162 = vld [vmem:[#allocation2 + $0x358] sm:$0xff]
    %v163 = vld [vmem:[#allocation2 + $0x360] sm:$0xff]
    %v164 = vld [vmem:[#allocation2 + $0x368] sm:$0xff]
    %v165 = vld [vmem:[#allocation2 + $0x370] sm:$0xff]
    %v166 = vld [vmem:[#allocation2 + $0x378] sm:$0xff]
    %v167 = vld [vmem:[#allocation2 + $0x380] sm:$0xff]
    %v168 = vld [vmem:[#allocation2 + $0x388] sm:$0xff]
    %v169 = vld [vmem:[#allocation2 + $0x390] sm:$0xff]
    %v170 = vld [vmem:[#allocation2 + $0x398] sm:$0xff]
    %v171 = vld [vmem:[#allocation2 + $0x3a0] sm:$0xff]
    %v172 = vld [vmem:[#allocation2 + $0x3a8] sm:$0xff]
    %v173 = vld [vmem:[#allocation2 + $0x3b0] sm:$0xff]
    %v174 = vld [vmem:[#allocation2 + $0x3b8] sm:$0xff]
    %v175 = vld [vmem:[#allocation2 + $0x3c0] sm:$0xff]
    %v176 = vld [vmem:[#allocation2 + $0x3c8] sm:$0xff]
    %v177 = vld [vmem:[#allocation2 + $0x3d0] sm:$0xff]
    %v178 = vld [vmem:[#allocation2 + $0x3d8] sm:$0xff]
    %v179 = vld [vmem:[#allocation2 + $0x3e0] sm:$0xff]
    %v180 = vld [vmem:[#allocation2 + $0x3e8] sm:$0xff]
    %v181 = vld [vmem:[#allocation2 + $0x3f0] sm:$0xff]
    %v182 = vld [vmem:[#allocation2 + $0x3f8] sm:$0xff]
    %v183 = vld [vmem:[#allocation5] sm:$0xf]
    %v184 = vld [vmem:[#allocation5 + $0x4] sm:$0xf]
    %v185 = vld [vmem:[#allocation5 + $0x8] sm:$0xf]
    %v186 = vld [vmem:[#allocation5 + $0xc] sm:$0xf]
    %v187 = vld [vmem:[#allocation5 + $0x10] sm:$0xf]
    %v188 = vld [vmem:[#allocation5 + $0x14] sm:$0xf]
    %v189 = vld [vmem:[#allocation5 + $0x18] sm:$0xf]
    %v190 = vld [vmem:[#allocation5 + $0x1c] sm:$0xf]
    %v191 = vld [vmem:[#allocation5 + $0x20] sm:$0xf]
    %v192 = vld [vmem:[#allocation5 + $0x24] sm:$0xf]
    %v193 = vld [vmem:[#allocation5 + $0x28] sm:$0xf]
    %v194 = vld [vmem:[#allocation5 + $0x2c] sm:$0xf]
    %v195 = vld [vmem:[#allocation5 + $0x30] sm:$0xf]
    %v196 = vld [vmem:[#allocation5 + $0x34] sm:$0xf]
    %v197 = vld [vmem:[#allocation5 + $0x38] sm:$0xf]
    %v198 = vld [vmem:[#allocation5 + $0x3c] sm:$0xf]
    %v199 = vld [vmem:[#allocation5 + $0x40] sm:$0xf]
    %v200 = vld [vmem:[#allocation5 + $0x44] sm:$0xf]
    %v201 = vld [vmem:[#allocation5 + $0x48] sm:$0xf]
    %v202 = vld [vmem:[#allocation5 + $0x4c] sm:$0xf]
    %v203 = vld [vmem:[#allocation5 + $0x50] sm:$0xf]
    %v204 = vld [vmem:[#allocation5 + $0x54] sm:$0xf]
    %v205 = vld [vmem:[#allocation5 + $0x58] sm:$0xf]
    %v206 = vld [vmem:[#allocation5 + $0x5c] sm:$0xf]
    %v207 = vld [vmem:[#allocation5 + $0x60] sm:$0xf]
    %v208 = vld [vmem:[#allocation5 + $0x64] sm:$0xf]
    %v209 = vld [vmem:[#allocation5 + $0x68] sm:$0xf]
    %v210 = vld [vmem:[#allocation5 + $0x6c] sm:$0xf]
    %v211 = vld [vmem:[#allocation5 + $0x70] sm:$0xf]
    %v212 = vld [vmem:[#allocation5 + $0x74] sm:$0xf]
    %v213 = vld [vmem:[#allocation5 + $0x78] sm:$0xf]
    %v214 = vld [vmem:[#allocation5 + $0x7c] sm:$0xf]
    %v215 = vld [vmem:[#allocation5 + $0x80] sm:$0xf]
    %v216 = vld [vmem:[#allocation5 + $0x84] sm:$0xf]
    %v217 = vld [vmem:[#allocation5 + $0x88] sm:$0xf]
    %v218 = vld [vmem:[#allocation5 + $0x8c] sm:$0xf]
    %v219 = vld [vmem:[#allocation5 + $0x90] sm:$0xf]
    %v220 = vld [vmem:[#allocation5 + $0x94] sm:$0xf]
    %v221 = vld [vmem:[#allocation5 + $0x98] sm:$0xf]
    %v222 = vld [vmem:[#allocation5 + $0x9c] sm:$0xf]
    %v223 = vld [vmem:[#allocation5 + $0xa0] sm:$0xf]
    %v224 = vld [vmem:[#allocation5 + $0xa4] sm:$0xf]
    %v225 = vld [vmem:[#allocation5 + $0xa8] sm:$0xf]
    %v226 = vld [vmem:[#allocation5 + $0xac] sm:$0xf]
    %v227 = vld [vmem:[#allocation5 + $0xb0] sm:$0xf]
    %v228 = vld [vmem:[#allocation5 + $0xb4] sm:$0xf]
    %v229 = vld [vmem:[#allocation5 + $0xb8] sm:$0xf]
    %v230 = vld [vmem:[#allocation5 + $0xbc] sm:$0xf]
    %v231 = vld [vmem:[#allocation5 + $0xc0] sm:$0xf]
    %v232 = vld [vmem:[#allocation5 + $0xc4] sm:$0xf]
    %v233 = vld [vmem:[#allocation5 + $0xc8] sm:$0xf]
    %v234 = vld [vmem:[#allocation5 + $0xcc] sm:$0xf]
    %v235 = vld [vmem:[#allocation5 + $0xd0] sm:$0xf]
    %v236 = vld [vmem:[#allocation5 + $0xd4] sm:$0xf]
    %v237 = vld [vmem:[#allocation5 + $0xd8] sm:$0xf]
    %v238 = vld [vmem:[#allocation5 + $0xdc] sm:$0xf]
    %v239 = vld [vmem:[#allocation5 + $0xe0] sm:$0xf]
    %v240 = vld [vmem:[#allocation5 + $0xe4] sm:$0xf]
    %v241 = vld [vmem:[#allocation5 + $0xe8] sm:$0xf]
    %v242 = vld [vmem:[#allocation5 + $0xec] sm:$0xf]
    %v243 = vld [vmem:[#allocation5 + $0xf0] sm:$0xf]
    %v244 = vld [vmem:[#allocation5 + $0xf4] sm:$0xf]
    %v245 = vld [vmem:[#allocation5 + $0xf8] sm:$0xf]
    %v246 = vld [vmem:[#allocation5 + $0xfc] sm:$0xf]
    %v247 = vld [vmem:[#allocation5 + $0x100] sm:$0xf]
    %v248 = vld [vmem:[#allocation5 + $0x104] sm:$0xf]
    %v249 = vld [vmem:[#allocation5 + $0x108] sm:$0xf]
    %v250 = vld [vmem:[#allocation5 + $0x10c] sm:$0xf]
    %v251 = vld [vmem:[#allocation5 + $0x110] sm:$0xf]
    %v252 = vld [vmem:[#allocation5 + $0x114] sm:$0xf]
    %v253 = vld [vmem:[#allocation5 + $0x118] sm:$0xf]
    %v254 = vld [vmem:[#allocation5 + $0x11c] sm:$0xf]
    %v255 = vld [vmem:[#allocation5 + $0x120] sm:$0xf]
    %v256 = vld [vmem:[#allocation5 + $0x124] sm:$0xf]
    %v257 = vld [vmem:[#allocation5 + $0x128] sm:$0xf]
    %v258 = vld [vmem:[#allocation5 + $0x12c] sm:$0xf]
    %v259 = vld [vmem:[#allocation5 + $0x130] sm:$0xf]
    %v260 = vld [vmem:[#allocation5 + $0x134] sm:$0xf]
    %v261 = vld [vmem:[#allocation5 + $0x138] sm:$0xf]
    %v262 = vld [vmem:[#allocation5 + $0x13c] sm:$0xf]
    %v263 = vld [vmem:[#allocation5 + $0x140] sm:$0xf]
    %v264 = vld [vmem:[#allocation5 + $0x144] sm:$0xf]
    %v265 = vld [vmem:[#allocation5 + $0x148] sm:$0xf]
    %v266 = vld [vmem:[#allocation5 + $0x14c] sm:$0xf]
    %v267 = vld [vmem:[#allocation5 + $0x150] sm:$0xf]
    %v268 = vld [vmem:[#allocation5 + $0x154] sm:$0xf]
    %v269 = vld [vmem:[#allocation5 + $0x158] sm:$0xf]
    %v270 = vld [vmem:[#allocation5 + $0x15c] sm:$0xf]
    %v271 = vld [vmem:[#allocation5 + $0x160] sm:$0xf]
    %v272 = vld [vmem:[#allocation5 + $0x164] sm:$0xf]
    %v273 = vld [vmem:[#allocation5 + $0x168] sm:$0xf]
    %v274 = vld [vmem:[#allocation5 + $0x16c] sm:$0xf]
    %v275 = vld [vmem:[#allocation5 + $0x170] sm:$0xf]
    %v276 = vld [vmem:[#allocation5 + $0x174] sm:$0xf]
    %v277 = vld [vmem:[#allocation5 + $0x178] sm:$0xf]
    %v278 = vld [vmem:[#allocation5 + $0x17c] sm:$0xf]
    %v279 = vld [vmem:[#allocation5 + $0x180] sm:$0xf]
    %v280 = vld [vmem:[#allocation5 + $0x184] sm:$0xf]
    %v281 = vld [vmem:[#allocation5 + $0x188] sm:$0xf]
    %v282 = vld [vmem:[#allocation5 + $0x18c] sm:$0xf]
    %v283 = vld [vmem:[#allocation5 + $0x190] sm:$0xf]
    %v284 = vld [vmem:[#allocation5 + $0x194] sm:$0xf]
    %v285 = vld [vmem:[#allocation5 + $0x198] sm:$0xf]
    %v286 = vld [vmem:[#allocation5 + $0x19c] sm:$0xf]
    %v287 = vld [vmem:[#allocation5 + $0x1a0] sm:$0xf]
    %v288 = vld [vmem:[#allocation5 + $0x1a4] sm:$0xf]
    %v289 = vld [vmem:[#allocation5 + $0x1a8] sm:$0xf]
    %v290 = vld [vmem:[#allocation5 + $0x1ac] sm:$0xf]
    %v291 = vld [vmem:[#allocation5 + $0x1b0] sm:$0xf]
    %v292 = vld [vmem:[#allocation5 + $0x1b4] sm:$0xf]
    %v293 = vld [vmem:[#allocation5 + $0x1b8] sm:$0xf]
    %v294 = vld [vmem:[#allocation5 + $0x1bc] sm:$0xf]
    %v295 = vld [vmem:[#allocation5 + $0x1c0] sm:$0xf]
    %v296 = vld [vmem:[#allocation5 + $0x1c4] sm:$0xf]
    %v297 = vld [vmem:[#allocation5 + $0x1c8] sm:$0xf]
    %v298 = vld [vmem:[#allocation5 + $0x1cc] sm:$0xf]
    %v299 = vld [vmem:[#allocation5 + $0x1d0] sm:$0xf]
    %v300 = vld [vmem:[#allocation5 + $0x1d4] sm:$0xf]
    %v301 = vld [vmem:[#allocation5 + $0x1d8] sm:$0xf]
    %v302 = vld [vmem:[#allocation5 + $0x1dc] sm:$0xf]
    %v303 = vld [vmem:[#allocation5 + $0x1e0] sm:$0xf]
    %v304 = vld [vmem:[#allocation5 + $0x1e4] sm:$0xf]
    %v305 = vld [vmem:[#allocation5 + $0x1e8] sm:$0xf]
    %v306 = vld [vmem:[#allocation5 + $0x1ec] sm:$0xf]
    %v307 = vld [vmem:[#allocation5 + $0x1f0] sm:$0xf]
    %v308 = vld [vmem:[#allocation5 + $0x1f4] sm:$0xf]
    %v309 = vld [vmem:[#allocation5 + $0x1f8] sm:$0xf]
    %v310 = vld [vmem:[#allocation5 + $0x1fc] sm:$0xf]
    %v311 = vld [vmem:[#allocation5 + $0x200] sm:$0xf]
    %v312 = vld [vmem:[#allocation5 + $0x204] sm:$0xf]
    %v313 = vld [vmem:[#allocation5 + $0x208] sm:$0xf]
    %v314 = vld [vmem:[#allocation5 + $0x20c] sm:$0xf]
    %v315 = vld [vmem:[#allocation5 + $0x210] sm:$0xf]
    %v316 = vld [vmem:[#allocation5 + $0x214] sm:$0xf]
    %v317 = vld [vmem:[#allocation5 + $0x218] sm:$0xf]
    %v318 = vld [vmem:[#allocation5 + $0x21c] sm:$0xf]
    %v319 = vld [vmem:[#allocation5 + $0x220] sm:$0xf]
    %v320 = vld [vmem:[#allocation5 + $0x224] sm:$0xf]
    %v321 = vld [vmem:[#allocation5 + $0x228] sm:$0xf]
    %v322 = vld [vmem:[#allocation5 + $0x22c] sm:$0xf]
    %v323 = vld [vmem:[#allocation5 + $0x230] sm:$0xf]
    %v324 = vld [vmem:[#allocation5 + $0x234] sm:$0xf]
    %v325 = vld [vmem:[#allocation5 + $0x238] sm:$0xf]
    %v326 = vld [vmem:[#allocation5 + $0x23c] sm:$0xf]
    %v327 = vld [vmem:[#allocation5 + $0x240] sm:$0xf]
    %v328 = vld [vmem:[#allocation5 + $0x244] sm:$0xf]
    %v329 = vld [vmem:[#allocation5 + $0x248] sm:$0xf]
    %v330 = vld [vmem:[#allocation5 + $0x24c] sm:$0xf]
    %v331 = vld [vmem:[#allocation5 + $0x250] sm:$0xf]
    %v332 = vld [vmem:[#allocation5 + $0x254] sm:$0xf]
    %v333 = vld [vmem:[#allocation5 + $0x258] sm:$0xf]
    %v334 = vld [vmem:[#allocation5 + $0x25c] sm:$0xf]
    %v335 = vld [vmem:[#allocation5 + $0x260] sm:$0xf]
    %v336 = vld [vmem:[#allocation5 + $0x264] sm:$0xf]
    %v337 = vld [vmem:[#allocation5 + $0x268] sm:$0xf]
    %v338 = vld [vmem:[#allocation5 + $0x26c] sm:$0xf]
    %v339 = vld [vmem:[#allocation5 + $0x270] sm:$0xf]
    %v340 = vld [vmem:[#allocation5 + $0x274] sm:$0xf]
    %v341 = vld [vmem:[#allocation5 + $0x278] sm:$0xf]
    %v342 = vld [vmem:[#allocation5 + $0x27c] sm:$0xf]
    %v343 = vld [vmem:[#allocation5 + $0x280] sm:$0xf]
    %v344 = vld [vmem:[#allocation5 + $0x284] sm:$0xf]
    %v345 = vld [vmem:[#allocation5 + $0x288] sm:$0xf]
    %v346 = vld [vmem:[#allocation5 + $0x28c] sm:$0xf]
    %v347 = vld [vmem:[#allocation5 + $0x290] sm:$0xf]
    %v348 = vld [vmem:[#allocation5 + $0x294] sm:$0xf]
    %v349 = vld [vmem:[#allocation5 + $0x298] sm:$0xf]
    %v350 = vld [vmem:[#allocation5 + $0x29c] sm:$0xf]
    %v351 = vld [vmem:[#allocation5 + $0x2a0] sm:$0xf]
    %v352 = vld [vmem:[#allocation5 + $0x2a4] sm:$0xf]
    %v353 = vld [vmem:[#allocation5 + $0x2a8] sm:$0xf]
    %v354 = vld [vmem:[#allocation5 + $0x2ac] sm:$0xf]
    %v355 = vld [vmem:[#allocation5 + $0x2b0] sm:$0xf]
    %v356 = vld [vmem:[#allocation5 + $0x2b4] sm:$0xf]
    %v357 = vld [vmem:[#allocation5 + $0x2b8] sm:$0xf]
    %v358 = vld [vmem:[#allocation5 + $0x2bc] sm:$0xf]
    %v359 = vld [vmem:[#allocation5 + $0x2c0] sm:$0xf]
    %v360 = vld [vmem:[#allocation5 + $0x2c4] sm:$0xf]
    %v361 = vld [vmem:[#allocation5 + $0x2c8] sm:$0xf]
    %v362 = vld [vmem:[#allocation5 + $0x2cc] sm:$0xf]
    %v363 = vld [vmem:[#allocation5 + $0x2d0] sm:$0xf]
    %v364 = vld [vmem:[#allocation5 + $0x2d4] sm:$0xf]
    %v365 = vld [vmem:[#allocation5 + $0x2d8] sm:$0xf]
    %v366 = vld [vmem:[#allocation5 + $0x2dc] sm:$0xf]
    %v367 = vld [vmem:[#allocation5 + $0x2e0] sm:$0xf]
    %v368 = vld [vmem:[#allocation5 + $0x2e4] sm:$0xf]
    %v369 = vld [vmem:[#allocation5 + $0x2e8] sm:$0xf]
    %v370 = vld [vmem:[#allocation5 + $0x2ec] sm:$0xf]
    %v371 = vld [vmem:[#allocation5 + $0x2f0] sm:$0xf]
    %v372 = vld [vmem:[#allocation5 + $0x2f4] sm:$0xf]
    %v373 = vld [vmem:[#allocation5 + $0x2f8] sm:$0xf]
    %v374 = vld [vmem:[#allocation5 + $0x2fc] sm:$0xf]
    %v375 = vld [vmem:[#allocation5 + $0x300] sm:$0xf]
    %v376 = vld [vmem:[#allocation5 + $0x304] sm:$0xf]
    %v377 = vld [vmem:[#allocation5 + $0x308] sm:$0xf]
    %v378 = vld [vmem:[#allocation5 + $0x30c] sm:$0xf]
    %v379 = vld [vmem:[#allocation5 + $0x310] sm:$0xf]
    %v380 = vld [vmem:[#allocation5 + $0x314] sm:$0xf]
    %v381 = vld [vmem:[#allocation5 + $0x318] sm:$0xf]
    %v382 = vld [vmem:[#allocation5 + $0x31c] sm:$0xf]
    %v383 = vld [vmem:[#allocation5 + $0x320] sm:$0xf]
    %v384 = vld [vmem:[#allocation5 + $0x324] sm:$0xf]
    %v385 = vld [vmem:[#allocation5 + $0x328] sm:$0xf]
    %v386 = vld [vmem:[#allocation5 + $0x32c] sm:$0xf]
    %v387 = vld [vmem:[#allocation5 + $0x330] sm:$0xf]
    %v388 = vld [vmem:[#allocation5 + $0x334] sm:$0xf]
    %v389 = vld [vmem:[#allocation5 + $0x338] sm:$0xf]
    %v390 = vld [vmem:[#allocation5 + $0x33c] sm:$0xf]
    %v391 = vld [vmem:[#allocation5 + $0x340] sm:$0xf]
    %v392 = vld [vmem:[#allocation5 + $0x344] sm:$0xf]
    %v393 = vld [vmem:[#allocation5 + $0x348] sm:$0xf]
    %v394 = vld [vmem:[#allocation5 + $0x34c] sm:$0xf]
    %v395 = vld [vmem:[#allocation5 + $0x350] sm:$0xf]
    %v396 = vld [vmem:[#allocation5 + $0x354] sm:$0xf]
    %v397 = vld [vmem:[#allocation5 + $0x358] sm:$0xf]
    %v398 = vld [vmem:[#allocation5 + $0x35c] sm:$0xf]
    %v399 = vld [vmem:[#allocation5 + $0x360] sm:$0xf]
    %v400 = vld [vmem:[#allocation5 + $0x364] sm:$0xf]
    %v401 = vld [vmem:[#allocation5 + $0x368] sm:$0xf]
    %v402 = vld [vmem:[#allocation5 + $0x36c] sm:$0xf]
    %v403 = vld [vmem:[#allocation5 + $0x370] sm:$0xf]
    %v404 = vld [vmem:[#allocation5 + $0x374] sm:$0xf]
    %v405 = vld [vmem:[#allocation5 + $0x378] sm:$0xf]
    %v406 = vld [vmem:[#allocation5 + $0x37c] sm:$0xf]
    %v407 = vld [vmem:[#allocation5 + $0x380] sm:$0xf]
    %v408 = vld [vmem:[#allocation5 + $0x384] sm:$0xf]
    %v409 = vld [vmem:[#allocation5 + $0x388] sm:$0xf]
    %v410 = vld [vmem:[#allocation5 + $0x38c] sm:$0xf]
    %v411 = vld [vmem:[#allocation5 + $0x390] sm:$0xf]
    %v412 = vld [vmem:[#allocation5 + $0x394] sm:$0xf]
    %v413 = vld [vmem:[#allocation5 + $0x398] sm:$0xf]
    %v414 = vld [vmem:[#allocation5 + $0x39c] sm:$0xf]
    %v415 = vld [vmem:[#allocation5 + $0x3a0] sm:$0xf]
    %v416 = vld [vmem:[#allocation5 + $0x3a4] sm:$0xf]
    %v417 = vld [vmem:[#allocation5 + $0x3a8] sm:$0xf]
    %v418 = vld [vmem:[#allocation5 + $0x3ac] sm:$0xf]
    %v419 = vld [vmem:[#allocation5 + $0x3b0] sm:$0xf]
    %v420 = vld [vmem:[#allocation5 + $0x3b4] sm:$0xf]
    %v421 = vld [vmem:[#allocation5 + $0x3b8] sm:$0xf]
    %v422 = vld [vmem:[#allocation5 + $0x3bc] sm:$0xf]
    %v423 = vld [vmem:[#allocation5 + $0x3c0] sm:$0xf]
    %v424 = vld [vmem:[#allocation5 + $0x3c4] sm:$0xf]
    %v425 = vld [vmem:[#allocation5 + $0x3c8] sm:$0xf]
    %v426 = vld [vmem:[#allocation5 + $0x3cc] sm:$0xf]
    %v427 = vld [vmem:[#allocation5 + $0x3d0] sm:$0xf]
    %v428 = vld [vmem:[#allocation5 + $0x3d4] sm:$0xf]
    %v429 = vld [vmem:[#allocation5 + $0x3d8] sm:$0xf]
    %v430 = vld [vmem:[#allocation5 + $0x3dc] sm:$0xf]
    %v431 = vld [vmem:[#allocation5 + $0x3e0] sm:$0xf]
    %v432 = vld [vmem:[#allocation5 + $0x3e4] sm:$0xf]
    %v433 = vld [vmem:[#allocation5 + $0x3e8] sm:$0xf]
    %v434 = vld [vmem:[#allocation5 + $0x3ec] sm:$0xf]
    %v435 = vld [vmem:[#allocation5 + $0x3f0] sm:$0xf]
    %v436 = vld [vmem:[#allocation5 + $0x3f4] sm:$0xf]
    %v437 = vld [vmem:[#allocation5 + $0x3f8] sm:$0xf]
    %v438 = vld [vmem:[#allocation5 + $0x3fc] sm:$0xf]
    %v439 = vld [vmem:[#allocation5 + $0x400] sm:$0xf]
    %v440 = vld [vmem:[#allocation5 + $0x404] sm:$0xf]
    %v441 = vld [vmem:[#allocation5 + $0x408] sm:$0xf]
    %v442 = vld [vmem:[#allocation5 + $0x40c] sm:$0xf]
    %v443 = vld [vmem:[#allocation5 + $0x410] sm:$0xf]
    %v444 = vld [vmem:[#allocation5 + $0x414] sm:$0xf]
    %v445 = vld [vmem:[#allocation5 + $0x418] sm:$0xf]
    %v446 = vld [vmem:[#allocation5 + $0x41c] sm:$0xf]
    %v447 = vld [vmem:[#allocation5 + $0x420] sm:$0xf]
    %v448 = vld [vmem:[#allocation5 + $0x424] sm:$0xf]
    %v449 = vld [vmem:[#allocation5 + $0x428] sm:$0xf]
    %v450 = vld [vmem:[#allocation5 + $0x42c] sm:$0xf]
    %v451 = vld [vmem:[#allocation5 + $0x430] sm:$0xf]
    %v452 = vld [vmem:[#allocation5 + $0x434] sm:$0xf]
    %v453 = vld [vmem:[#allocation5 + $0x438] sm:$0xf]
    %v454 = vld [vmem:[#allocation5 + $0x43c] sm:$0xf]
    %v455 = vld [vmem:[#allocation5 + $0x440] sm:$0xf]
    %v456 = vld [vmem:[#allocation5 + $0x444] sm:$0xf]
    %v457 = vld [vmem:[#allocation5 + $0x448] sm:$0xf]
    %v458 = vld [vmem:[#allocation5 + $0x44c] sm:$0xf]
    %v459 = vld [vmem:[#allocation5 + $0x450] sm:$0xf]
    %v460 = vld [vmem:[#allocation5 + $0x454] sm:$0xf]
    %v461 = vld [vmem:[#allocation5 + $0x458] sm:$0xf]
    %v462 = vld [vmem:[#allocation5 + $0x45c] sm:$0xf]
    %v463 = vld [vmem:[#allocation5 + $0x460] sm:$0xf]
    %v464 = vld [vmem:[#allocation5 + $0x464] sm:$0xf]
    %v465 = vld [vmem:[#allocation5 + $0x468] sm:$0xf]
    %v466 = vld [vmem:[#allocation5 + $0x46c] sm:$0xf]
    %v467 = vld [vmem:[#allocation5 + $0x470] sm:$0xf]
    %v468 = vld [vmem:[#allocation5 + $0x474] sm:$0xf]
    %v469 = vld [vmem:[#allocation5 + $0x478] sm:$0xf]
    %v470 = vld [vmem:[#allocation5 + $0x47c] sm:$0xf]
    %v471 = vld [vmem:[#allocation5 + $0x480] sm:$0xf]
    %v472 = vld [vmem:[#allocation5 + $0x484] sm:$0xf]
    %v473 = vld [vmem:[#allocation5 + $0x488] sm:$0xf]
    %v474 = vld [vmem:[#allocation5 + $0x48c] sm:$0xf]
    %v475 = vld [vmem:[#allocation5 + $0x490] sm:$0xf]
    %v476 = vld [vmem:[#allocation5 + $0x494] sm:$0xf]
    %v477 = vld [vmem:[#allocation5 + $0x498] sm:$0xf]
    %v478 = vld [vmem:[#allocation5 + $0x49c] sm:$0xf]
    %v479 = vld [vmem:[#allocation5 + $0x4a0] sm:$0xf]
    %v480 = vld [vmem:[#allocation5 + $0x4a4] sm:$0xf]
    %v481 = vld [vmem:[#allocation5 + $0x4a8] sm:$0xf]
    %v482 = vld [vmem:[#allocation5 + $0x4ac] sm:$0xf]
    %v483 = vld [vmem:[#allocation5 + $0x4b0] sm:$0xf]
    %v484 = vld [vmem:[#allocation5 + $0x4b4] sm:$0xf]
    %v485 = vld [vmem:[#allocation5 + $0x4b8] sm:$0xf]
    %v486 = vld [vmem:[#allocation5 + $0x4bc] sm:$0xf]
    %v487 = vld [vmem:[#allocation5 + $0x4c0] sm:$0xf]
    %v488 = vld [vmem:[#allocation5 + $0x4c4] sm:$0xf]
    %v489 = vld [vmem:[#allocation5 + $0x4c8] sm:$0xf]
    %v490 = vld [vmem:[#allocation5 + $0x4cc] sm:$0xf]
    %v491 = vld [vmem:[#allocation5 + $0x4d0] sm:$0xf]
    %v492 = vld [vmem:[#allocation5 + $0x4d4] sm:$0xf]
    %v493 = vld [vmem:[#allocation5 + $0x4d8] sm:$0xf]
    %v494 = vld [vmem:[#allocation5 + $0x4dc] sm:$0xf]
    %v495 = vld [vmem:[#allocation5 + $0x4e0] sm:$0xf]
    %v496 = vld [vmem:[#allocation5 + $0x4e4] sm:$0xf]
    %v497 = vld [vmem:[#allocation5 + $0x4e8] sm:$0xf]
    %v498 = vld [vmem:[#allocation5 + $0x4ec] sm:$0xf]
    %v499 = vld [vmem:[#allocation5 + $0x4f0] sm:$0xf]
    %v500 = vld [vmem:[#allocation5 + $0x4f4] sm:$0xf]
    %v501 = vld [vmem:[#allocation5 + $0x4f8] sm:$0xf]
    %v502 = vld [vmem:[#allocation5 + $0x4fc] sm:$0xf]
    %v503 = vld [vmem:[#allocation5 + $0x500] sm:$0xf]
    %v504 = vld [vmem:[#allocation5 + $0x504] sm:$0xf]
    %v505 = vld [vmem:[#allocation5 + $0x508] sm:$0xf]
    %v506 = vld [vmem:[#allocation5 + $0x50c] sm:$0xf]
    %v507 = vld [vmem:[#allocation5 + $0x510] sm:$0xf]
    %v508 = vld [vmem:[#allocation5 + $0x514] sm:$0xf]
    %v509 = vld [vmem:[#allocation5 + $0x518] sm:$0xf]
    %v510 = vld [vmem:[#allocation5 + $0x51c] sm:$0xf]
    %v511 = vld [vmem:[#allocation5 + $0x520] sm:$0xf]
    %v512 = vld [vmem:[#allocation5 + $0x524] sm:$0xf]
    %v513 = vld [vmem:[#allocation5 + $0x528] sm:$0xf]
    %v514 = vld [vmem:[#allocation5 + $0x52c] sm:$0xf]
    %v515 = vld [vmem:[#allocation5 + $0x530] sm:$0xf]
    %v516 = vld [vmem:[#allocation5 + $0x534] sm:$0xf]
    %v517 = vld [vmem:[#allocation5 + $0x538] sm:$0xf]
    %v518 = vld [vmem:[#allocation5 + $0x53c] sm:$0xf]
    %v519 = vld [vmem:[#allocation5 + $0x540] sm:$0xf]
    %v520 = vld [vmem:[#allocation5 + $0x544] sm:$0xf]
    %v521 = vld [vmem:[#allocation5 + $0x548] sm:$0xf]
    %v522 = vld [vmem:[#allocation5 + $0x54c] sm:$0xf]
    %v523 = vld [vmem:[#allocation5 + $0x550] sm:$0xf]
    %v524 = vld [vmem:[#allocation5 + $0x554] sm:$0xf]
    %v525 = vld [vmem:[#allocation5 + $0x558] sm:$0xf]
    %v526 = vld [vmem:[#allocation5 + $0x55c] sm:$0xf]
    %v527 = vld [vmem:[#allocation5 + $0x560] sm:$0xf]
    %v528 = vld [vmem:[#allocation5 + $0x564] sm:$0xf]
    %v529 = vld [vmem:[#allocation5 + $0x568] sm:$0xf]
    %v530 = vld [vmem:[#allocation5 + $0x56c] sm:$0xf]
    %v531 = vld [vmem:[#allocation5 + $0x570] sm:$0xf]
    %v532 = vld [vmem:[#allocation5 + $0x574] sm:$0xf]
    %v533 = vld [vmem:[#allocation5 + $0x578] sm:$0xf]
    %v534 = vld [vmem:[#allocation5 + $0x57c] sm:$0xf]
    %v535 = vld [vmem:[#allocation5 + $0x580] sm:$0xf]
    %v536 = vld [vmem:[#allocation5 + $0x584] sm:$0xf]
    %v537 = vld [vmem:[#allocation5 + $0x588] sm:$0xf]
    %v538 = vld [vmem:[#allocation5 + $0x58c] sm:$0xf]
    %v539 = vld [vmem:[#allocation5 + $0x590] sm:$0xf]
    %v540 = vld [vmem:[#allocation5 + $0x594] sm:$0xf]
    %v541 = vld [vmem:[#allocation5 + $0x598] sm:$0xf]
    %v542 = vld [vmem:[#allocation5 + $0x59c] sm:$0xf]
    %v543 = vld [vmem:[#allocation5 + $0x5a0] sm:$0xf]
    %v544 = vld [vmem:[#allocation5 + $0x5a4] sm:$0xf]
    %v545 = vld [vmem:[#allocation5 + $0x5a8] sm:$0xf]
    %v546 = vld [vmem:[#allocation5 + $0x5ac] sm:$0xf]
    %v547 = vld [vmem:[#allocation5 + $0x5b0] sm:$0xf]
    %v548 = vld [vmem:[#allocation5 + $0x5b4] sm:$0xf]
    %v549 = vld [vmem:[#allocation5 + $0x5b8] sm:$0xf]
    %v550 = vld [vmem:[#allocation5 + $0x5bc] sm:$0xf]
    %v551 = vld [vmem:[#allocation5 + $0x5c0] sm:$0xf]
    %v552 = vld [vmem:[#allocation5 + $0x5c4] sm:$0xf]
    %v553 = vld [vmem:[#allocation5 + $0x5c8] sm:$0xf]
    %v554 = vld [vmem:[#allocation5 + $0x5cc] sm:$0xf]
    %v555 = vld [vmem:[#allocation5 + $0x5d0] sm:$0xf]
    %v556 = vld [vmem:[#allocation5 + $0x5d4] sm:$0xf]
    %v557 = vld [vmem:[#allocation5 + $0x5d8] sm:$0xf]
    %v558 = vld [vmem:[#allocation5 + $0x5dc] sm:$0xf]
    %v559 = vld [vmem:[#allocation5 + $0x5e0] sm:$0xf]
    %v560 = vld [vmem:[#allocation5 + $0x5e4] sm:$0xf]
    %v561 = vld [vmem:[#allocation5 + $0x5e8] sm:$0xf]
    %v562 = vld [vmem:[#allocation5 + $0x5ec] sm:$0xf]
    %v563 = vld [vmem:[#allocation5 + $0x5f0] sm:$0xf]
    %v564 = vld [vmem:[#allocation5 + $0x5f4] sm:$0xf]
    %v565 = vld [vmem:[#allocation5 + $0x5f8] sm:$0xf]
    %v566 = vld [vmem:[#allocation5 + $0x5fc] sm:$0xf]
    %v567 = vld [vmem:[#allocation5 + $0x600] sm:$0xf]
    %v568 = vld [vmem:[#allocation5 + $0x604] sm:$0xf]
    %v569 = vld [vmem:[#allocation5 + $0x608] sm:$0xf]
    %v570 = vld [vmem:[#allocation5 + $0x60c] sm:$0xf]
    %v571 = vld [vmem:[#allocation5 + $0x610] sm:$0xf]
    %v572 = vld [vmem:[#allocation5 + $0x614] sm:$0xf]
    %v573 = vld [vmem:[#allocation5 + $0x618] sm:$0xf]
    %v574 = vld [vmem:[#allocation5 + $0x61c] sm:$0xf]
    %v575 = vld [vmem:[#allocation5 + $0x620] sm:$0xf]
    %v576 = vld [vmem:[#allocation5 + $0x624] sm:$0xf]
    %v577 = vld [vmem:[#allocation5 + $0x628] sm:$0xf]
    %v578 = vld [vmem:[#allocation5 + $0x62c] sm:$0xf]
    %v579 = vld [vmem:[#allocation5 + $0x630] sm:$0xf]
    %v580 = vld [vmem:[#allocation5 + $0x634] sm:$0xf]
    %v581 = vld [vmem:[#allocation5 + $0x638] sm:$0xf]
    %v582 = vld [vmem:[#allocation5 + $0x63c] sm:$0xf]
    %v583 = vld [vmem:[#allocation5 + $0x640] sm:$0xf]
    %v584 = vld [vmem:[#allocation5 + $0x644] sm:$0xf]
    %v585 = vld [vmem:[#allocation5 + $0x648] sm:$0xf]
    %v586 = vld [vmem:[#allocation5 + $0x64c] sm:$0xf]
    %v587 = vld [vmem:[#allocation5 + $0x650] sm:$0xf]
    %v588 = vld [vmem:[#allocation5 + $0x654] sm:$0xf]
    %v589 = vld [vmem:[#allocation5 + $0x658] sm:$0xf]
    %v590 = vld [vmem:[#allocation5 + $0x65c] sm:$0xf]
    %v591 = vld [vmem:[#allocation5 + $0x660] sm:$0xf]
    %v592 = vld [vmem:[#allocation5 + $0x664] sm:$0xf]
    %v593 = vld [vmem:[#allocation5 + $0x668] sm:$0xf]
    %v594 = vld [vmem:[#allocation5 + $0x66c] sm:$0xf]
    %v595 = vld [vmem:[#allocation5 + $0x670] sm:$0xf]
    %v596 = vld [vmem:[#allocation5 + $0x674] sm:$0xf]
    %v597 = vld [vmem:[#allocation5 + $0x678] sm:$0xf]
    %v598 = vld [vmem:[#allocation5 + $0x67c] sm:$0xf]
    %v599 = vld [vmem:[#allocation5 + $0x680] sm:$0xf]
    %v600 = vld [vmem:[#allocation5 + $0x684] sm:$0xf]
    %v601 = vld [vmem:[#allocation5 + $0x688] sm:$0xf]
    %v602 = vld [vmem:[#allocation5 + $0x68c] sm:$0xf]
    %v603 = vld [vmem:[#allocation5 + $0x690] sm:$0xf]
    %v604 = vld [vmem:[#allocation5 + $0x694] sm:$0xf]
    %v605 = vld [vmem:[#allocation5 + $0x698] sm:$0xf]
    %v606 = vld [vmem:[#allocation5 + $0x69c] sm:$0xf]
    %v607 = vld [vmem:[#allocation5 + $0x6a0] sm:$0xf]
    %v608 = vld [vmem:[#allocation5 + $0x6a4] sm:$0xf]
    %v609 = vld [vmem:[#allocation5 + $0x6a8] sm:$0xf]
    %v610 = vld [vmem:[#allocation5 + $0x6ac] sm:$0xf]
    %v611 = vld [vmem:[#allocation5 + $0x6b0] sm:$0xf]
    %v612 = vld [vmem:[#allocation5 + $0x6b4] sm:$0xf]
    %v613 = vld [vmem:[#allocation5 + $0x6b8] sm:$0xf]
    %v614 = vld [vmem:[#allocation5 + $0x6bc] sm:$0xf]
    %v615 = vld [vmem:[#allocation5 + $0x6c0] sm:$0xf]
    %v616 = vld [vmem:[#allocation5 + $0x6c4] sm:$0xf]
    %v617 = vld [vmem:[#allocation5 + $0x6c8] sm:$0xf]
    %v618 = vld [vmem:[#allocation5 + $0x6cc] sm:$0xf]
    %v619 = vld [vmem:[#allocation5 + $0x6d0] sm:$0xf]
    %v620 = vld [vmem:[#allocation5 + $0x6d4] sm:$0xf]
    %v621 = vld [vmem:[#allocation5 + $0x6d8] sm:$0xf]
    %v622 = vld [vmem:[#allocation5 + $0x6dc] sm:$0xf]
    %v623 = vld [vmem:[#allocation5 + $0x6e0] sm:$0xf]
    %v624 = vld [vmem:[#allocation5 + $0x6e4] sm:$0xf]
    %v625 = vld [vmem:[#allocation5 + $0x6e8] sm:$0xf]
    %v626 = vld [vmem:[#allocation5 + $0x6ec] sm:$0xf]
    %v627 = vld [vmem:[#allocation5 + $0x6f0] sm:$0xf]
    %v628 = vld [vmem:[#allocation5 + $0x6f4] sm:$0xf]
    %v629 = vld [vmem:[#allocation5 + $0x6f8] sm:$0xf]
    %v630 = vld [vmem:[#allocation5 + $0x6fc] sm:$0xf]
    %v631 = vld [vmem:[#allocation5 + $0x700] sm:$0xf]
    %v632 = vld [vmem:[#allocation5 + $0x704] sm:$0xf]
    %v633 = vld [vmem:[#allocation5 + $0x708] sm:$0xf]
    %v634 = vld [vmem:[#allocation5 + $0x70c] sm:$0xf]
    %v635 = vld [vmem:[#allocation5 + $0x710] sm:$0xf]
    %v636 = vld [vmem:[#allocation5 + $0x714] sm:$0xf]
    %v637 = vld [vmem:[#allocation5 + $0x718] sm:$0xf]
    %v638 = vld [vmem:[#allocation5 + $0x71c] sm:$0xf]
    %v639 = vld [vmem:[#allocation5 + $0x720] sm:$0xf]
    %v640 = vld [vmem:[#allocation5 + $0x724] sm:$0xf]
    %v641 = vld [vmem:[#allocation5 + $0x728] sm:$0xf]
    %v642 = vld [vmem:[#allocation5 + $0x72c] sm:$0xf]
    %v643 = vld [vmem:[#allocation5 + $0x730] sm:$0xf]
    %v644 = vld [vmem:[#allocation5 + $0x734] sm:$0xf]
    %v645 = vld [vmem:[#allocation5 + $0x738] sm:$0xf]
    %v646 = vld [vmem:[#allocation5 + $0x73c] sm:$0xf]
    %v647 = vld [vmem:[#allocation5 + $0x740] sm:$0xf]
    %v648 = vld [vmem:[#allocation5 + $0x744] sm:$0xf]
    %v649 = vld [vmem:[#allocation5 + $0x748] sm:$0xf]
    %v650 = vld [vmem:[#allocation5 + $0x74c] sm:$0xf]
    %v651 = vld [vmem:[#allocation5 + $0x750] sm:$0xf]
    %v652 = vld [vmem:[#allocation5 + $0x754] sm:$0xf]
    %v653 = vld [vmem:[#allocation5 + $0x758] sm:$0xf]
    %v654 = vld [vmem:[#allocation5 + $0x75c] sm:$0xf]
    %v655 = vld [vmem:[#allocation5 + $0x760] sm:$0xf]
    %v656 = vld [vmem:[#allocation5 + $0x764] sm:$0xf]
    %v657 = vld [vmem:[#allocation5 + $0x768] sm:$0xf]
    %v658 = vld [vmem:[#allocation5 + $0x76c] sm:$0xf]
    %v659 = vld [vmem:[#allocation5 + $0x770] sm:$0xf]
    %v660 = vld [vmem:[#allocation5 + $0x774] sm:$0xf]
    %v661 = vld [vmem:[#allocation5 + $0x778] sm:$0xf]
    %v662 = vld [vmem:[#allocation5 + $0x77c] sm:$0xf]
    %v663 = vld [vmem:[#allocation5 + $0x780] sm:$0xf]
    %v664 = vld [vmem:[#allocation5 + $0x784] sm:$0xf]
    %v665 = vld [vmem:[#allocation5 + $0x788] sm:$0xf]
    %v666 = vld [vmem:[#allocation5 + $0x78c] sm:$0xf]
    %v667 = vld [vmem:[#allocation5 + $0x790] sm:$0xf]
    %v668 = vld [vmem:[#allocation5 + $0x794] sm:$0xf]
    %v669 = vld [vmem:[#allocation5 + $0x798] sm:$0xf]
    %v670 = vld [vmem:[#allocation5 + $0x79c] sm:$0xf]
    %v671 = vld [vmem:[#allocation5 + $0x7a0] sm:$0xf]
    %v672 = vld [vmem:[#allocation5 + $0x7a4] sm:$0xf]
    %v673 = vld [vmem:[#allocation5 + $0x7a8] sm:$0xf]
    %v674 = vld [vmem:[#allocation5 + $0x7ac] sm:$0xf]
    %v675 = vld [vmem:[#allocation5 + $0x7b0] sm:$0xf]
    %v676 = vld [vmem:[#allocation5 + $0x7b4] sm:$0xf]
    %v677 = vld [vmem:[#allocation5 + $0x7b8] sm:$0xf]
    %v678 = vld [vmem:[#allocation5 + $0x7bc] sm:$0xf]
    %v679 = vld [vmem:[#allocation5 + $0x7c0] sm:$0xf]
    %v680 = vld [vmem:[#allocation5 + $0x7c4] sm:$0xf]
    %v681 = vld [vmem:[#allocation5 + $0x7c8] sm:$0xf]
    %v682 = vld [vmem:[#allocation5 + $0x7cc] sm:$0xf]
    %v683 = vld [vmem:[#allocation5 + $0x7d0] sm:$0xf]
    %v684 = vld [vmem:[#allocation5 + $0x7d4] sm:$0xf]
    %v685 = vld [vmem:[#allocation5 + $0x7d8] sm:$0xf]
    %v686 = vld [vmem:[#allocation5 + $0x7dc] sm:$0xf]
    %v687 = vld [vmem:[#allocation5 + $0x7e0] sm:$0xf]
    %v688 = vld [vmem:[#allocation5 + $0x7e4] sm:$0xf]
    %v689 = vld [vmem:[#allocation5 + $0x7e8] sm:$0xf]
    %v690 = vld [vmem:[#allocation5 + $0x7ec] sm:$0xf]
    %v691 = vld [vmem:[#allocation5 + $0x7f0] sm:$0xf]
    %v692 = vld [vmem:[#allocation5 + $0x7f4] sm:$0xf]
    %v693 = vld [vmem:[#allocation5 + $0x7f8] sm:$0xf]
    %v694 = vld [vmem:[#allocation5 + $0x7fc] sm:$0xf]
    %v695 = vld [vmem:[#allocation5 + $0x800] sm:$0xf]
    %v696 = vld [vmem:[#allocation5 + $0x804] sm:$0xf]
    %v697 = vld [vmem:[#allocation5 + $0x808] sm:$0xf]
    %v698 = vld [vmem:[#allocation5 + $0x80c] sm:$0xf]
    %v699 = vld [vmem:[#allocation5 + $0x810] sm:$0xf]
    %v700 = vld [vmem:[#allocation5 + $0x814] sm:$0xf]
    %v701 = vld [vmem:[#allocation5 + $0x818] sm:$0xf]
    %v702 = vld [vmem:[#allocation5 + $0x81c] sm:$0xf]
    %v703 = vld [vmem:[#allocation5 + $0x820] sm:$0xf]
    %v704 = vld [vmem:[#allocation5 + $0x824] sm:$0xf]
    %v705 = vld [vmem:[#allocation5 + $0x828] sm:$0xf]
    %v706 = vld [vmem:[#allocation5 + $0x82c] sm:$0xf]
    %v707 = vld [vmem:[#allocation5 + $0x830] sm:$0xf]
    %v708 = vld [vmem:[#allocation5 + $0x834] sm:$0xf]
    %v709 = vld [vmem:[#allocation5 + $0x838] sm:$0xf]
    %v710 = vld [vmem:[#allocation5 + $0x83c] sm:$0xf]
    %v711 = vld [vmem:[#allocation5 + $0x840] sm:$0xf]
    %v712 = vld [vmem:[#allocation5 + $0x844] sm:$0xf]
    %v713 = vld [vmem:[#allocation5 + $0x848] sm:$0xf]
    %v714 = vld [vmem:[#allocation5 + $0x84c] sm:$0xf]
    %v715 = vld [vmem:[#allocation5 + $0x850] sm:$0xf]
    %v716 = vld [vmem:[#allocation5 + $0x854] sm:$0xf]
    %v717 = vld [vmem:[#allocation5 + $0x858] sm:$0xf]
    %v718 = vld [vmem:[#allocation5 + $0x85c] sm:$0xf]
    %v719 = vld [vmem:[#allocation5 + $0x860] sm:$0xf]
    %v720 = vld [vmem:[#allocation5 + $0x864] sm:$0xf]
    %v721 = vld [vmem:[#allocation5 + $0x868] sm:$0xf]
    %v722 = vld [vmem:[#allocation5 + $0x86c] sm:$0xf]
    %v723 = vld [vmem:[#allocation5 + $0x870] sm:$0xf]
    %v724 = vld [vmem:[#allocation5 + $0x874] sm:$0xf]
    %v725 = vld [vmem:[#allocation5 + $0x878] sm:$0xf]
    %v726 = vld [vmem:[#allocation5 + $0x87c] sm:$0xf]
    %v727 = vld [vmem:[#allocation5 + $0x880] sm:$0xf]
    %v728 = vld [vmem:[#allocation5 + $0x884] sm:$0xf]
    %v729 = vld [vmem:[#allocation5 + $0x888] sm:$0xf]
    %v730 = vld [vmem:[#allocation5 + $0x88c] sm:$0xf]
    %v731 = vld [vmem:[#allocation5 + $0x890] sm:$0xf]
    %v732 = vld [vmem:[#allocation5 + $0x894] sm:$0xf]
    %v733 = vld [vmem:[#allocation5 + $0x898] sm:$0xf]
    %v734 = vld [vmem:[#allocation5 + $0x89c] sm:$0xf]
    %v735 = vld [vmem:[#allocation5 + $0x8a0] sm:$0xf]
    %v736 = vld [vmem:[#allocation5 + $0x8a4] sm:$0xf]
    %v737 = vld [vmem:[#allocation5 + $0x8a8] sm:$0xf]
    %v738 = vld [vmem:[#allocation5 + $0x8ac] sm:$0xf]
    %v739 = vld [vmem:[#allocation5 + $0x8b0] sm:$0xf]
    %v740 = vld [vmem:[#allocation5 + $0x8b4] sm:$0xf]
    %v741 = vld [vmem:[#allocation5 + $0x8b8] sm:$0xf]
    %v742 = vld [vmem:[#allocation5 + $0x8bc] sm:$0xf]
    %v743 = vld [vmem:[#allocation5 + $0x8c0] sm:$0xf]
    %v744 = vld [vmem:[#allocation5 + $0x8c4] sm:$0xf]
    %v745 = vld [vmem:[#allocation5 + $0x8c8] sm:$0xf]
    %v746 = vld [vmem:[#allocation5 + $0x8cc] sm:$0xf]
    %v747 = vld [vmem:[#allocation5 + $0x8d0] sm:$0xf]
    %v748 = vld [vmem:[#allocation5 + $0x8d4] sm:$0xf]
    %v749 = vld [vmem:[#allocation5 + $0x8d8] sm:$0xf]
    %v750 = vld [vmem:[#allocation5 + $0x8dc] sm:$0xf]
    %v751 = vld [vmem:[#allocation5 + $0x8e0] sm:$0xf]
    %v752 = vld [vmem:[#allocation5 + $0x8e4] sm:$0xf]
    %v753 = vld [vmem:[#allocation5 + $0x8e8] sm:$0xf]
    %v754 = vld [vmem:[#allocation5 + $0x8ec] sm:$0xf]
    %v755 = vld [vmem:[#allocation5 + $0x8f0] sm:$0xf]
    %v756 = vld [vmem:[#allocation5 + $0x8f4] sm:$0xf]
    %v757 = vld [vmem:[#allocation5 + $0x8f8] sm:$0xf]
    %v758 = vld [vmem:[#allocation5 + $0x8fc] sm:$0xf]
    %v759 = vld [vmem:[#allocation5 + $0x900] sm:$0xf]
    %v760 = vld [vmem:[#allocation5 + $0x904] sm:$0xf]
    %v761 = vld [vmem:[#allocation5 + $0x908] sm:$0xf]
    %v762 = vld [vmem:[#allocation5 + $0x90c] sm:$0xf]
    %v763 = vld [vmem:[#allocation5 + $0x910] sm:$0xf]
    %v764 = vld [vmem:[#allocation5 + $0x914] sm:$0xf]
    %v765 = vld [vmem:[#allocation5 + $0x918] sm:$0xf]
    %v766 = vld [vmem:[#allocation5 + $0x91c] sm:$0xf]
    %v767 = vld [vmem:[#allocation5 + $0x920] sm:$0xf]
    %v768 = vld [vmem:[#allocation5 + $0x924] sm:$0xf]
    %v769 = vld [vmem:[#allocation5 + $0x928] sm:$0xf]
    %v770 = vld [vmem:[#allocation5 + $0x92c] sm:$0xf]
    %v771 = vld [vmem:[#allocation5 + $0x930] sm:$0xf]
    %v772 = vld [vmem:[#allocation5 + $0x934] sm:$0xf]
    %v773 = vld [vmem:[#allocation5 + $0x938] sm:$0xf]
    %v774 = vld [vmem:[#allocation5 + $0x93c] sm:$0xf]
    %v775 = vld [vmem:[#allocation5 + $0x940] sm:$0xf]
    %v776 = vld [vmem:[#allocation5 + $0x944] sm:$0xf]
    %v777 = vld [vmem:[#allocation5 + $0x948] sm:$0xf]
    %v778 = vld [vmem:[#allocation5 + $0x94c] sm:$0xf]
    %v779 = vld [vmem:[#allocation5 + $0x950] sm:$0xf]
    %v780 = vld [vmem:[#allocation5 + $0x954] sm:$0xf]
    %v781 = vld [vmem:[#allocation5 + $0x958] sm:$0xf]
    %v782 = vld [vmem:[#allocation5 + $0x95c] sm:$0xf]
    %v783 = vld [vmem:[#allocation5 + $0x960] sm:$0xf]
    %v784 = vld [vmem:[#allocation5 + $0x964] sm:$0xf]
    %v785 = vld [vmem:[#allocation5 + $0x968] sm:$0xf]
    %v786 = vld [vmem:[#allocation5 + $0x96c] sm:$0xf]
    %v787 = vld [vmem:[#allocation5 + $0x970] sm:$0xf]
    %v788 = vld [vmem:[#allocation5 + $0x974] sm:$0xf]
    %v789 = vld [vmem:[#allocation5 + $0x978] sm:$0xf]
    %v790 = vld [vmem:[#allocation5 + $0x97c] sm:$0xf]
    %v791 = vld [vmem:[#allocation5 + $0x980] sm:$0xf]
    %v792 = vld [vmem:[#allocation5 + $0x984] sm:$0xf]
    %v793 = vld [vmem:[#allocation5 + $0x988] sm:$0xf]
    %v794 = vld [vmem:[#allocation5 + $0x98c] sm:$0xf]
    %v795 = vld [vmem:[#allocation5 + $0x990] sm:$0xf]
    %v796 = vld [vmem:[#allocation5 + $0x994] sm:$0xf]
    %v797 = vld [vmem:[#allocation5 + $0x998] sm:$0xf]
    %v798 = vld [vmem:[#allocation5 + $0x99c] sm:$0xf]
    %v799 = vld [vmem:[#allocation5 + $0x9a0] sm:$0xf]
    %v800 = vld [vmem:[#allocation5 + $0x9a4] sm:$0xf]
    %v801 = vld [vmem:[#allocation5 + $0x9a8] sm:$0xf]
    %v802 = vld [vmem:[#allocation5 + $0x9ac] sm:$0xf]
    %v803 = vld [vmem:[#allocation5 + $0x9b0] sm:$0xf]
    %v804 = vld [vmem:[#allocation5 + $0x9b4] sm:$0xf]
    %v805 = vld [vmem:[#allocation5 + $0x9b8] sm:$0xf]
    %v806 = vld [vmem:[#allocation5 + $0x9bc] sm:$0xf]
    %v807 = vld [vmem:[#allocation5 + $0x9c0] sm:$0xf]
    %v808 = vld [vmem:[#allocation5 + $0x9c4] sm:$0xf]
    %v809 = vld [vmem:[#allocation5 + $0x9c8] sm:$0xf]
    %v810 = vld [vmem:[#allocation5 + $0x9cc] sm:$0xf]
    %v811 = vld [vmem:[#allocation5 + $0x9d0] sm:$0xf]
    %v812 = vld [vmem:[#allocation5 + $0x9d4] sm:$0xf]
    %v813 = vld [vmem:[#allocation5 + $0x9d8] sm:$0xf]
    %v814 = vld [vmem:[#allocation5 + $0x9dc] sm:$0xf]
    %v815 = vld [vmem:[#allocation5 + $0x9e0] sm:$0xf]
    %v816 = vld [vmem:[#allocation5 + $0x9e4] sm:$0xf]
    %v817 = vld [vmem:[#allocation5 + $0x9e8] sm:$0xf]
    %v818 = vld [vmem:[#allocation5 + $0x9ec] sm:$0xf]
    %v819 = vld [vmem:[#allocation5 + $0x9f0] sm:$0xf]
    %v820 = vld [vmem:[#allocation5 + $0x9f4] sm:$0xf]
    %v821 = vld [vmem:[#allocation5 + $0x9f8] sm:$0xf]
    %v822 = vld [vmem:[#allocation5 + $0x9fc] sm:$0xf]
    %v823 = vld [vmem:[#allocation5 + $0xa00] sm:$0xf]
    %v824 = vld [vmem:[#allocation5 + $0xa04] sm:$0xf]
    %v825 = vld [vmem:[#allocation5 + $0xa08] sm:$0xf]
    %v826 = vld [vmem:[#allocation5 + $0xa0c] sm:$0xf]
    %v827 = vld [vmem:[#allocation5 + $0xa10] sm:$0xf]
    %v828 = vld [vmem:[#allocation5 + $0xa14] sm:$0xf]
    %v829 = vld [vmem:[#allocation5 + $0xa18] sm:$0xf]
    %v830 = vld [vmem:[#allocation5 + $0xa1c] sm:$0xf]
    %v831 = vld [vmem:[#allocation5 + $0xa20] sm:$0xf]
    %v832 = vld [vmem:[#allocation5 + $0xa24] sm:$0xf]
    %v833 = vld [vmem:[#allocation5 + $0xa28] sm:$0xf]
    %v834 = vld [vmem:[#allocation5 + $0xa2c] sm:$0xf]
    %v835 = vld [vmem:[#allocation5 + $0xa30] sm:$0xf]
    %v836 = vld [vmem:[#allocation5 + $0xa34] sm:$0xf]
    %v837 = vld [vmem:[#allocation5 + $0xa38] sm:$0xf]
    %v838 = vld [vmem:[#allocation5 + $0xa3c] sm:$0xf]
    %v839 = vld [vmem:[#allocation5 + $0xa40] sm:$0xf]
    %v840 = vld [vmem:[#allocation5 + $0xa44] sm:$0xf]
    %v841 = vld [vmem:[#allocation5 + $0xa48] sm:$0xf]
    %v842 = vld [vmem:[#allocation5 + $0xa4c] sm:$0xf]
    %v843 = vld [vmem:[#allocation5 + $0xa50] sm:$0xf]
    %v844 = vld [vmem:[#allocation5 + $0xa54] sm:$0xf]
    %v845 = vld [vmem:[#allocation5 + $0xa58] sm:$0xf]
    %v846 = vld [vmem:[#allocation5 + $0xa5c] sm:$0xf]
    %v847 = vld [vmem:[#allocation5 + $0xa60] sm:$0xf]
    %v848 = vld [vmem:[#allocation5 + $0xa64] sm:$0xf]
    %v849 = vld [vmem:[#allocation5 + $0xa68] sm:$0xf]
    %v850 = vld [vmem:[#allocation5 + $0xa6c] sm:$0xf]
    %v851 = vld [vmem:[#allocation5 + $0xa70] sm:$0xf]
    %v852 = vld [vmem:[#allocation5 + $0xa74] sm:$0xf]
    %v853 = vld [vmem:[#allocation5 + $0xa78] sm:$0xf]
    %v854 = vld [vmem:[#allocation5 + $0xa7c] sm:$0xf]
    %v855 = vld [vmem:[#allocation5 + $0xa80] sm:$0xf]
    %v856 = vld [vmem:[#allocation5 + $0xa84] sm:$0xf]
    %v857 = vld [vmem:[#allocation5 + $0xa88] sm:$0xf]
    %v858 = vld [vmem:[#allocation5 + $0xa8c] sm:$0xf]
    %v859 = vld [vmem:[#allocation5 + $0xa90] sm:$0xf]
    %v860 = vld [vmem:[#allocation5 + $0xa94] sm:$0xf]
    %v861 = vld [vmem:[#allocation5 + $0xa98] sm:$0xf]
    %v862 = vld [vmem:[#allocation5 + $0xa9c] sm:$0xf]
    %v863 = vld [vmem:[#allocation5 + $0xaa0] sm:$0xf]
    %v864 = vld [vmem:[#allocation5 + $0xaa4] sm:$0xf]
    %v865 = vld [vmem:[#allocation5 + $0xaa8] sm:$0xf]
    %v866 = vld [vmem:[#allocation5 + $0xaac] sm:$0xf]
    %v867 = vld [vmem:[#allocation5 + $0xab0] sm:$0xf]
    %v868 = vld [vmem:[#allocation5 + $0xab4] sm:$0xf]
    %v869 = vld [vmem:[#allocation5 + $0xab8] sm:$0xf]
    %v870 = vld [vmem:[#allocation5 + $0xabc] sm:$0xf]
    %v871 = vld [vmem:[#allocation5 + $0xac0] sm:$0xf]
    %v872 = vld [vmem:[#allocation5 + $0xac4] sm:$0xf]
    %v873 = vld [vmem:[#allocation5 + $0xac8] sm:$0xf]
    %v874 = vld [vmem:[#allocation5 + $0xacc] sm:$0xf]
    %v875 = vld [vmem:[#allocation5 + $0xad0] sm:$0xf]
    %v876 = vld [vmem:[#allocation5 + $0xad4] sm:$0xf]
    %v877 = vld [vmem:[#allocation5 + $0xad8] sm:$0xf]
    %v878 = vld [vmem:[#allocation5 + $0xadc] sm:$0xf]
    %v879 = vld [vmem:[#allocation5 + $0xae0] sm:$0xf]
    %v880 = vld [vmem:[#allocation5 + $0xae4] sm:$0xf]
    %v881 = vld [vmem:[#allocation5 + $0xae8] sm:$0xf]
    %v882 = vld [vmem:[#allocation5 + $0xaec] sm:$0xf]
    %v883 = vld [vmem:[#allocation5 + $0xaf0] sm:$0xf]
    %v884 = vld [vmem:[#allocation5 + $0xaf4] sm:$0xf]
    %v885 = vld [vmem:[#allocation5 + $0xaf8] sm:$0xf]
    %v886 = vld [vmem:[#allocation5 + $0xafc] sm:$0xf]
    %v887 = vld [vmem:[#allocation5 + $0xb00] sm:$0xf]
    %v888 = vld [vmem:[#allocation5 + $0xb04] sm:$0xf]
    %v889 = vld [vmem:[#allocation5 + $0xb08] sm:$0xf]
    %v890 = vld [vmem:[#allocation5 + $0xb0c] sm:$0xf]
    %v891 = vld [vmem:[#allocation5 + $0xb10] sm:$0xf]
    %v892 = vld [vmem:[#allocation5 + $0xb14] sm:$0xf]
    %v893 = vld [vmem:[#allocation5 + $0xb18] sm:$0xf]
    %v894 = vld [vmem:[#allocation5 + $0xb1c] sm:$0xf]
    %v895 = vld [vmem:[#allocation5 + $0xb20] sm:$0xf]
    %v896 = vld [vmem:[#allocation5 + $0xb24] sm:$0xf]
    %v897 = vld [vmem:[#allocation5 + $0xb28] sm:$0xf]
    %v898 = vld [vmem:[#allocation5 + $0xb2c] sm:$0xf]
    %v899 = vld [vmem:[#allocation5 + $0xb30] sm:$0xf]
    %v900 = vld [vmem:[#allocation5 + $0xb34] sm:$0xf]
    %v901 = vld [vmem:[#allocation5 + $0xb38] sm:$0xf]
    %v902 = vld [vmem:[#allocation5 + $0xb3c] sm:$0xf]
    %v903 = vld [vmem:[#allocation5 + $0xb40] sm:$0xf]
    %v904 = vld [vmem:[#allocation5 + $0xb44] sm:$0xf]
    %v905 = vld [vmem:[#allocation5 + $0xb48] sm:$0xf]
    %v906 = vld [vmem:[#allocation5 + $0xb4c] sm:$0xf]
    %v907 = vld [vmem:[#allocation5 + $0xb50] sm:$0xf]
    %v908 = vld [vmem:[#allocation5 + $0xb54] sm:$0xf]
    %v909 = vld [vmem:[#allocation5 + $0xb58] sm:$0xf]
    %v910 = vld [vmem:[#allocation5 + $0xb5c] sm:$0xf]
    %v911 = vld [vmem:[#allocation5 + $0xb60] sm:$0xf]
    %v912 = vld [vmem:[#allocation5 + $0xb64] sm:$0xf]
    %v913 = vld [vmem:[#allocation5 + $0xb68] sm:$0xf]
    %v914 = vld [vmem:[#allocation5 + $0xb6c] sm:$0xf]
    %v915 = vld [vmem:[#allocation5 + $0xb70] sm:$0xf]
    %v916 = vld [vmem:[#allocation5 + $0xb74] sm:$0xf]
    %v917 = vld [vmem:[#allocation5 + $0xb78] sm:$0xf]
    %v918 = vld [vmem:[#allocation5 + $0xb7c] sm:$0xf]
    %v919 = vld [vmem:[#allocation5 + $0xb80] sm:$0xf]
    %v920 = vld [vmem:[#allocation5 + $0xb84] sm:$0xf]
    %v921 = vld [vmem:[#allocation5 + $0xb88] sm:$0xf]
    %v922 = vld [vmem:[#allocation5 + $0xb8c] sm:$0xf]
    %v923 = vld [vmem:[#allocation5 + $0xb90] sm:$0xf]
    %v924 = vld [vmem:[#allocation5 + $0xb94] sm:$0xf]
    %v925 = vld [vmem:[#allocation5 + $0xb98] sm:$0xf]
    %v926 = vld [vmem:[#allocation5 + $0xb9c] sm:$0xf]
    %v927 = vld [vmem:[#allocation5 + $0xba0] sm:$0xf]
    %v928 = vld [vmem:[#allocation5 + $0xba4] sm:$0xf]
    %v929 = vld [vmem:[#allocation5 + $0xba8] sm:$0xf]
    %v930 = vld [vmem:[#allocation5 + $0xbac] sm:$0xf]
    %v931 = vld [vmem:[#allocation5 + $0xbb0] sm:$0xf]
    %v932 = vld [vmem:[#allocation5 + $0xbb4] sm:$0xf]
    %v933 = vld [vmem:[#allocation5 + $0xbb8] sm:$0xf]
    %v934 = vld [vmem:[#allocation5 + $0xbbc] sm:$0xf]
    %v935 = vld [vmem:[#allocation5 + $0xbc0] sm:$0xf]
    %v936 = vld [vmem:[#allocation5 + $0xbc4] sm:$0xf]
    %v937 = vld [vmem:[#allocation5 + $0xbc8] sm:$0xf]
    %v938 = vld [vmem:[#allocation5 + $0xbcc] sm:$0xf]
    %v939 = vld [vmem:[#allocation5 + $0xbd0] sm:$0xf]
    %v940 = vld [vmem:[#allocation5 + $0xbd4] sm:$0xf]
    %v941 = vld [vmem:[#allocation5 + $0xbd8] sm:$0xf]
    %v942 = vld [vmem:[#allocation5 + $0xbdc] sm:$0xf]
    %v943 = vld [vmem:[#allocation5 + $0xbe0] sm:$0xf]
    %v944 = vld [vmem:[#allocation5 + $0xbe4] sm:$0xf]
    %v945 = vld [vmem:[#allocation5 + $0xbe8] sm:$0xf]
    %v946 = vld [vmem:[#allocation5 + $0xbec] sm:$0xf]
    %v947 = vld [vmem:[#allocation5 + $0xbf0] sm:$0xf]
    %v948 = vld [vmem:[#allocation5 + $0xbf4] sm:$0xf]
    %v949 = vld [vmem:[#allocation5 + $0xbf8] sm:$0xf]
    %v950 = vld [vmem:[#allocation5 + $0xbfc] sm:$0xf]
    %v951 = vld [vmem:[#allocation5 + $0xc00] sm:$0xf]
    %v952 = vld [vmem:[#allocation5 + $0xc04] sm:$0xf]
    %v953 = vld [vmem:[#allocation5 + $0xc08] sm:$0xf]
    %v954 = vld [vmem:[#allocation5 + $0xc0c] sm:$0xf]
    %v955 = vld [vmem:[#allocation5 + $0xc10] sm:$0xf]
    %v956 = vld [vmem:[#allocation5 + $0xc14] sm:$0xf]
    %v957 = vld [vmem:[#allocation5 + $0xc18] sm:$0xf]
    %v958 = vld [vmem:[#allocation5 + $0xc1c] sm:$0xf]
    %v959 = vld [vmem:[#allocation5 + $0xc20] sm:$0xf]
    %v960 = vld [vmem:[#allocation5 + $0xc24] sm:$0xf]
    %v961 = vld [vmem:[#allocation5 + $0xc28] sm:$0xf]
    %v962 = vld [vmem:[#allocation5 + $0xc2c] sm:$0xf]
    %v963 = vld [vmem:[#allocation5 + $0xc30] sm:$0xf]
    %v964 = vld [vmem:[#allocation5 + $0xc34] sm:$0xf]
    %v965 = vld [vmem:[#allocation5 + $0xc38] sm:$0xf]
    %v966 = vld [vmem:[#allocation5 + $0xc3c] sm:$0xf]
    %v967 = vld [vmem:[#allocation5 + $0xc40] sm:$0xf]
    %v968 = vld [vmem:[#allocation5 + $0xc44] sm:$0xf]
    %v969 = vld [vmem:[#allocation5 + $0xc48] sm:$0xf]
    %v970 = vld [vmem:[#allocation5 + $0xc4c] sm:$0xf]
    %v971 = vld [vmem:[#allocation5 + $0xc50] sm:$0xf]
    %v972 = vld [vmem:[#allocation5 + $0xc54] sm:$0xf]
    %v973 = vld [vmem:[#allocation5 + $0xc58] sm:$0xf]
    %v974 = vld [vmem:[#allocation5 + $0xc5c] sm:$0xf]
    %v975 = vld [vmem:[#allocation5 + $0xc60] sm:$0xf]
    %v976 = vld [vmem:[#allocation5 + $0xc64] sm:$0xf]
    %v977 = vld [vmem:[#allocation5 + $0xc68] sm:$0xf]
    %v978 = vld [vmem:[#allocation5 + $0xc6c] sm:$0xf]
    %v979 = vld [vmem:[#allocation5 + $0xc70] sm:$0xf]
    %v980 = vld [vmem:[#allocation5 + $0xc74] sm:$0xf]
    %v981 = vld [vmem:[#allocation5 + $0xc78] sm:$0xf]
    %v982 = vld [vmem:[#allocation5 + $0xc7c] sm:$0xf]
    %v983 = vld [vmem:[#allocation5 + $0xc80] sm:$0xf]
    %v984 = vld [vmem:[#allocation5 + $0xc84] sm:$0xf]
    %v985 = vld [vmem:[#allocation5 + $0xc88] sm:$0xf]
    %v986 = vld [vmem:[#allocation5 + $0xc8c] sm:$0xf]
    %v987 = vld [vmem:[#allocation5 + $0xc90] sm:$0xf]
    %v988 = vld [vmem:[#allocation5 + $0xc94] sm:$0xf]
    %v989 = vld [vmem:[#allocation5 + $0xc98] sm:$0xf]
    %v990 = vld [vmem:[#allocation5 + $0xc9c] sm:$0xf]
    %v991 = vld [vmem:[#allocation5 + $0xca0] sm:$0xf]
    %v992 = vld [vmem:[#allocation5 + $0xca4] sm:$0xf]
    %v993 = vld [vmem:[#allocation5 + $0xca8] sm:$0xf]
    %v994 = vld [vmem:[#allocation5 + $0xcac] sm:$0xf]
    %v995 = vld [vmem:[#allocation5 + $0xcb0] sm:$0xf]
    %v996 = vld [vmem:[#allocation5 + $0xcb4] sm:$0xf]
    %v997 = vld [vmem:[#allocation5 + $0xcb8] sm:$0xf]
    %v998 = vld [vmem:[#allocation5 + $0xcbc] sm:$0xf]
    %v999 = vld [vmem:[#allocation5 + $0xcc0] sm:$0xf]
    %v1000 = vld [vmem:[#allocation5 + $0xcc4] sm:$0xf]
    %v1001 = vld [vmem:[#allocation5 + $0xcc8] sm:$0xf]
    %v1002 = vld [vmem:[#allocation5 + $0xccc] sm:$0xf]
    %v1003 = vld [vmem:[#allocation5 + $0xcd0] sm:$0xf]
    %v1004 = vld [vmem:[#allocation5 + $0xcd4] sm:$0xf]
    %v1005 = vld [vmem:[#allocation5 + $0xcd8] sm:$0xf]
    %v1006 = vld [vmem:[#allocation5 + $0xcdc] sm:$0xf]
    %v1007 = vld [vmem:[#allocation5 + $0xce0] sm:$0xf]
    %v1008 = vld [vmem:[#allocation5 + $0xce4] sm:$0xf]
    %v1009 = vld [vmem:[#allocation5 + $0xce8] sm:$0xf]
    %v1010 = vld [vmem:[#allocation5 + $0xcec] sm:$0xf]
    %v1011 = vld [vmem:[#allocation5 + $0xcf0] sm:$0xf]
    %v1012 = vld [vmem:[#allocation5 + $0xcf4] sm:$0xf]
    %v1013 = vld [vmem:[#allocation5 + $0xcf8] sm:$0xf]
    %v1014 = vld [vmem:[#allocation5 + $0xcfc] sm:$0xf]
    %v1015 = vld [vmem:[#allocation5 + $0xd00] sm:$0xf]
    %v1016 = vld [vmem:[#allocation5 + $0xd04] sm:$0xf]
    %v1017 = vld [vmem:[#allocation5 + $0xd08] sm:$0xf]
    %v1018 = vld [vmem:[#allocation5 + $0xd0c] sm:$0xf]
    %v1019 = vld [vmem:[#allocation5 + $0xd10] sm:$0xf]
    %v1020 = vld [vmem:[#allocation5 + $0xd14] sm:$0xf]
    %v1021 = vld [vmem:[#allocation5 + $0xd18] sm:$0xf]
    %v1022 = vld [vmem:[#allocation5 + $0xd1c] sm:$0xf]
    %v1023 = vld [vmem:[#allocation5 + $0xd20] sm:$0xf]
    %v1024 = vld [vmem:[#allocation5 + $0xd24] sm:$0xf]
    %v1025 = vld [vmem:[#allocation5 + $0xd28] sm:$0xf]
    %v1026 = vld [vmem:[#allocation5 + $0xd2c] sm:$0xf]
    %v1027 = vld [vmem:[#allocation5 + $0xd30] sm:$0xf]
    %v1028 = vld [vmem:[#allocation5 + $0xd34] sm:$0xf]
    %v1029 = vld [vmem:[#allocation5 + $0xd38] sm:$0xf]
    %v1030 = vld [vmem:[#allocation5 + $0xd3c] sm:$0xf]
    %v1031 = vld [vmem:[#allocation5 + $0xd40] sm:$0xf]
    %v1032 = vld [vmem:[#allocation5 + $0xd44] sm:$0xf]
    %v1033 = vld [vmem:[#allocation5 + $0xd48] sm:$0xf]
    %v1034 = vld [vmem:[#allocation5 + $0xd4c] sm:$0xf]
    %v1035 = vld [vmem:[#allocation5 + $0xd50] sm:$0xf]
    %v1036 = vld [vmem:[#allocation5 + $0xd54] sm:$0xf]
    %v1037 = vld [vmem:[#allocation5 + $0xd58] sm:$0xf]
    %v1038 = vld [vmem:[#allocation5 + $0xd5c] sm:$0xf]
    %v1039 = vld [vmem:[#allocation5 + $0xd60] sm:$0xf]
    %v1040 = vld [vmem:[#allocation5 + $0xd64] sm:$0xf]
    %v1041 = vld [vmem:[#allocation5 + $0xd68] sm:$0xf]
    %v1042 = vld [vmem:[#allocation5 + $0xd6c] sm:$0xf]
    %v1043 = vld [vmem:[#allocation5 + $0xd70] sm:$0xf]
    %v1044 = vld [vmem:[#allocation5 + $0xd74] sm:$0xf]
    %v1045 = vld [vmem:[#allocation5 + $0xd78] sm:$0xf]
    %v1046 = vld [vmem:[#allocation5 + $0xd7c] sm:$0xf]
    %v1047 = vld [vmem:[#allocation5 + $0xd80] sm:$0xf]
    %v1048 = vld [vmem:[#allocation5 + $0xd84] sm:$0xf]
    %v1049 = vld [vmem:[#allocation5 + $0xd88] sm:$0xf]
    %v1050 = vld [vmem:[#allocation5 + $0xd8c] sm:$0xf]
    %v1051 = vld [vmem:[#allocation5 + $0xd90] sm:$0xf]
    %v1052 = vld [vmem:[#allocation5 + $0xd94] sm:$0xf]
    %v1053 = vld [vmem:[#allocation5 + $0xd98] sm:$0xf]
    %v1054 = vld [vmem:[#allocation5 + $0xd9c] sm:$0xf]
    %v1055 = vld [vmem:[#allocation5 + $0xda0] sm:$0xf]
    %v1056 = vld [vmem:[#allocation5 + $0xda4] sm:$0xf]
    %v1057 = vld [vmem:[#allocation5 + $0xda8] sm:$0xf]
    %v1058 = vld [vmem:[#allocation5 + $0xdac] sm:$0xf]
    %v1059 = vld [vmem:[#allocation5 + $0xdb0] sm:$0xf]
    %v1060 = vld [vmem:[#allocation5 + $0xdb4] sm:$0xf]
    %v1061 = vld [vmem:[#allocation5 + $0xdb8] sm:$0xf]
    %v1062 = vld [vmem:[#allocation5 + $0xdbc] sm:$0xf]
    %v1063 = vld [vmem:[#allocation5 + $0xdc0] sm:$0xf]
    %v1064 = vld [vmem:[#allocation5 + $0xdc4] sm:$0xf]
    %v1065 = vld [vmem:[#allocation5 + $0xdc8] sm:$0xf]
    %v1066 = vld [vmem:[#allocation5 + $0xdcc] sm:$0xf]
    %v1067 = vld [vmem:[#allocation5 + $0xdd0] sm:$0xf]
    %v1068 = vld [vmem:[#allocation5 + $0xdd4] sm:$0xf]
    %v1069 = vld [vmem:[#allocation5 + $0xdd8] sm:$0xf]
    %v1070 = vld [vmem:[#allocation5 + $0xddc] sm:$0xf]
    %v1071 = vld [vmem:[#allocation5 + $0xde0] sm:$0xf]
    %v1072 = vld [vmem:[#allocation5 + $0xde4] sm:$0xf]
    %v1073 = vld [vmem:[#allocation5 + $0xde8] sm:$0xf]
    %v1074 = vld [vmem:[#allocation5 + $0xdec] sm:$0xf]
    %v1075 = vld [vmem:[#allocation5 + $0xdf0] sm:$0xf]
    %v1076 = vld [vmem:[#allocation5 + $0xdf4] sm:$0xf]
    %v1077 = vld [vmem:[#allocation5 + $0xdf8] sm:$0xf]
    %v1078 = vld [vmem:[#allocation5 + $0xdfc] sm:$0xf]
    %v1079 = vld [vmem:[#allocation5 + $0xe00] sm:$0xf]
    %v1080 = vld [vmem:[#allocation5 + $0xe04] sm:$0xf]
    %v1081 = vld [vmem:[#allocation5 + $0xe08] sm:$0xf]
    %v1082 = vld [vmem:[#allocation5 + $0xe0c] sm:$0xf]
    %v1083 = vld [vmem:[#allocation5 + $0xe10] sm:$0xf]
    %v1084 = vld [vmem:[#allocation5 + $0xe14] sm:$0xf]
    %v1085 = vld [vmem:[#allocation5 + $0xe18] sm:$0xf]
    %v1086 = vld [vmem:[#allocation5 + $0xe1c] sm:$0xf]
    %v1087 = vld [vmem:[#allocation5 + $0xe20] sm:$0xf]
    %v1088 = vld [vmem:[#allocation5 + $0xe24] sm:$0xf]
    %v1089 = vld [vmem:[#allocation5 + $0xe28] sm:$0xf]
    %v1090 = vld [vmem:[#allocation5 + $0xe2c] sm:$0xf]
    %v1091 = vld [vmem:[#allocation5 + $0xe30] sm:$0xf]
    %v1092 = vld [vmem:[#allocation5 + $0xe34] sm:$0xf]
    %v1093 = vld [vmem:[#allocation5 + $0xe38] sm:$0xf]
    %v1094 = vld [vmem:[#allocation5 + $0xe3c] sm:$0xf]
    %v1095 = vld [vmem:[#allocation5 + $0xe40] sm:$0xf]
    %v1096 = vld [vmem:[#allocation5 + $0xe44] sm:$0xf]
    %v1097 = vld [vmem:[#allocation5 + $0xe48] sm:$0xf]
    %v1098 = vld [vmem:[#allocation5 + $0xe4c] sm:$0xf]
    %v1099 = vld [vmem:[#allocation5 + $0xe50] sm:$0xf]
    %v1100 = vld [vmem:[#allocation5 + $0xe54] sm:$0xf]
    %v1101 = vld [vmem:[#allocation5 + $0xe58] sm:$0xf]
    %v1102 = vld [vmem:[#allocation5 + $0xe5c] sm:$0xf]
    %v1103 = vld [vmem:[#allocation5 + $0xe60] sm:$0xf]
    %v1104 = vld [vmem:[#allocation5 + $0xe64] sm:$0xf]
    %v1105 = vld [vmem:[#allocation5 + $0xe68] sm:$0xf]
    %v1106 = vld [vmem:[#allocation5 + $0xe6c] sm:$0xf]
    %v1107 = vld [vmem:[#allocation5 + $0xe70] sm:$0xf]
    %v1108 = vld [vmem:[#allocation5 + $0xe74] sm:$0xf]
    %v1109 = vld [vmem:[#allocation5 + $0xe78] sm:$0xf]
    %v1110 = vld [vmem:[#allocation5 + $0xe7c] sm:$0xf]
    %v1111 = vld [vmem:[#allocation5 + $0xe80] sm:$0xf]
    %v1112 = vld [vmem:[#allocation5 + $0xe84] sm:$0xf]
    %v1113 = vld [vmem:[#allocation5 + $0xe88] sm:$0xf]
    %v1114 = vld [vmem:[#allocation5 + $0xe8c] sm:$0xf]
    %v1115 = vld [vmem:[#allocation5 + $0xe90] sm:$0xf]
    %v1116 = vld [vmem:[#allocation5 + $0xe94] sm:$0xf]
    %v1117 = vld [vmem:[#allocation5 + $0xe98] sm:$0xf]
    %v1118 = vld [vmem:[#allocation5 + $0xe9c] sm:$0xf]
    %v1119 = vld [vmem:[#allocation5 + $0xea0] sm:$0xf]
    %v1120 = vld [vmem:[#allocation5 + $0xea4] sm:$0xf]
    %v1121 = vld [vmem:[#allocation5 + $0xea8] sm:$0xf]
    %v1122 = vld [vmem:[#allocation5 + $0xeac] sm:$0xf]
    %v1123 = vld [vmem:[#allocation5 + $0xeb0] sm:$0xf]
    %v1124 = vld [vmem:[#allocation5 + $0xeb4] sm:$0xf]
    %v1125 = vld [vmem:[#allocation5 + $0xeb8] sm:$0xf]
    %v1126 = vld [vmem:[#allocation5 + $0xebc] sm:$0xf]
    %v1127 = vld [vmem:[#allocation5 + $0xec0] sm:$0xf]
    %v1128 = vld [vmem:[#allocation5 + $0xec4] sm:$0xf]
    %v1129 = vld [vmem:[#allocation5 + $0xec8] sm:$0xf]
    %v1130 = vld [vmem:[#allocation5 + $0xecc] sm:$0xf]
    %v1131 = vld [vmem:[#allocation5 + $0xed0] sm:$0xf]
    %v1132 = vld [vmem:[#allocation5 + $0xed4] sm:$0xf]
    %v1133 = vld [vmem:[#allocation5 + $0xed8] sm:$0xf]
    %v1134 = vld [vmem:[#allocation5 + $0xedc] sm:$0xf]
    %v1135 = vld [vmem:[#allocation5 + $0xee0] sm:$0xf]
    %v1136 = vld [vmem:[#allocation5 + $0xee4] sm:$0xf]
    %v1137 = vld [vmem:[#allocation5 + $0xee8] sm:$0xf]
    %v1138 = vld [vmem:[#allocation5 + $0xeec] sm:$0xf]
    %v1139 = vld [vmem:[#allocation5 + $0xef0] sm:$0xf]
    %v1140 = vld [vmem:[#allocation5 + $0xef4] sm:$0xf]
    %v1141 = vld [vmem:[#allocation5 + $0xef8] sm:$0xf]
    %v1142 = vld [vmem:[#allocation5 + $0xefc] sm:$0xf]
    %v1143 = vld [vmem:[#allocation5 + $0xf00] sm:$0xf]
    %v1144 = vld [vmem:[#allocation5 + $0xf04] sm:$0xf]
    %v1145 = vld [vmem:[#allocation5 + $0xf08] sm:$0xf]
    %v1146 = vld [vmem:[#allocation5 + $0xf0c] sm:$0xf]
    %v1147 = vld [vmem:[#allocation5 + $0xf10] sm:$0xf]
    %v1148 = vld [vmem:[#allocation5 + $0xf14] sm:$0xf]
    %v1149 = vld [vmem:[#allocation5 + $0xf18] sm:$0xf]
    %v1150 = vld [vmem:[#allocation5 + $0xf1c] sm:$0xf]
    %v1151 = vld [vmem:[#allocation5 + $0xf20] sm:$0xf]
    %v1152 = vld [vmem:[#allocation5 + $0xf24] sm:$0xf]
    %v1153 = vld [vmem:[#allocation5 + $0xf28] sm:$0xf]
    %v1154 = vld [vmem:[#allocation5 + $0xf2c] sm:$0xf]
    %v1155 = vld [vmem:[#allocation5 + $0xf30] sm:$0xf]
    %v1156 = vld [vmem:[#allocation5 + $0xf34] sm:$0xf]
    %v1157 = vld [vmem:[#allocation5 + $0xf38] sm:$0xf]
    %v1158 = vld [vmem:[#allocation5 + $0xf3c] sm:$0xf]
    %v1159 = vld [vmem:[#allocation5 + $0xf40] sm:$0xf]
    %v1160 = vld [vmem:[#allocation5 + $0xf44] sm:$0xf]
    %v1161 = vld [vmem:[#allocation5 + $0xf48] sm:$0xf]
    %v1162 = vld [vmem:[#allocation5 + $0xf4c] sm:$0xf]
    %v1163 = vld [vmem:[#allocation5 + $0xf50] sm:$0xf]
    %v1164 = vld [vmem:[#allocation5 + $0xf54] sm:$0xf]
    %v1165 = vld [vmem:[#allocation5 + $0xf58] sm:$0xf]
    %v1166 = vld [vmem:[#allocation5 + $0xf5c] sm:$0xf]
    %v1167 = vld [vmem:[#allocation5 + $0xf60] sm:$0xf]
    %v1168 = vld [vmem:[#allocation5 + $0xf64] sm:$0xf]
    %v1169 = vld [vmem:[#allocation5 + $0xf68] sm:$0xf]
    %v1170 = vld [vmem:[#allocation5 + $0xf6c] sm:$0xf]
    %v1171 = vld [vmem:[#allocation5 + $0xf70] sm:$0xf]
    %v1172 = vld [vmem:[#allocation5 + $0xf74] sm:$0xf]
    %v1173 = vld [vmem:[#allocation5 + $0xf78] sm:$0xf]
    %v1174 = vld [vmem:[#allocation5 + $0xf7c] sm:$0xf]
    %v1175 = vld [vmem:[#allocation5 + $0xf80] sm:$0xf]
    %v1176 = vld [vmem:[#allocation5 + $0xf84] sm:$0xf]
    %v1177 = vld [vmem:[#allocation5 + $0xf88] sm:$0xf]
    %v1178 = vld [vmem:[#allocation5 + $0xf8c] sm:$0xf]
    %v1179 = vld [vmem:[#allocation5 + $0xf90] sm:$0xf]
    %v1180 = vld [vmem:[#allocation5 + $0xf94] sm:$0xf]
    %v1181 = vld [vmem:[#allocation5 + $0xf98] sm:$0xf]
    %v1182 = vld [vmem:[#allocation5 + $0xf9c] sm:$0xf]
    %v1183 = vld [vmem:[#allocation5 + $0xfa0] sm:$0xf]
    %v1184 = vld [vmem:[#allocation5 + $0xfa4] sm:$0xf]
    %v1185 = vld [vmem:[#allocation5 + $0xfa8] sm:$0xf]
    %v1186 = vld [vmem:[#allocation5 + $0xfac] sm:$0xf]
    %v1187 = vld [vmem:[#allocation5 + $0xfb0] sm:$0xf]
    %v1188 = vld [vmem:[#allocation5 + $0xfb4] sm:$0xf]
    %v1189 = vld [vmem:[#allocation5 + $0xfb8] sm:$0xf]
    %v1190 = vld [vmem:[#allocation5 + $0xfbc] sm:$0xf]
    %v1191 = vld [vmem:[#allocation5 + $0xfc0] sm:$0xf]
    %v1192 = vld [vmem:[#allocation5 + $0xfc4] sm:$0xf]
    %v1193 = vld [vmem:[#allocation5 + $0xfc8] sm:$0xf]
    %v1194 = vld [vmem:[#allocation5 + $0xfcc] sm:$0xf]
    %v1195 = vld [vmem:[#allocation5 + $0xfd0] sm:$0xf]
    %v1196 = vld [vmem:[#allocation5 + $0xfd4] sm:$0xf]
    %v1197 = vld [vmem:[#allocation5 + $0xfd8] sm:$0xf]
    %v1198 = vld [vmem:[#allocation5 + $0xfdc] sm:$0xf]
    %v1199 = vld [vmem:[#allocation5 + $0xfe0] sm:$0xf]
    %v1200 = vld [vmem:[#allocation5 + $0xfe4] sm:$0xf]
    %v1201 = vld [vmem:[#allocation5 + $0xfe8] sm:$0xf]
    %v1202 = vld [vmem:[#allocation5 + $0xfec] sm:$0xf]
    %v1203 = vld [vmem:[#allocation5 + $0xff0] sm:$0xf]
    %v1204 = vld [vmem:[#allocation5 + $0xff4] sm:$0xf]
    %v1205 = vld [vmem:[#allocation5 + $0xff8] sm:$0xf]
    %v1206 = vld [vmem:[#allocation5 + $0xffc] sm:$0xf]
    %v1207 = vld [vmem:[#allocation7] sm:$0x1]
    %v1209 = vlaneseq
    %v1210 = vshrl.u32 %v1209, 7
    %v1211 = vsub.s32 0, %v1210
    %v1212 = vrot.slane %v1207, %v1211
    %v1342 = vunpack.c.l.b16 %v55
    %v1343 = vunpack.c.h.b16 %v55
    %v1344 = vunpack.c.l.b16 %v56
    %v1345 = vunpack.c.h.b16 %v56
    %v1346 = vunpack.c.l.b16 %v57
    %v1347 = vunpack.c.h.b16 %v57
    %v1348 = vunpack.c.l.b16 %v58
    %v1349 = vunpack.c.h.b16 %v58
    %v1350 = vunpack.c.l.b16 %v59
    %v1351 = vunpack.c.h.b16 %v59
    %v1352 = vunpack.c.l.b16 %v60
    %v1353 = vunpack.c.h.b16 %v60
    %v1354 = vunpack.c.l.b16 %v61
    %v1355 = vunpack.c.h.b16 %v61
    %v1356 = vunpack.c.l.b16 %v62
    %v1357 = vunpack.c.h.b16 %v62
    %v1358 = vunpack.c.l.b16 %v63
    %v1359 = vunpack.c.h.b16 %v63
    %v1360 = vunpack.c.l.b16 %v64
    %v1361 = vunpack.c.h.b16 %v64
    %v1362 = vunpack.c.l.b16 %v65
    %v1363 = vunpack.c.h.b16 %v65
    %v1364 = vunpack.c.l.b16 %v66
    %v1365 = vunpack.c.h.b16 %v66
    %v1366 = vunpack.c.l.b16 %v67
    %v1367 = vunpack.c.h.b16 %v67
    %v1368 = vunpack.c.l.b16 %v68
    %v1369 = vunpack.c.h.b16 %v68
    %v1370 = vunpack.c.l.b16 %v69
    %v1371 = vunpack.c.h.b16 %v69
    %v1372 = vunpack.c.l.b16 %v70
    %v1373 = vunpack.c.h.b16 %v70
    %v1374 = vunpack.c.l.b16 %v71
    %v1375 = vunpack.c.h.b16 %v71
    %v1376 = vunpack.c.l.b16 %v72
    %v1377 = vunpack.c.h.b16 %v72
    %v1378 = vunpack.c.l.b16 %v73
    %v1379 = vunpack.c.h.b16 %v73
    %v1380 = vunpack.c.l.b16 %v74
    %v1381 = vunpack.c.h.b16 %v74
    %v1382 = vunpack.c.l.b16 %v75
    %v1383 = vunpack.c.h.b16 %v75
    %v1384 = vunpack.c.l.b16 %v76
    %v1385 = vunpack.c.h.b16 %v76
    %v1386 = vunpack.c.l.b16 %v77
    %v1387 = vunpack.c.h.b16 %v77
    %v1388 = vunpack.c.l.b16 %v78
    %v1389 = vunpack.c.h.b16 %v78
    %v1390 = vunpack.c.l.b16 %v79
    %v1391 = vunpack.c.h.b16 %v79
    %v1392 = vunpack.c.l.b16 %v80
    %v1393 = vunpack.c.h.b16 %v80
    %v1394 = vunpack.c.l.b16 %v81
    %v1395 = vunpack.c.h.b16 %v81
    %v1396 = vunpack.c.l.b16 %v82
    %v1397 = vunpack.c.h.b16 %v82
    %v1398 = vunpack.c.l.b16 %v83
    %v1399 = vunpack.c.h.b16 %v83
    %v1400 = vunpack.c.l.b16 %v84
    %v1401 = vunpack.c.h.b16 %v84
    %v1402 = vunpack.c.l.b16 %v85
    %v1403 = vunpack.c.h.b16 %v85
    %v1404 = vunpack.c.l.b16 %v86
    %v1405 = vunpack.c.h.b16 %v86
    %v1406 = vunpack.c.l.b16 %v87
    %v1407 = vunpack.c.h.b16 %v87
    %v1408 = vunpack.c.l.b16 %v88
    %v1409 = vunpack.c.h.b16 %v88
    %v1410 = vunpack.c.l.b16 %v89
    %v1411 = vunpack.c.h.b16 %v89
    %v1412 = vunpack.c.l.b16 %v90
    %v1413 = vunpack.c.h.b16 %v90
    %v1414 = vunpack.c.l.b16 %v91
    %v1415 = vunpack.c.h.b16 %v91
    %v1416 = vunpack.c.l.b16 %v92
    %v1417 = vunpack.c.h.b16 %v92
    %v1418 = vunpack.c.l.b16 %v93
    %v1419 = vunpack.c.h.b16 %v93
    %v1420 = vunpack.c.l.b16 %v94
    %v1421 = vunpack.c.h.b16 %v94
    %v1422 = vunpack.c.l.b16 %v95
    %v1423 = vunpack.c.h.b16 %v95
    %v1424 = vunpack.c.l.b16 %v96
    %v1425 = vunpack.c.h.b16 %v96
    %v1426 = vunpack.c.l.b16 %v97
    %v1427 = vunpack.c.h.b16 %v97
    %v1428 = vunpack.c.l.b16 %v98
    %v1429 = vunpack.c.h.b16 %v98
    %v1430 = vunpack.c.l.b16 %v99
    %v1431 = vunpack.c.h.b16 %v99
    %v1432 = vunpack.c.l.b16 %v100
    %v1433 = vunpack.c.h.b16 %v100
    %v1434 = vunpack.c.l.b16 %v101
    %v1435 = vunpack.c.h.b16 %v101
    %v1436 = vunpack.c.l.b16 %v102
    %v1437 = vunpack.c.h.b16 %v102
    %v1438 = vunpack.c.l.b16 %v103
    %v1439 = vunpack.c.h.b16 %v103
    %v1440 = vunpack.c.l.b16 %v104
    %v1441 = vunpack.c.h.b16 %v104
    %v1442 = vunpack.c.l.b16 %v105
    %v1443 = vunpack.c.h.b16 %v105
    %v1444 = vunpack.c.l.b16 %v106
    %v1445 = vunpack.c.h.b16 %v106
    %v1446 = vunpack.c.l.b16 %v107
    %v1447 = vunpack.c.h.b16 %v107
    %v1448 = vunpack.c.l.b16 %v108
    %v1449 = vunpack.c.h.b16 %v108
    %v1450 = vunpack.c.l.b16 %v109
    %v1451 = vunpack.c.h.b16 %v109
    %v1452 = vunpack.c.l.b16 %v110
    %v1453 = vunpack.c.h.b16 %v110
    %v1454 = vunpack.c.l.b16 %v111
    %v1455 = vunpack.c.h.b16 %v111
    %v1456 = vunpack.c.l.b16 %v112
    %v1457 = vunpack.c.h.b16 %v112
    %v1458 = vunpack.c.l.b16 %v113
    %v1459 = vunpack.c.h.b16 %v113
    %v1460 = vunpack.c.l.b16 %v114
    %v1461 = vunpack.c.h.b16 %v114
    %v1462 = vunpack.c.l.b16 %v115
    %v1463 = vunpack.c.h.b16 %v115
    %v1464 = vunpack.c.l.b16 %v116
    %v1465 = vunpack.c.h.b16 %v116
    %v1466 = vunpack.c.l.b16 %v117
    %v1467 = vunpack.c.h.b16 %v117
    %v1468 = vunpack.c.l.b16 %v118
    %v1469 = vunpack.c.h.b16 %v118
    %v1470 = vunpack.c.l.b16 %v119
    %v1471 = vunpack.c.h.b16 %v119
    %v1472 = vunpack.c.l.b16 %v120
    %v1473 = vunpack.c.h.b16 %v120
    %v1474 = vunpack.c.l.b16 %v121
    %v1475 = vunpack.c.h.b16 %v121
    %v1476 = vunpack.c.l.b16 %v122
    %v1477 = vunpack.c.h.b16 %v122
    %v1478 = vunpack.c.l.b16 %v123
    %v1479 = vunpack.c.h.b16 %v123
    %v1480 = vunpack.c.l.b16 %v124
    %v1481 = vunpack.c.h.b16 %v124
    %v1482 = vunpack.c.l.b16 %v125
    %v1483 = vunpack.c.h.b16 %v125
    %v1484 = vunpack.c.l.b16 %v126
    %v1485 = vunpack.c.h.b16 %v126
    %v1486 = vunpack.c.l.b16 %v127
    %v1487 = vunpack.c.h.b16 %v127
    %v1488 = vunpack.c.l.b16 %v128
    %v1489 = vunpack.c.h.b16 %v128
    %v1490 = vunpack.c.l.b16 %v129
    %v1491 = vunpack.c.h.b16 %v129
    %v1492 = vunpack.c.l.b16 %v130
    %v1493 = vunpack.c.h.b16 %v130
    %v1494 = vunpack.c.l.b16 %v131
    %v1495 = vunpack.c.h.b16 %v131
    %v1496 = vunpack.c.l.b16 %v132
    %v1497 = vunpack.c.h.b16 %v132
    %v1498 = vunpack.c.l.b16 %v133
    %v1499 = vunpack.c.h.b16 %v133
    %v1500 = vunpack.c.l.b16 %v134
    %v1501 = vunpack.c.h.b16 %v134
    %v1502 = vunpack.c.l.b16 %v135
    %v1503 = vunpack.c.h.b16 %v135
    %v1504 = vunpack.c.l.b16 %v136
    %v1505 = vunpack.c.h.b16 %v136
    %v1506 = vunpack.c.l.b16 %v137
    %v1507 = vunpack.c.h.b16 %v137
    %v1508 = vunpack.c.l.b16 %v138
    %v1509 = vunpack.c.h.b16 %v138
    %v1510 = vunpack.c.l.b16 %v139
    %v1511 = vunpack.c.h.b16 %v139
    %v1512 = vunpack.c.l.b16 %v140
    %v1513 = vunpack.c.h.b16 %v140
    %v1514 = vunpack.c.l.b16 %v141
    %v1515 = vunpack.c.h.b16 %v141
    %v1516 = vunpack.c.l.b16 %v142
    %v1517 = vunpack.c.h.b16 %v142
    %v1518 = vunpack.c.l.b16 %v143
    %v1519 = vunpack.c.h.b16 %v143
    %v1520 = vunpack.c.l.b16 %v144
    %v1521 = vunpack.c.h.b16 %v144
    %v1522 = vunpack.c.l.b16 %v145
    %v1523 = vunpack.c.h.b16 %v145
    %v1524 = vunpack.c.l.b16 %v146
    %v1525 = vunpack.c.h.b16 %v146
    %v1526 = vunpack.c.l.b16 %v147
    %v1527 = vunpack.c.h.b16 %v147
    %v1528 = vunpack.c.l.b16 %v148
    %v1529 = vunpack.c.h.b16 %v148
    %v1530 = vunpack.c.l.b16 %v149
    %v1531 = vunpack.c.h.b16 %v149
    %v1532 = vunpack.c.l.b16 %v150
    %v1533 = vunpack.c.h.b16 %v150
    %v1534 = vunpack.c.l.b16 %v151
    %v1535 = vunpack.c.h.b16 %v151
    %v1536 = vunpack.c.l.b16 %v152
    %v1537 = vunpack.c.h.b16 %v152
    %v1538 = vunpack.c.l.b16 %v153
    %v1539 = vunpack.c.h.b16 %v153
    %v1540 = vunpack.c.l.b16 %v154
    %v1541 = vunpack.c.h.b16 %v154
    %v1542 = vunpack.c.l.b16 %v155
    %v1543 = vunpack.c.h.b16 %v155
    %v1544 = vunpack.c.l.b16 %v156
    %v1545 = vunpack.c.h.b16 %v156
    %v1546 = vunpack.c.l.b16 %v157
    %v1547 = vunpack.c.h.b16 %v157
    %v1548 = vunpack.c.l.b16 %v158
    %v1549 = vunpack.c.h.b16 %v158
    %v1550 = vunpack.c.l.b16 %v159
    %v1551 = vunpack.c.h.b16 %v159
    %v1552 = vunpack.c.l.b16 %v160
    %v1553 = vunpack.c.h.b16 %v160
    %v1554 = vunpack.c.l.b16 %v161
    %v1555 = vunpack.c.h.b16 %v161
    %v1556 = vunpack.c.l.b16 %v162
    %v1557 = vunpack.c.h.b16 %v162
    %v1558 = vunpack.c.l.b16 %v163
    %v1559 = vunpack.c.h.b16 %v163
    %v1560 = vunpack.c.l.b16 %v164
    %v1561 = vunpack.c.h.b16 %v164
    %v1562 = vunpack.c.l.b16 %v165
    %v1563 = vunpack.c.h.b16 %v165
    %v1564 = vunpack.c.l.b16 %v166
    %v1565 = vunpack.c.h.b16 %v166
    %v1566 = vunpack.c.l.b16 %v167
    %v1567 = vunpack.c.h.b16 %v167
    %v1568 = vunpack.c.l.b16 %v168
    %v1569 = vunpack.c.h.b16 %v168
    %v1570 = vunpack.c.l.b16 %v169
    %v1571 = vunpack.c.h.b16 %v169
    %v1572 = vunpack.c.l.b16 %v170
    %v1573 = vunpack.c.h.b16 %v170
    %v1574 = vunpack.c.l.b16 %v171
    %v1575 = vunpack.c.h.b16 %v171
    %v1576 = vunpack.c.l.b16 %v172
    %v1577 = vunpack.c.h.b16 %v172
    %v1578 = vunpack.c.l.b16 %v173
    %v1579 = vunpack.c.h.b16 %v173
    %v1580 = vunpack.c.l.b16 %v174
    %v1581 = vunpack.c.h.b16 %v174
    %v1582 = vunpack.c.l.b16 %v175
    %v1583 = vunpack.c.h.b16 %v175
    %v1584 = vunpack.c.l.b16 %v176
    %v1585 = vunpack.c.h.b16 %v176
    %v1586 = vunpack.c.l.b16 %v177
    %v1587 = vunpack.c.h.b16 %v177
    %v1588 = vunpack.c.l.b16 %v178
    %v1589 = vunpack.c.h.b16 %v178
    %v1590 = vunpack.c.l.b16 %v179
    %v1591 = vunpack.c.h.b16 %v179
    %v1592 = vunpack.c.l.b16 %v180
    %v1593 = vunpack.c.h.b16 %v180
    %v1594 = vunpack.c.l.b16 %v181
    %v1595 = vunpack.c.h.b16 %v181
    %v1596 = vunpack.c.l.b16 %v182
    %v1597 = vunpack.c.h.b16 %v182
    %v1598 = vpack.c.b16 %v1406, %v1342
    %v1599 = vpack.c.b16 %v1407, %v1343
    %v1600 = vpack.c.b16 %v1408, %v1344
    %v1601 = vpack.c.b16 %v1409, %v1345
    %v1602 = vpack.c.b16 %v1410, %v1346
    %v1603 = vpack.c.b16 %v1411, %v1347
    %v1604 = vpack.c.b16 %v1412, %v1348
    %v1605 = vpack.c.b16 %v1413, %v1349
    %v1606 = vpack.c.b16 %v1414, %v1350
    %v1607 = vpack.c.b16 %v1415, %v1351
    %v1608 = vpack.c.b16 %v1416, %v1352
    %v1609 = vpack.c.b16 %v1417, %v1353
    %v1610 = vpack.c.b16 %v1418, %v1354
    %v1611 = vpack.c.b16 %v1419, %v1355
    %v1612 = vpack.c.b16 %v1420, %v1356
    %v1613 = vpack.c.b16 %v1421, %v1357
    %v1614 = vpack.c.b16 %v1422, %v1358
    %v1615 = vpack.c.b16 %v1423, %v1359
    %v1616 = vpack.c.b16 %v1424, %v1360
    %v1617 = vpack.c.b16 %v1425, %v1361
    %v1618 = vpack.c.b16 %v1426, %v1362
    %v1619 = vpack.c.b16 %v1427, %v1363
    %v1620 = vpack.c.b16 %v1428, %v1364
    %v1621 = vpack.c.b16 %v1429, %v1365
    %v1622 = vpack.c.b16 %v1430, %v1366
    %v1623 = vpack.c.b16 %v1431, %v1367
    %v1624 = vpack.c.b16 %v1432, %v1368
    %v1625 = vpack.c.b16 %v1433, %v1369
    %v1626 = vpack.c.b16 %v1434, %v1370
    %v1627 = vpack.c.b16 %v1435, %v1371
    %v1628 = vpack.c.b16 %v1436, %v1372
    %v1629 = vpack.c.b16 %v1437, %v1373
    %v1630 = vpack.c.b16 %v1438, %v1374
    %v1631 = vpack.c.b16 %v1439, %v1375
    %v1632 = vpack.c.b16 %v1440, %v1376
    %v1633 = vpack.c.b16 %v1441, %v1377
    %v1634 = vpack.c.b16 %v1442, %v1378
    %v1635 = vpack.c.b16 %v1443, %v1379
    %v1636 = vpack.c.b16 %v1444, %v1380
    %v1637 = vpack.c.b16 %v1445, %v1381
    %v1638 = vpack.c.b16 %v1446, %v1382
    %v1639 = vpack.c.b16 %v1447, %v1383
    %v1640 = vpack.c.b16 %v1448, %v1384
    %v1641 = vpack.c.b16 %v1449, %v1385
    %v1642 = vpack.c.b16 %v1450, %v1386
    %v1643 = vpack.c.b16 %v1451, %v1387
    %v1644 = vpack.c.b16 %v1452, %v1388
    %v1645 = vpack.c.b16 %v1453, %v1389
    %v1646 = vpack.c.b16 %v1454, %v1390
    %v1647 = vpack.c.b16 %v1455, %v1391
    %v1648 = vpack.c.b16 %v1456, %v1392
    %v1649 = vpack.c.b16 %v1457, %v1393
    %v1650 = vpack.c.b16 %v1458, %v1394
    %v1651 = vpack.c.b16 %v1459, %v1395
    %v1652 = vpack.c.b16 %v1460, %v1396
    %v1653 = vpack.c.b16 %v1461, %v1397
    %v1654 = vpack.c.b16 %v1462, %v1398
    %v1655 = vpack.c.b16 %v1463, %v1399
    %v1656 = vpack.c.b16 %v1464, %v1400
    %v1657 = vpack.c.b16 %v1465, %v1401
    %v1658 = vpack.c.b16 %v1466, %v1402
    %v1659 = vpack.c.b16 %v1467, %v1403
    %v1660 = vpack.c.b16 %v1468, %v1404
    %v1661 = vpack.c.b16 %v1469, %v1405
    %v1662 = vpack.c.b16 %v1534, %v1470
    %v1663 = vpack.c.b16 %v1535, %v1471
    %v1664 = vpack.c.b16 %v1536, %v1472
    %v1665 = vpack.c.b16 %v1537, %v1473
    %v1666 = vpack.c.b16 %v1538, %v1474
    %v1667 = vpack.c.b16 %v1539, %v1475
    %v1668 = vpack.c.b16 %v1540, %v1476
    %v1669 = vpack.c.b16 %v1541, %v1477
    %v1670 = vpack.c.b16 %v1542, %v1478
    %v1671 = vpack.c.b16 %v1543, %v1479
    %v1672 = vpack.c.b16 %v1544, %v1480
    %v1673 = vpack.c.b16 %v1545, %v1481
    %v1674 = vpack.c.b16 %v1546, %v1482
    %v1675 = vpack.c.b16 %v1547, %v1483
    %v1676 = vpack.c.b16 %v1548, %v1484
    %v1677 = vpack.c.b16 %v1549, %v1485
    %v1678 = vpack.c.b16 %v1550, %v1486
    %v1679 = vpack.c.b16 %v1551, %v1487
    %v1680 = vpack.c.b16 %v1552, %v1488
    %v1681 = vpack.c.b16 %v1553, %v1489
    %v1682 = vpack.c.b16 %v1554, %v1490
    %v1683 = vpack.c.b16 %v1555, %v1491
    %v1684 = vpack.c.b16 %v1556, %v1492
    %v1685 = vpack.c.b16 %v1557, %v1493
    %v1686 = vpack.c.b16 %v1558, %v1494
    %v1687 = vpack.c.b16 %v1559, %v1495
    %v1688 = vpack.c.b16 %v1560, %v1496
    %v1689 = vpack.c.b16 %v1561, %v1497
    %v1690 = vpack.c.b16 %v1562, %v1498
    %v1691 = vpack.c.b16 %v1563, %v1499
    %v1692 = vpack.c.b16 %v1564, %v1500
    %v1693 = vpack.c.b16 %v1565, %v1501
    %v1694 = vpack.c.b16 %v1566, %v1502
    %v1695 = vpack.c.b16 %v1567, %v1503
    %v1696 = vpack.c.b16 %v1568, %v1504
    %v1697 = vpack.c.b16 %v1569, %v1505
    %v1698 = vpack.c.b16 %v1570, %v1506
    %v1699 = vpack.c.b16 %v1571, %v1507
    %v1700 = vpack.c.b16 %v1572, %v1508
    %v1701 = vpack.c.b16 %v1573, %v1509
    %v1702 = vpack.c.b16 %v1574, %v1510
    %v1703 = vpack.c.b16 %v1575, %v1511
    %v1704 = vpack.c.b16 %v1576, %v1512
    %v1705 = vpack.c.b16 %v1577, %v1513
    %v1706 = vpack.c.b16 %v1578, %v1514
    %v1707 = vpack.c.b16 %v1579, %v1515
    %v1708 = vpack.c.b16 %v1580, %v1516
    %v1709 = vpack.c.b16 %v1581, %v1517
    %v1710 = vpack.c.b16 %v1582, %v1518
    %v1711 = vpack.c.b16 %v1583, %v1519
    %v1712 = vpack.c.b16 %v1584, %v1520
    %v1713 = vpack.c.b16 %v1585, %v1521
    %v1714 = vpack.c.b16 %v1586, %v1522
    %v1715 = vpack.c.b16 %v1587, %v1523
    %v1716 = vpack.c.b16 %v1588, %v1524
    %v1717 = vpack.c.b16 %v1589, %v1525
    %v1718 = vpack.c.b16 %v1590, %v1526
    %v1719 = vpack.c.b16 %v1591, %v1527
    %v1720 = vpack.c.b16 %v1592, %v1528
    %v1721 = vpack.c.b16 %v1593, %v1529
    %v1722 = vpack.c.b16 %v1594, %v1530
    %v1723 = vpack.c.b16 %v1595, %v1531
    %v1724 = vpack.c.b16 %v1596, %v1532
    %v1725 = vpack.c.b16 %v1597, %v1533
    %v2878 = vunpack.c.l.b16 %v183
    %v2879 = vunpack.c.l.b16 %v184
    %v2880 = vunpack.c.l.b16 %v185
    %v2881 = vunpack.c.l.b16 %v186
    %v2882 = vunpack.c.l.b16 %v187
    %v2883 = vunpack.c.l.b16 %v188
    %v2884 = vunpack.c.l.b16 %v189
    %v2885 = vunpack.c.l.b16 %v190
    %v2886 = vunpack.c.l.b16 %v191
    %v2887 = vunpack.c.l.b16 %v192
    %v2888 = vunpack.c.l.b16 %v193
    %v2889 = vunpack.c.l.b16 %v194
    %v2890 = vunpack.c.l.b16 %v195
    %v2891 = vunpack.c.l.b16 %v196
    %v2892 = vunpack.c.l.b16 %v197
    %v2893 = vunpack.c.l.b16 %v198
    %v2894 = vunpack.c.l.b16 %v199
    %v2895 = vunpack.c.l.b16 %v200
    %v2896 = vunpack.c.l.b16 %v201
    %v2897 = vunpack.c.l.b16 %v202
    %v2898 = vunpack.c.l.b16 %v203
    %v2899 = vunpack.c.l.b16 %v204
    %v2900 = vunpack.c.l.b16 %v205
    %v2901 = vunpack.c.l.b16 %v206
    %v2902 = vunpack.c.l.b16 %v207
    %v2903 = vunpack.c.l.b16 %v208
    %v2904 = vunpack.c.l.b16 %v209
    %v2905 = vunpack.c.l.b16 %v210
    %v2906 = vunpack.c.l.b16 %v211
    %v2907 = vunpack.c.l.b16 %v212
    %v2908 = vunpack.c.l.b16 %v213
    %v2909 = vunpack.c.l.b16 %v214
    %v2910 = vunpack.c.l.b16 %v215
    %v2911 = vunpack.c.l.b16 %v216
    %v2912 = vunpack.c.l.b16 %v217
    %v2913 = vunpack.c.l.b16 %v218
    %v2914 = vunpack.c.l.b16 %v219
    %v2915 = vunpack.c.l.b16 %v220
    %v2916 = vunpack.c.l.b16 %v221
    %v2917 = vunpack.c.l.b16 %v222
    %v2918 = vunpack.c.l.b16 %v223
    %v2919 = vunpack.c.l.b16 %v224
    %v2920 = vunpack.c.l.b16 %v225
    %v2921 = vunpack.c.l.b16 %v226
    %v2922 = vunpack.c.l.b16 %v227
    %v2923 = vunpack.c.l.b16 %v228
    %v2924 = vunpack.c.l.b16 %v229
    %v2925 = vunpack.c.l.b16 %v230
    %v2926 = vunpack.c.l.b16 %v231
    %v2927 = vunpack.c.l.b16 %v232
    %v2928 = vunpack.c.l.b16 %v233
    %v2929 = vunpack.c.l.b16 %v234
    %v2930 = vunpack.c.l.b16 %v235
    %v2931 = vunpack.c.l.b16 %v236
    %v2932 = vunpack.c.l.b16 %v237
    %v2933 = vunpack.c.l.b16 %v238
    %v2934 = vunpack.c.l.b16 %v239
    %v2935 = vunpack.c.l.b16 %v240
    %v2936 = vunpack.c.l.b16 %v241
    %v2937 = vunpack.c.l.b16 %v242
    %v2938 = vunpack.c.l.b16 %v243
    %v2939 = vunpack.c.l.b16 %v244
    %v2940 = vunpack.c.l.b16 %v245
    %v2941 = vunpack.c.l.b16 %v246
    %v2942 = vunpack.c.l.b16 %v247
    %v2943 = vunpack.c.l.b16 %v248
    %v2944 = vunpack.c.l.b16 %v249
    %v2945 = vunpack.c.l.b16 %v250
    %v2946 = vunpack.c.l.b16 %v251
    %v2947 = vunpack.c.l.b16 %v252
    %v2948 = vunpack.c.l.b16 %v253
    %v2949 = vunpack.c.l.b16 %v254
    %v2950 = vunpack.c.l.b16 %v255
    %v2951 = vunpack.c.l.b16 %v256
    %v2952 = vunpack.c.l.b16 %v257
    %v2953 = vunpack.c.l.b16 %v258
    %v2954 = vunpack.c.l.b16 %v259
    %v2955 = vunpack.c.l.b16 %v260
    %v2956 = vunpack.c.l.b16 %v261
    %v2957 = vunpack.c.l.b16 %v262
    %v2958 = vunpack.c.l.b16 %v263
    %v2959 = vunpack.c.l.b16 %v264
    %v2960 = vunpack.c.l.b16 %v265
    %v2961 = vunpack.c.l.b16 %v266
    %v2962 = vunpack.c.l.b16 %v267
    %v2963 = vunpack.c.l.b16 %v268
    %v2964 = vunpack.c.l.b16 %v269
    %v2965 = vunpack.c.l.b16 %v270
    %v2966 = vunpack.c.l.b16 %v271
    %v2967 = vunpack.c.l.b16 %v272
    %v2968 = vunpack.c.l.b16 %v273
    %v2969 = vunpack.c.l.b16 %v274
    %v2970 = vunpack.c.l.b16 %v275
    %v2971 = vunpack.c.l.b16 %v276
    %v2972 = vunpack.c.l.b16 %v277
    %v2973 = vunpack.c.l.b16 %v278
    %v2974 = vunpack.c.l.b16 %v279
    %v2975 = vunpack.c.l.b16 %v280
    %v2976 = vunpack.c.l.b16 %v281
    %v2977 = vunpack.c.l.b16 %v282
    %v2978 = vunpack.c.l.b16 %v283
    %v2979 = vunpack.c.l.b16 %v284
    %v2980 = vunpack.c.l.b16 %v285
    %v2981 = vunpack.c.l.b16 %v286
    %v2982 = vunpack.c.l.b16 %v287
    %v2983 = vunpack.c.l.b16 %v288
    %v2984 = vunpack.c.l.b16 %v289
    %v2985 = vunpack.c.l.b16 %v290
    %v2986 = vunpack.c.l.b16 %v291
    %v2987 = vunpack.c.l.b16 %v292
    %v2988 = vunpack.c.l.b16 %v293
    %v2989 = vunpack.c.l.b16 %v294
    %v2990 = vunpack.c.l.b16 %v295
    %v2991 = vunpack.c.l.b16 %v296
    %v2992 = vunpack.c.l.b16 %v297
    %v2993 = vunpack.c.l.b16 %v298
    %v2994 = vunpack.c.l.b16 %v299
    %v2995 = vunpack.c.l.b16 %v300
    %v2996 = vunpack.c.l.b16 %v301
    %v2997 = vunpack.c.l.b16 %v302
    %v2998 = vunpack.c.l.b16 %v303
    %v2999 = vunpack.c.l.b16 %v304
    %v3000 = vunpack.c.l.b16 %v305
    %v3001 = vunpack.c.l.b16 %v306
    %v3002 = vunpack.c.l.b16 %v307
    %v3003 = vunpack.c.l.b16 %v308
    %v3004 = vunpack.c.l.b16 %v309
    %v3005 = vunpack.c.l.b16 %v310
    %v3006 = vunpack.c.l.b16 %v311
    %v3007 = vunpack.c.l.b16 %v312
    %v3008 = vunpack.c.l.b16 %v313
    %v3009 = vunpack.c.l.b16 %v314
    %v3010 = vunpack.c.l.b16 %v315
    %v3011 = vunpack.c.l.b16 %v316
    %v3012 = vunpack.c.l.b16 %v317
    %v3013 = vunpack.c.l.b16 %v318
    %v3014 = vunpack.c.l.b16 %v319
    %v3015 = vunpack.c.l.b16 %v320
    %v3016 = vunpack.c.l.b16 %v321
    %v3017 = vunpack.c.l.b16 %v322
    %v3018 = vunpack.c.l.b16 %v323
    %v3019 = vunpack.c.l.b16 %v324
    %v3020 = vunpack.c.l.b16 %v325
    %v3021 = vunpack.c.l.b16 %v326
    %v3022 = vunpack.c.l.b16 %v327
    %v3023 = vunpack.c.l.b16 %v328
    %v3024 = vunpack.c.l.b16 %v329
    %v3025 = vunpack.c.l.b16 %v330
    %v3026 = vunpack.c.l.b16 %v331
    %v3027 = vunpack.c.l.b16 %v332
    %v3028 = vunpack.c.l.b16 %v333
    %v3029 = vunpack.c.l.b16 %v334
    %v3030 = vunpack.c.l.b16 %v335
    %v3031 = vunpack.c.l.b16 %v336
    %v3032 = vunpack.c.l.b16 %v337
    %v3033 = vunpack.c.l.b16 %v338
    %v3034 = vunpack.c.l.b16 %v339
    %v3035 = vunpack.c.l.b16 %v340
    %v3036 = vunpack.c.l.b16 %v341
    %v3037 = vunpack.c.l.b16 %v342
    %v3038 = vunpack.c.l.b16 %v343
    %v3039 = vunpack.c.l.b16 %v344
    %v3040 = vunpack.c.l.b16 %v345
    %v3041 = vunpack.c.l.b16 %v346
    %v3042 = vunpack.c.l.b16 %v347
    %v3043 = vunpack.c.l.b16 %v348
    %v3044 = vunpack.c.l.b16 %v349
    %v3045 = vunpack.c.l.b16 %v350
    %v3046 = vunpack.c.l.b16 %v351
    %v3047 = vunpack.c.l.b16 %v352
    %v3048 = vunpack.c.l.b16 %v353
    %v3049 = vunpack.c.l.b16 %v354
    %v3050 = vunpack.c.l.b16 %v355
    %v3051 = vunpack.c.l.b16 %v356
    %v3052 = vunpack.c.l.b16 %v357
    %v3053 = vunpack.c.l.b16 %v358
    %v3054 = vunpack.c.l.b16 %v359
    %v3055 = vunpack.c.l.b16 %v360
    %v3056 = vunpack.c.l.b16 %v361
    %v3057 = vunpack.c.l.b16 %v362
    %v3058 = vunpack.c.l.b16 %v363
    %v3059 = vunpack.c.l.b16 %v364
    %v3060 = vunpack.c.l.b16 %v365
    %v3061 = vunpack.c.l.b16 %v366
    %v3062 = vunpack.c.l.b16 %v367
    %v3063 = vunpack.c.l.b16 %v368
    %v3064 = vunpack.c.l.b16 %v369
    %v3065 = vunpack.c.l.b16 %v370
    %v3066 = vunpack.c.l.b16 %v371
    %v3067 = vunpack.c.l.b16 %v372
    %v3068 = vunpack.c.l.b16 %v373
    %v3069 = vunpack.c.l.b16 %v374
    %v3070 = vunpack.c.l.b16 %v375
    %v3071 = vunpack.c.l.b16 %v376
    %v3072 = vunpack.c.l.b16 %v377
    %v3073 = vunpack.c.l.b16 %v378
    %v3074 = vunpack.c.l.b16 %v379
    %v3075 = vunpack.c.l.b16 %v380
    %v3076 = vunpack.c.l.b16 %v381
    %v3077 = vunpack.c.l.b16 %v382
    %v3078 = vunpack.c.l.b16 %v383
    %v3079 = vunpack.c.l.b16 %v384
    %v3080 = vunpack.c.l.b16 %v385
    %v3081 = vunpack.c.l.b16 %v386
    %v3082 = vunpack.c.l.b16 %v387
    %v3083 = vunpack.c.l.b16 %v388
    %v3084 = vunpack.c.l.b16 %v389
    %v3085 = vunpack.c.l.b16 %v390
    %v3086 = vunpack.c.l.b16 %v391
    %v3087 = vunpack.c.l.b16 %v392
    %v3088 = vunpack.c.l.b16 %v393
    %v3089 = vunpack.c.l.b16 %v394
    %v3090 = vunpack.c.l.b16 %v395
    %v3091 = vunpack.c.l.b16 %v396
    %v3092 = vunpack.c.l.b16 %v397
    %v3093 = vunpack.c.l.b16 %v398
    %v3094 = vunpack.c.l.b16 %v399
    %v3095 = vunpack.c.l.b16 %v400
    %v3096 = vunpack.c.l.b16 %v401
    %v3097 = vunpack.c.l.b16 %v402
    %v3098 = vunpack.c.l.b16 %v403
    %v3099 = vunpack.c.l.b16 %v404
    %v3100 = vunpack.c.l.b16 %v405
    %v3101 = vunpack.c.l.b16 %v406
    %v3102 = vunpack.c.l.b16 %v407
    %v3103 = vunpack.c.l.b16 %v408
    %v3104 = vunpack.c.l.b16 %v409
    %v3105 = vunpack.c.l.b16 %v410
    %v3106 = vunpack.c.l.b16 %v411
    %v3107 = vunpack.c.l.b16 %v412
    %v3108 = vunpack.c.l.b16 %v413
    %v3109 = vunpack.c.l.b16 %v414
    %v3110 = vunpack.c.l.b16 %v415
    %v3111 = vunpack.c.l.b16 %v416
    %v3112 = vunpack.c.l.b16 %v417
    %v3113 = vunpack.c.l.b16 %v418
    %v3114 = vunpack.c.l.b16 %v419
    %v3115 = vunpack.c.l.b16 %v420
    %v3116 = vunpack.c.l.b16 %v421
    %v3117 = vunpack.c.l.b16 %v422
    %v3118 = vunpack.c.l.b16 %v423
    %v3119 = vunpack.c.l.b16 %v424
    %v3120 = vunpack.c.l.b16 %v425
    %v3121 = vunpack.c.l.b16 %v426
    %v3122 = vunpack.c.l.b16 %v427
    %v3123 = vunpack.c.l.b16 %v428
    %v3124 = vunpack.c.l.b16 %v429
    %v3125 = vunpack.c.l.b16 %v430
    %v3126 = vunpack.c.l.b16 %v431
    %v3127 = vunpack.c.l.b16 %v432
    %v3128 = vunpack.c.l.b16 %v433
    %v3129 = vunpack.c.l.b16 %v434
    %v3130 = vunpack.c.l.b16 %v435
    %v3131 = vunpack.c.l.b16 %v436
    %v3132 = vunpack.c.l.b16 %v437
    %v3133 = vunpack.c.l.b16 %v438
    %v3134 = vunpack.c.l.b16 %v439
    %v3135 = vunpack.c.l.b16 %v440
    %v3136 = vunpack.c.l.b16 %v441
    %v3137 = vunpack.c.l.b16 %v442
    %v3138 = vunpack.c.l.b16 %v443
    %v3139 = vunpack.c.l.b16 %v444
    %v3140 = vunpack.c.l.b16 %v445
    %v3141 = vunpack.c.l.b16 %v446
    %v3142 = vunpack.c.l.b16 %v447
    %v3143 = vunpack.c.l.b16 %v448
    %v3144 = vunpack.c.l.b16 %v449
    %v3145 = vunpack.c.l.b16 %v450
    %v3146 = vunpack.c.l.b16 %v451
    %v3147 = vunpack.c.l.b16 %v452
    %v3148 = vunpack.c.l.b16 %v453
    %v3149 = vunpack.c.l.b16 %v454
    %v3150 = vunpack.c.l.b16 %v455
    %v3151 = vunpack.c.l.b16 %v456
    %v3152 = vunpack.c.l.b16 %v457
    %v3153 = vunpack.c.l.b16 %v458
    %v3154 = vunpack.c.l.b16 %v459
    %v3155 = vunpack.c.l.b16 %v460
    %v3156 = vunpack.c.l.b16 %v461
    %v3157 = vunpack.c.l.b16 %v462
    %v3158 = vunpack.c.l.b16 %v463
    %v3159 = vunpack.c.l.b16 %v464
    %v3160 = vunpack.c.l.b16 %v465
    %v3161 = vunpack.c.l.b16 %v466
    %v3162 = vunpack.c.l.b16 %v467
    %v3163 = vunpack.c.l.b16 %v468
    %v3164 = vunpack.c.l.b16 %v469
    %v3165 = vunpack.c.l.b16 %v470
    %v3166 = vunpack.c.l.b16 %v471
    %v3167 = vunpack.c.l.b16 %v472
    %v3168 = vunpack.c.l.b16 %v473
    %v3169 = vunpack.c.l.b16 %v474
    %v3170 = vunpack.c.l.b16 %v475
    %v3171 = vunpack.c.l.b16 %v476
    %v3172 = vunpack.c.l.b16 %v477
    %v3173 = vunpack.c.l.b16 %v478
    %v3174 = vunpack.c.l.b16 %v479
    %v3175 = vunpack.c.l.b16 %v480
    %v3176 = vunpack.c.l.b16 %v481
    %v3177 = vunpack.c.l.b16 %v482
    %v3178 = vunpack.c.l.b16 %v483
    %v3179 = vunpack.c.l.b16 %v484
    %v3180 = vunpack.c.l.b16 %v485
    %v3181 = vunpack.c.l.b16 %v486
    %v3182 = vunpack.c.l.b16 %v487
    %v3183 = vunpack.c.l.b16 %v488
    %v3184 = vunpack.c.l.b16 %v489
    %v3185 = vunpack.c.l.b16 %v490
    %v3186 = vunpack.c.l.b16 %v491
    %v3187 = vunpack.c.l.b16 %v492
    %v3188 = vunpack.c.l.b16 %v493
    %v3189 = vunpack.c.l.b16 %v494
    %v3190 = vunpack.c.l.b16 %v495
    %v3191 = vunpack.c.l.b16 %v496
    %v3192 = vunpack.c.l.b16 %v497
    %v3193 = vunpack.c.l.b16 %v498
    %v3194 = vunpack.c.l.b16 %v499
    %v3195 = vunpack.c.l.b16 %v500
    %v3196 = vunpack.c.l.b16 %v501
    %v3197 = vunpack.c.l.b16 %v502
    %v3198 = vunpack.c.l.b16 %v503
    %v3199 = vunpack.c.l.b16 %v504
    %v3200 = vunpack.c.l.b16 %v505
    %v3201 = vunpack.c.l.b16 %v506
    %v3202 = vunpack.c.l.b16 %v507
    %v3203 = vunpack.c.l.b16 %v508
    %v3204 = vunpack.c.l.b16 %v509
    %v3205 = vunpack.c.l.b16 %v510
    %v3206 = vunpack.c.l.b16 %v511
    %v3207 = vunpack.c.l.b16 %v512
    %v3208 = vunpack.c.l.b16 %v513
    %v3209 = vunpack.c.l.b16 %v514
    %v3210 = vunpack.c.l.b16 %v515
    %v3211 = vunpack.c.l.b16 %v516
    %v3212 = vunpack.c.l.b16 %v517
    %v3213 = vunpack.c.l.b16 %v518
    %v3214 = vunpack.c.l.b16 %v519
    %v3215 = vunpack.c.l.b16 %v520
    %v3216 = vunpack.c.l.b16 %v521
    %v3217 = vunpack.c.l.b16 %v522
    %v3218 = vunpack.c.l.b16 %v523
    %v3219 = vunpack.c.l.b16 %v524
    %v3220 = vunpack.c.l.b16 %v525
    %v3221 = vunpack.c.l.b16 %v526
    %v3222 = vunpack.c.l.b16 %v527
    %v3223 = vunpack.c.l.b16 %v528
    %v3224 = vunpack.c.l.b16 %v529
    %v3225 = vunpack.c.l.b16 %v530
    %v3226 = vunpack.c.l.b16 %v531
    %v3227 = vunpack.c.l.b16 %v532
    %v3228 = vunpack.c.l.b16 %v533
    %v3229 = vunpack.c.l.b16 %v534
    %v3230 = vunpack.c.l.b16 %v535
    %v3231 = vunpack.c.l.b16 %v536
    %v3232 = vunpack.c.l.b16 %v537
    %v3233 = vunpack.c.l.b16 %v538
    %v3234 = vunpack.c.l.b16 %v539
    %v3235 = vunpack.c.l.b16 %v540
    %v3236 = vunpack.c.l.b16 %v541
    %v3237 = vunpack.c.l.b16 %v542
    %v3238 = vunpack.c.l.b16 %v543
    %v3239 = vunpack.c.l.b16 %v544
    %v3240 = vunpack.c.l.b16 %v545
    %v3241 = vunpack.c.l.b16 %v546
    %v3242 = vunpack.c.l.b16 %v547
    %v3243 = vunpack.c.l.b16 %v548
    %v3244 = vunpack.c.l.b16 %v549
    %v3245 = vunpack.c.l.b16 %v550
    %v3246 = vunpack.c.l.b16 %v551
    %v3247 = vunpack.c.l.b16 %v552
    %v3248 = vunpack.c.l.b16 %v553
    %v3249 = vunpack.c.l.b16 %v554
    %v3250 = vunpack.c.l.b16 %v555
    %v3251 = vunpack.c.l.b16 %v556
    %v3252 = vunpack.c.l.b16 %v557
    %v3253 = vunpack.c.l.b16 %v558
    %v3254 = vunpack.c.l.b16 %v559
    %v3255 = vunpack.c.l.b16 %v560
    %v3256 = vunpack.c.l.b16 %v561
    %v3257 = vunpack.c.l.b16 %v562
    %v3258 = vunpack.c.l.b16 %v563
    %v3259 = vunpack.c.l.b16 %v564
    %v3260 = vunpack.c.l.b16 %v565
    %v3261 = vunpack.c.l.b16 %v566
    %v3262 = vunpack.c.l.b16 %v567
    %v3263 = vunpack.c.l.b16 %v568
    %v3264 = vunpack.c.l.b16 %v569
    %v3265 = vunpack.c.l.b16 %v570
    %v3266 = vunpack.c.l.b16 %v571
    %v3267 = vunpack.c.l.b16 %v572
    %v3268 = vunpack.c.l.b16 %v573
    %v3269 = vunpack.c.l.b16 %v574
    %v3270 = vunpack.c.l.b16 %v575
    %v3271 = vunpack.c.l.b16 %v576
    %v3272 = vunpack.c.l.b16 %v577
    %v3273 = vunpack.c.l.b16 %v578
    %v3274 = vunpack.c.l.b16 %v579
    %v3275 = vunpack.c.l.b16 %v580
    %v3276 = vunpack.c.l.b16 %v581
    %v3277 = vunpack.c.l.b16 %v582
    %v3278 = vunpack.c.l.b16 %v583
    %v3279 = vunpack.c.l.b16 %v584
    %v3280 = vunpack.c.l.b16 %v585
    %v3281 = vunpack.c.l.b16 %v586
    %v3282 = vunpack.c.l.b16 %v587
    %v3283 = vunpack.c.l.b16 %v588
    %v3284 = vunpack.c.l.b16 %v589
    %v3285 = vunpack.c.l.b16 %v590
    %v3286 = vunpack.c.l.b16 %v591
    %v3287 = vunpack.c.l.b16 %v592
    %v3288 = vunpack.c.l.b16 %v593
    %v3289 = vunpack.c.l.b16 %v594
    %v3290 = vunpack.c.l.b16 %v595
    %v3291 = vunpack.c.l.b16 %v596
    %v3292 = vunpack.c.l.b16 %v597
    %v3293 = vunpack.c.l.b16 %v598
    %v3294 = vunpack.c.l.b16 %v599
    %v3295 = vunpack.c.l.b16 %v600
    %v3296 = vunpack.c.l.b16 %v601
    %v3297 = vunpack.c.l.b16 %v602
    %v3298 = vunpack.c.l.b16 %v603
    %v3299 = vunpack.c.l.b16 %v604
    %v3300 = vunpack.c.l.b16 %v605
    %v3301 = vunpack.c.l.b16 %v606
    %v3302 = vunpack.c.l.b16 %v607
    %v3303 = vunpack.c.l.b16 %v608
    %v3304 = vunpack.c.l.b16 %v609
    %v3305 = vunpack.c.l.b16 %v610
    %v3306 = vunpack.c.l.b16 %v611
    %v3307 = vunpack.c.l.b16 %v612
    %v3308 = vunpack.c.l.b16 %v613
    %v3309 = vunpack.c.l.b16 %v614
    %v3310 = vunpack.c.l.b16 %v615
    %v3311 = vunpack.c.l.b16 %v616
    %v3312 = vunpack.c.l.b16 %v617
    %v3313 = vunpack.c.l.b16 %v618
    %v3314 = vunpack.c.l.b16 %v619
    %v3315 = vunpack.c.l.b16 %v620
    %v3316 = vunpack.c.l.b16 %v621
    %v3317 = vunpack.c.l.b16 %v622
    %v3318 = vunpack.c.l.b16 %v623
    %v3319 = vunpack.c.l.b16 %v624
    %v3320 = vunpack.c.l.b16 %v625
    %v3321 = vunpack.c.l.b16 %v626
    %v3322 = vunpack.c.l.b16 %v627
    %v3323 = vunpack.c.l.b16 %v628
    %v3324 = vunpack.c.l.b16 %v629
    %v3325 = vunpack.c.l.b16 %v630
    %v3326 = vunpack.c.l.b16 %v631
    %v3327 = vunpack.c.l.b16 %v632
    %v3328 = vunpack.c.l.b16 %v633
    %v3329 = vunpack.c.l.b16 %v634
    %v3330 = vunpack.c.l.b16 %v635
    %v3331 = vunpack.c.l.b16 %v636
    %v3332 = vunpack.c.l.b16 %v637
    %v3333 = vunpack.c.l.b16 %v638
    %v3334 = vunpack.c.l.b16 %v639
    %v3335 = vunpack.c.l.b16 %v640
    %v3336 = vunpack.c.l.b16 %v641
    %v3337 = vunpack.c.l.b16 %v642
    %v3338 = vunpack.c.l.b16 %v643
    %v3339 = vunpack.c.l.b16 %v644
    %v3340 = vunpack.c.l.b16 %v645
    %v3341 = vunpack.c.l.b16 %v646
    %v3342 = vunpack.c.l.b16 %v647
    %v3343 = vunpack.c.l.b16 %v648
    %v3344 = vunpack.c.l.b16 %v649
    %v3345 = vunpack.c.l.b16 %v650
    %v3346 = vunpack.c.l.b16 %v651
    %v3347 = vunpack.c.l.b16 %v652
    %v3348 = vunpack.c.l.b16 %v653
    %v3349 = vunpack.c.l.b16 %v654
    %v3350 = vunpack.c.l.b16 %v655
    %v3351 = vunpack.c.l.b16 %v656
    %v3352 = vunpack.c.l.b16 %v657
    %v3353 = vunpack.c.l.b16 %v658
    %v3354 = vunpack.c.l.b16 %v659
    %v3355 = vunpack.c.l.b16 %v660
    %v3356 = vunpack.c.l.b16 %v661
    %v3357 = vunpack.c.l.b16 %v662
    %v3358 = vunpack.c.l.b16 %v663
    %v3359 = vunpack.c.l.b16 %v664
    %v3360 = vunpack.c.l.b16 %v665
    %v3361 = vunpack.c.l.b16 %v666
    %v3362 = vunpack.c.l.b16 %v667
    %v3363 = vunpack.c.l.b16 %v668
    %v3364 = vunpack.c.l.b16 %v669
    %v3365 = vunpack.c.l.b16 %v670
    %v3366 = vunpack.c.l.b16 %v671
    %v3367 = vunpack.c.l.b16 %v672
    %v3368 = vunpack.c.l.b16 %v673
    %v3369 = vunpack.c.l.b16 %v674
    %v3370 = vunpack.c.l.b16 %v675
    %v3371 = vunpack.c.l.b16 %v676
    %v3372 = vunpack.c.l.b16 %v677
    %v3373 = vunpack.c.l.b16 %v678
    %v3374 = vunpack.c.l.b16 %v679
    %v3375 = vunpack.c.l.b16 %v680
    %v3376 = vunpack.c.l.b16 %v681
    %v3377 = vunpack.c.l.b16 %v682
    %v3378 = vunpack.c.l.b16 %v683
    %v3379 = vunpack.c.l.b16 %v684
    %v3380 = vunpack.c.l.b16 %v685
    %v3381 = vunpack.c.l.b16 %v686
    %v3382 = vunpack.c.l.b16 %v687
    %v3383 = vunpack.c.l.b16 %v688
    %v3384 = vunpack.c.l.b16 %v689
    %v3385 = vunpack.c.l.b16 %v690
    %v3386 = vunpack.c.l.b16 %v691
    %v3387 = vunpack.c.l.b16 %v692
    %v3388 = vunpack.c.l.b16 %v693
    %v3389 = vunpack.c.l.b16 %v694
    %v3390 = vunpack.c.l.b16 %v695
    %v3391 = vunpack.c.l.b16 %v696
    %v3392 = vunpack.c.l.b16 %v697
    %v3393 = vunpack.c.l.b16 %v698
    %v3394 = vunpack.c.l.b16 %v699
    %v3395 = vunpack.c.l.b16 %v700
    %v3396 = vunpack.c.l.b16 %v701
    %v3397 = vunpack.c.l.b16 %v702
    %v3398 = vunpack.c.l.b16 %v703
    %v3399 = vunpack.c.l.b16 %v704
    %v3400 = vunpack.c.l.b16 %v705
    %v3401 = vunpack.c.l.b16 %v706
    %v3402 = vunpack.c.l.b16 %v707
    %v3403 = vunpack.c.l.b16 %v708
    %v3404 = vunpack.c.l.b16 %v709
    %v3405 = vunpack.c.l.b16 %v710
    %v3406 = vunpack.c.l.b16 %v711
    %v3407 = vunpack.c.l.b16 %v712
    %v3408 = vunpack.c.l.b16 %v713
    %v3409 = vunpack.c.l.b16 %v714
    %v3410 = vunpack.c.l.b16 %v715
    %v3411 = vunpack.c.l.b16 %v716
    %v3412 = vunpack.c.l.b16 %v717
    %v3413 = vunpack.c.l.b16 %v718
    %v3414 = vunpack.c.l.b16 %v719
    %v3415 = vunpack.c.l.b16 %v720
    %v3416 = vunpack.c.l.b16 %v721
    %v3417 = vunpack.c.l.b16 %v722
    %v3418 = vunpack.c.l.b16 %v723
    %v3419 = vunpack.c.l.b16 %v724
    %v3420 = vunpack.c.l.b16 %v725
    %v3421 = vunpack.c.l.b16 %v726
    %v3422 = vunpack.c.l.b16 %v727
    %v3423 = vunpack.c.l.b16 %v728
    %v3424 = vunpack.c.l.b16 %v729
    %v3425 = vunpack.c.l.b16 %v730
    %v3426 = vunpack.c.l.b16 %v731
    %v3427 = vunpack.c.l.b16 %v732
    %v3428 = vunpack.c.l.b16 %v733
    %v3429 = vunpack.c.l.b16 %v734
    %v3430 = vunpack.c.l.b16 %v735
    %v3431 = vunpack.c.l.b16 %v736
    %v3432 = vunpack.c.l.b16 %v737
    %v3433 = vunpack.c.l.b16 %v738
    %v3434 = vunpack.c.l.b16 %v739
    %v3435 = vunpack.c.l.b16 %v740
    %v3436 = vunpack.c.l.b16 %v741
    %v3437 = vunpack.c.l.b16 %v742
    %v3438 = vunpack.c.l.b16 %v743
    %v3439 = vunpack.c.l.b16 %v744
    %v3440 = vunpack.c.l.b16 %v745
    %v3441 = vunpack.c.l.b16 %v746
    %v3442 = vunpack.c.l.b16 %v747
    %v3443 = vunpack.c.l.b16 %v748
    %v3444 = vunpack.c.l.b16 %v749
    %v3445 = vunpack.c.l.b16 %v750
    %v3446 = vunpack.c.l.b16 %v751
    %v3447 = vunpack.c.l.b16 %v752
    %v3448 = vunpack.c.l.b16 %v753
    %v3449 = vunpack.c.l.b16 %v754
    %v3450 = vunpack.c.l.b16 %v755
    %v3451 = vunpack.c.l.b16 %v756
    %v3452 = vunpack.c.l.b16 %v757
    %v3453 = vunpack.c.l.b16 %v758
    %v3454 = vunpack.c.l.b16 %v759
    %v3455 = vunpack.c.l.b16 %v760
    %v3456 = vunpack.c.l.b16 %v761
    %v3457 = vunpack.c.l.b16 %v762
    %v3458 = vunpack.c.l.b16 %v763
    %v3459 = vunpack.c.l.b16 %v764
    %v3460 = vunpack.c.l.b16 %v765
    %v3461 = vunpack.c.l.b16 %v766
    %v3462 = vunpack.c.l.b16 %v767
    %v3463 = vunpack.c.l.b16 %v768
    %v3464 = vunpack.c.l.b16 %v769
    %v3465 = vunpack.c.l.b16 %v770
    %v3466 = vunpack.c.l.b16 %v771
    %v3467 = vunpack.c.l.b16 %v772
    %v3468 = vunpack.c.l.b16 %v773
    %v3469 = vunpack.c.l.b16 %v774
    %v3470 = vunpack.c.l.b16 %v775
    %v3471 = vunpack.c.l.b16 %v776
    %v3472 = vunpack.c.l.b16 %v777
    %v3473 = vunpack.c.l.b16 %v778
    %v3474 = vunpack.c.l.b16 %v779
    %v3475 = vunpack.c.l.b16 %v780
    %v3476 = vunpack.c.l.b16 %v781
    %v3477 = vunpack.c.l.b16 %v782
    %v3478 = vunpack.c.l.b16 %v783
    %v3479 = vunpack.c.l.b16 %v784
    %v3480 = vunpack.c.l.b16 %v785
    %v3481 = vunpack.c.l.b16 %v786
    %v3482 = vunpack.c.l.b16 %v787
    %v3483 = vunpack.c.l.b16 %v788
    %v3484 = vunpack.c.l.b16 %v789
    %v3485 = vunpack.c.l.b16 %v790
    %v3486 = vunpack.c.l.b16 %v791
    %v3487 = vunpack.c.l.b16 %v792
    %v3488 = vunpack.c.l.b16 %v793
    %v3489 = vunpack.c.l.b16 %v794
    %v3490 = vunpack.c.l.b16 %v795
    %v3491 = vunpack.c.l.b16 %v796
    %v3492 = vunpack.c.l.b16 %v797
    %v3493 = vunpack.c.l.b16 %v798
    %v3494 = vunpack.c.l.b16 %v799
    %v3495 = vunpack.c.l.b16 %v800
    %v3496 = vunpack.c.l.b16 %v801
    %v3497 = vunpack.c.l.b16 %v802
    %v3498 = vunpack.c.l.b16 %v803
    %v3499 = vunpack.c.l.b16 %v804
    %v3500 = vunpack.c.l.b16 %v805
    %v3501 = vunpack.c.l.b16 %v806
    %v3502 = vunpack.c.l.b16 %v807
    %v3503 = vunpack.c.l.b16 %v808
    %v3504 = vunpack.c.l.b16 %v809
    %v3505 = vunpack.c.l.b16 %v810
    %v3506 = vunpack.c.l.b16 %v811
    %v3507 = vunpack.c.l.b16 %v812
    %v3508 = vunpack.c.l.b16 %v813
    %v3509 = vunpack.c.l.b16 %v814
    %v3510 = vunpack.c.l.b16 %v815
    %v3511 = vunpack.c.l.b16 %v816
    %v3512 = vunpack.c.l.b16 %v817
    %v3513 = vunpack.c.l.b16 %v818
    %v3514 = vunpack.c.l.b16 %v819
    %v3515 = vunpack.c.l.b16 %v820
    %v3516 = vunpack.c.l.b16 %v821
    %v3517 = vunpack.c.l.b16 %v822
    %v3518 = vunpack.c.l.b16 %v823
    %v3519 = vunpack.c.l.b16 %v824
    %v3520 = vunpack.c.l.b16 %v825
    %v3521 = vunpack.c.l.b16 %v826
    %v3522 = vunpack.c.l.b16 %v827
    %v3523 = vunpack.c.l.b16 %v828
    %v3524 = vunpack.c.l.b16 %v829
    %v3525 = vunpack.c.l.b16 %v830
    %v3526 = vunpack.c.l.b16 %v831
    %v3527 = vunpack.c.l.b16 %v832
    %v3528 = vunpack.c.l.b16 %v833
    %v3529 = vunpack.c.l.b16 %v834
    %v3530 = vunpack.c.l.b16 %v835
    %v3531 = vunpack.c.l.b16 %v836
    %v3532 = vunpack.c.l.b16 %v837
    %v3533 = vunpack.c.l.b16 %v838
    %v3534 = vunpack.c.l.b16 %v839
    %v3535 = vunpack.c.l.b16 %v840
    %v3536 = vunpack.c.l.b16 %v841
    %v3537 = vunpack.c.l.b16 %v842
    %v3538 = vunpack.c.l.b16 %v843
    %v3539 = vunpack.c.l.b16 %v844
    %v3540 = vunpack.c.l.b16 %v845
    %v3541 = vunpack.c.l.b16 %v846
    %v3542 = vunpack.c.l.b16 %v847
    %v3543 = vunpack.c.l.b16 %v848
    %v3544 = vunpack.c.l.b16 %v849
    %v3545 = vunpack.c.l.b16 %v850
    %v3546 = vunpack.c.l.b16 %v851
    %v3547 = vunpack.c.l.b16 %v852
    %v3548 = vunpack.c.l.b16 %v853
    %v3549 = vunpack.c.l.b16 %v854
    %v3550 = vunpack.c.l.b16 %v855
    %v3551 = vunpack.c.l.b16 %v856
    %v3552 = vunpack.c.l.b16 %v857
    %v3553 = vunpack.c.l.b16 %v858
    %v3554 = vunpack.c.l.b16 %v859
    %v3555 = vunpack.c.l.b16 %v860
    %v3556 = vunpack.c.l.b16 %v861
    %v3557 = vunpack.c.l.b16 %v862
    %v3558 = vunpack.c.l.b16 %v863
    %v3559 = vunpack.c.l.b16 %v864
    %v3560 = vunpack.c.l.b16 %v865
    %v3561 = vunpack.c.l.b16 %v866
    %v3562 = vunpack.c.l.b16 %v867
    %v3563 = vunpack.c.l.b16 %v868
    %v3564 = vunpack.c.l.b16 %v869
    %v3565 = vunpack.c.l.b16 %v870
    %v3566 = vunpack.c.l.b16 %v871
    %v3567 = vunpack.c.l.b16 %v872
    %v3568 = vunpack.c.l.b16 %v873
    %v3569 = vunpack.c.l.b16 %v874
    %v3570 = vunpack.c.l.b16 %v875
    %v3571 = vunpack.c.l.b16 %v876
    %v3572 = vunpack.c.l.b16 %v877
    %v3573 = vunpack.c.l.b16 %v878
    %v3574 = vunpack.c.l.b16 %v879
    %v3575 = vunpack.c.l.b16 %v880
    %v3576 = vunpack.c.l.b16 %v881
    %v3577 = vunpack.c.l.b16 %v882
    %v3578 = vunpack.c.l.b16 %v883
    %v3579 = vunpack.c.l.b16 %v884
    %v3580 = vunpack.c.l.b16 %v885
    %v3581 = vunpack.c.l.b16 %v886
    %v3582 = vunpack.c.l.b16 %v887
    %v3583 = vunpack.c.l.b16 %v888
    %v3584 = vunpack.c.l.b16 %v889
    %v3585 = vunpack.c.l.b16 %v890
    %v3586 = vunpack.c.l.b16 %v891
    %v3587 = vunpack.c.l.b16 %v892
    %v3588 = vunpack.c.l.b16 %v893
    %v3589 = vunpack.c.l.b16 %v894
    %v3590 = vunpack.c.l.b16 %v895
    %v3591 = vunpack.c.l.b16 %v896
    %v3592 = vunpack.c.l.b16 %v897
    %v3593 = vunpack.c.l.b16 %v898
    %v3594 = vunpack.c.l.b16 %v899
    %v3595 = vunpack.c.l.b16 %v900
    %v3596 = vunpack.c.l.b16 %v901
    %v3597 = vunpack.c.l.b16 %v902
    %v3598 = vunpack.c.l.b16 %v903
    %v3599 = vunpack.c.l.b16 %v904
    %v3600 = vunpack.c.l.b16 %v905
    %v3601 = vunpack.c.l.b16 %v906
    %v3602 = vunpack.c.l.b16 %v907
    %v3603 = vunpack.c.l.b16 %v908
    %v3604 = vunpack.c.l.b16 %v909
    %v3605 = vunpack.c.l.b16 %v910
    %v3606 = vunpack.c.l.b16 %v911
    %v3607 = vunpack.c.l.b16 %v912
    %v3608 = vunpack.c.l.b16 %v913
    %v3609 = vunpack.c.l.b16 %v914
    %v3610 = vunpack.c.l.b16 %v915
    %v3611 = vunpack.c.l.b16 %v916
    %v3612 = vunpack.c.l.b16 %v917
    %v3613 = vunpack.c.l.b16 %v918
    %v3614 = vunpack.c.l.b16 %v919
    %v3615 = vunpack.c.l.b16 %v920
    %v3616 = vunpack.c.l.b16 %v921
    %v3617 = vunpack.c.l.b16 %v922
    %v3618 = vunpack.c.l.b16 %v923
    %v3619 = vunpack.c.l.b16 %v924
    %v3620 = vunpack.c.l.b16 %v925
    %v3621 = vunpack.c.l.b16 %v926
    %v3622 = vunpack.c.l.b16 %v927
    %v3623 = vunpack.c.l.b16 %v928
    %v3624 = vunpack.c.l.b16 %v929
    %v3625 = vunpack.c.l.b16 %v930
    %v3626 = vunpack.c.l.b16 %v931
    %v3627 = vunpack.c.l.b16 %v932
    %v3628 = vunpack.c.l.b16 %v933
    %v3629 = vunpack.c.l.b16 %v934
    %v3630 = vunpack.c.l.b16 %v935
    %v3631 = vunpack.c.l.b16 %v936
    %v3632 = vunpack.c.l.b16 %v937
    %v3633 = vunpack.c.l.b16 %v938
    %v3634 = vunpack.c.l.b16 %v939
    %v3635 = vunpack.c.l.b16 %v940
    %v3636 = vunpack.c.l.b16 %v941
    %v3637 = vunpack.c.l.b16 %v942
    %v3638 = vunpack.c.l.b16 %v943
    %v3639 = vunpack.c.l.b16 %v944
    %v3640 = vunpack.c.l.b16 %v945
    %v3641 = vunpack.c.l.b16 %v946
    %v3642 = vunpack.c.l.b16 %v947
    %v3643 = vunpack.c.l.b16 %v948
    %v3644 = vunpack.c.l.b16 %v949
    %v3645 = vunpack.c.l.b16 %v950
    %v3646 = vunpack.c.l.b16 %v951
    %v3647 = vunpack.c.l.b16 %v952
    %v3648 = vunpack.c.l.b16 %v953
    %v3649 = vunpack.c.l.b16 %v954
    %v3650 = vunpack.c.l.b16 %v955
    %v3651 = vunpack.c.l.b16 %v956
    %v3652 = vunpack.c.l.b16 %v957
    %v3653 = vunpack.c.l.b16 %v958
    %v3654 = vunpack.c.l.b16 %v959
    %v3655 = vunpack.c.l.b16 %v960
    %v3656 = vunpack.c.l.b16 %v961
    %v3657 = vunpack.c.l.b16 %v962
    %v3658 = vunpack.c.l.b16 %v963
    %v3659 = vunpack.c.l.b16 %v964
    %v3660 = vunpack.c.l.b16 %v965
    %v3661 = vunpack.c.l.b16 %v966
    %v3662 = vunpack.c.l.b16 %v967
    %v3663 = vunpack.c.l.b16 %v968
    %v3664 = vunpack.c.l.b16 %v969
    %v3665 = vunpack.c.l.b16 %v970
    %v3666 = vunpack.c.l.b16 %v971
    %v3667 = vunpack.c.l.b16 %v972
    %v3668 = vunpack.c.l.b16 %v973
    %v3669 = vunpack.c.l.b16 %v974
    %v3670 = vunpack.c.l.b16 %v975
    %v3671 = vunpack.c.l.b16 %v976
    %v3672 = vunpack.c.l.b16 %v977
    %v3673 = vunpack.c.l.b16 %v978
    %v3674 = vunpack.c.l.b16 %v979
    %v3675 = vunpack.c.l.b16 %v980
    %v3676 = vunpack.c.l.b16 %v981
    %v3677 = vunpack.c.l.b16 %v982
    %v3678 = vunpack.c.l.b16 %v983
    %v3679 = vunpack.c.l.b16 %v984
    %v3680 = vunpack.c.l.b16 %v985
    %v3681 = vunpack.c.l.b16 %v986
    %v3682 = vunpack.c.l.b16 %v987
    %v3683 = vunpack.c.l.b16 %v988
    %v3684 = vunpack.c.l.b16 %v989
    %v3685 = vunpack.c.l.b16 %v990
    %v3686 = vunpack.c.l.b16 %v991
    %v3687 = vunpack.c.l.b16 %v992
    %v3688 = vunpack.c.l.b16 %v993
    %v3689 = vunpack.c.l.b16 %v994
    %v3690 = vunpack.c.l.b16 %v995
    %v3691 = vunpack.c.l.b16 %v996
    %v3692 = vunpack.c.l.b16 %v997
    %v3693 = vunpack.c.l.b16 %v998
    %v3694 = vunpack.c.l.b16 %v999
    %v3695 = vunpack.c.l.b16 %v1000
    %v3696 = vunpack.c.l.b16 %v1001
    %v3697 = vunpack.c.l.b16 %v1002
    %v3698 = vunpack.c.l.b16 %v1003
    %v3699 = vunpack.c.l.b16 %v1004
    %v3700 = vunpack.c.l.b16 %v1005
    %v3701 = vunpack.c.l.b16 %v1006
    %v3702 = vunpack.c.l.b16 %v1007
    %v3703 = vunpack.c.l.b16 %v1008
    %v3704 = vunpack.c.l.b16 %v1009
    %v3705 = vunpack.c.l.b16 %v1010
    %v3706 = vunpack.c.l.b16 %v1011
    %v3707 = vunpack.c.l.b16 %v1012
    %v3708 = vunpack.c.l.b16 %v1013
    %v3709 = vunpack.c.l.b16 %v1014
    %v3710 = vunpack.c.l.b16 %v1015
    %v3711 = vunpack.c.l.b16 %v1016
    %v3712 = vunpack.c.l.b16 %v1017
    %v3713 = vunpack.c.l.b16 %v1018
    %v3714 = vunpack.c.l.b16 %v1019
    %v3715 = vunpack.c.l.b16 %v1020
    %v3716 = vunpack.c.l.b16 %v1021
    %v3717 = vunpack.c.l.b16 %v1022
    %v3718 = vunpack.c.l.b16 %v1023
    %v3719 = vunpack.c.l.b16 %v1024
    %v3720 = vunpack.c.l.b16 %v1025
    %v3721 = vunpack.c.l.b16 %v1026
    %v3722 = vunpack.c.l.b16 %v1027
    %v3723 = vunpack.c.l.b16 %v1028
    %v3724 = vunpack.c.l.b16 %v1029
    %v3725 = vunpack.c.l.b16 %v1030
    %v3726 = vunpack.c.l.b16 %v1031
    %v3727 = vunpack.c.l.b16 %v1032
    %v3728 = vunpack.c.l.b16 %v1033
    %v3729 = vunpack.c.l.b16 %v1034
    %v3730 = vunpack.c.l.b16 %v1035
    %v3731 = vunpack.c.l.b16 %v1036
    %v3732 = vunpack.c.l.b16 %v1037
    %v3733 = vunpack.c.l.b16 %v1038
    %v3734 = vunpack.c.l.b16 %v1039
    %v3735 = vunpack.c.l.b16 %v1040
    %v3736 = vunpack.c.l.b16 %v1041
    %v3737 = vunpack.c.l.b16 %v1042
    %v3738 = vunpack.c.l.b16 %v1043
    %v3739 = vunpack.c.l.b16 %v1044
    %v3740 = vunpack.c.l.b16 %v1045
    %v3741 = vunpack.c.l.b16 %v1046
    %v3742 = vunpack.c.l.b16 %v1047
    %v3743 = vunpack.c.l.b16 %v1048
    %v3744 = vunpack.c.l.b16 %v1049
    %v3745 = vunpack.c.l.b16 %v1050
    %v3746 = vunpack.c.l.b16 %v1051
    %v3747 = vunpack.c.l.b16 %v1052
    %v3748 = vunpack.c.l.b16 %v1053
    %v3749 = vunpack.c.l.b16 %v1054
    %v3750 = vunpack.c.l.b16 %v1055
    %v3751 = vunpack.c.l.b16 %v1056
    %v3752 = vunpack.c.l.b16 %v1057
    %v3753 = vunpack.c.l.b16 %v1058
    %v3754 = vunpack.c.l.b16 %v1059
    %v3755 = vunpack.c.l.b16 %v1060
    %v3756 = vunpack.c.l.b16 %v1061
    %v3757 = vunpack.c.l.b16 %v1062
    %v3758 = vunpack.c.l.b16 %v1063
    %v3759 = vunpack.c.l.b16 %v1064
    %v3760 = vunpack.c.l.b16 %v1065
    %v3761 = vunpack.c.l.b16 %v1066
    %v3762 = vunpack.c.l.b16 %v1067
    %v3763 = vunpack.c.l.b16 %v1068
    %v3764 = vunpack.c.l.b16 %v1069
    %v3765 = vunpack.c.l.b16 %v1070
    %v3766 = vunpack.c.l.b16 %v1071
    %v3767 = vunpack.c.l.b16 %v1072
    %v3768 = vunpack.c.l.b16 %v1073
    %v3769 = vunpack.c.l.b16 %v1074
    %v3770 = vunpack.c.l.b16 %v1075
    %v3771 = vunpack.c.l.b16 %v1076
    %v3772 = vunpack.c.l.b16 %v1077
    %v3773 = vunpack.c.l.b16 %v1078
    %v3774 = vunpack.c.l.b16 %v1079
    %v3775 = vunpack.c.l.b16 %v1080
    %v3776 = vunpack.c.l.b16 %v1081
    %v3777 = vunpack.c.l.b16 %v1082
    %v3778 = vunpack.c.l.b16 %v1083
    %v3779 = vunpack.c.l.b16 %v1084
    %v3780 = vunpack.c.l.b16 %v1085
    %v3781 = vunpack.c.l.b16 %v1086
    %v3782 = vunpack.c.l.b16 %v1087
    %v3783 = vunpack.c.l.b16 %v1088
    %v3784 = vunpack.c.l.b16 %v1089
    %v3785 = vunpack.c.l.b16 %v1090
    %v3786 = vunpack.c.l.b16 %v1091
    %v3787 = vunpack.c.l.b16 %v1092
    %v3788 = vunpack.c.l.b16 %v1093
    %v3789 = vunpack.c.l.b16 %v1094
    %v3790 = vunpack.c.l.b16 %v1095
    %v3791 = vunpack.c.l.b16 %v1096
    %v3792 = vunpack.c.l.b16 %v1097
    %v3793 = vunpack.c.l.b16 %v1098
    %v3794 = vunpack.c.l.b16 %v1099
    %v3795 = vunpack.c.l.b16 %v1100
    %v3796 = vunpack.c.l.b16 %v1101
    %v3797 = vunpack.c.l.b16 %v1102
    %v3798 = vunpack.c.l.b16 %v1103
    %v3799 = vunpack.c.l.b16 %v1104
    %v3800 = vunpack.c.l.b16 %v1105
    %v3801 = vunpack.c.l.b16 %v1106
    %v3802 = vunpack.c.l.b16 %v1107
    %v3803 = vunpack.c.l.b16 %v1108
    %v3804 = vunpack.c.l.b16 %v1109
    %v3805 = vunpack.c.l.b16 %v1110
    %v3806 = vunpack.c.l.b16 %v1111
    %v3807 = vunpack.c.l.b16 %v1112
    %v3808 = vunpack.c.l.b16 %v1113
    %v3809 = vunpack.c.l.b16 %v1114
    %v3810 = vunpack.c.l.b16 %v1115
    %v3811 = vunpack.c.l.b16 %v1116
    %v3812 = vunpack.c.l.b16 %v1117
    %v3813 = vunpack.c.l.b16 %v1118
    %v3814 = vunpack.c.l.b16 %v1119
    %v3815 = vunpack.c.l.b16 %v1120
    %v3816 = vunpack.c.l.b16 %v1121
    %v3817 = vunpack.c.l.b16 %v1122
    %v3818 = vunpack.c.l.b16 %v1123
    %v3819 = vunpack.c.l.b16 %v1124
    %v3820 = vunpack.c.l.b16 %v1125
    %v3821 = vunpack.c.l.b16 %v1126
    %v3822 = vunpack.c.l.b16 %v1127
    %v3823 = vunpack.c.l.b16 %v1128
    %v3824 = vunpack.c.l.b16 %v1129
    %v3825 = vunpack.c.l.b16 %v1130
    %v3826 = vunpack.c.l.b16 %v1131
    %v3827 = vunpack.c.l.b16 %v1132
    %v3828 = vunpack.c.l.b16 %v1133
    %v3829 = vunpack.c.l.b16 %v1134
    %v3830 = vunpack.c.l.b16 %v1135
    %v3831 = vunpack.c.l.b16 %v1136
    %v3832 = vunpack.c.l.b16 %v1137
    %v3833 = vunpack.c.l.b16 %v1138
    %v3834 = vunpack.c.l.b16 %v1139
    %v3835 = vunpack.c.l.b16 %v1140
    %v3836 = vunpack.c.l.b16 %v1141
    %v3837 = vunpack.c.l.b16 %v1142
    %v3838 = vunpack.c.l.b16 %v1143
    %v3839 = vunpack.c.l.b16 %v1144
    %v3840 = vunpack.c.l.b16 %v1145
    %v3841 = vunpack.c.l.b16 %v1146
    %v3842 = vunpack.c.l.b16 %v1147
    %v3843 = vunpack.c.l.b16 %v1148
    %v3844 = vunpack.c.l.b16 %v1149
    %v3845 = vunpack.c.l.b16 %v1150
    %v3846 = vunpack.c.l.b16 %v1151
    %v3847 = vunpack.c.l.b16 %v1152
    %v3848 = vunpack.c.l.b16 %v1153
    %v3849 = vunpack.c.l.b16 %v1154
    %v3850 = vunpack.c.l.b16 %v1155
    %v3851 = vunpack.c.l.b16 %v1156
    %v3852 = vunpack.c.l.b16 %v1157
    %v3853 = vunpack.c.l.b16 %v1158
    %v3854 = vunpack.c.l.b16 %v1159
    %v3855 = vunpack.c.l.b16 %v1160
    %v3856 = vunpack.c.l.b16 %v1161
    %v3857 = vunpack.c.l.b16 %v1162
    %v3858 = vunpack.c.l.b16 %v1163
    %v3859 = vunpack.c.l.b16 %v1164
    %v3860 = vunpack.c.l.b16 %v1165
    %v3861 = vunpack.c.l.b16 %v1166
    %v3862 = vunpack.c.l.b16 %v1167
    %v3863 = vunpack.c.l.b16 %v1168
    %v3864 = vunpack.c.l.b16 %v1169
    %v3865 = vunpack.c.l.b16 %v1170
    %v3866 = vunpack.c.l.b16 %v1171
    %v3867 = vunpack.c.l.b16 %v1172
    %v3868 = vunpack.c.l.b16 %v1173
    %v3869 = vunpack.c.l.b16 %v1174
    %v3870 = vunpack.c.l.b16 %v1175
    %v3871 = vunpack.c.l.b16 %v1176
    %v3872 = vunpack.c.l.b16 %v1177
    %v3873 = vunpack.c.l.b16 %v1178
    %v3874 = vunpack.c.l.b16 %v1179
    %v3875 = vunpack.c.l.b16 %v1180
    %v3876 = vunpack.c.l.b16 %v1181
    %v3877 = vunpack.c.l.b16 %v1182
    %v3878 = vunpack.c.l.b16 %v1183
    %v3879 = vunpack.c.l.b16 %v1184
    %v3880 = vunpack.c.l.b16 %v1185
    %v3881 = vunpack.c.l.b16 %v1186
    %v3882 = vunpack.c.l.b16 %v1187
    %v3883 = vunpack.c.l.b16 %v1188
    %v3884 = vunpack.c.l.b16 %v1189
    %v3885 = vunpack.c.l.b16 %v1190
    %v3886 = vunpack.c.l.b16 %v1191
    %v3887 = vunpack.c.l.b16 %v1192
    %v3888 = vunpack.c.l.b16 %v1193
    %v3889 = vunpack.c.l.b16 %v1194
    %v3890 = vunpack.c.l.b16 %v1195
    %v3891 = vunpack.c.l.b16 %v1196
    %v3892 = vunpack.c.l.b16 %v1197
    %v3893 = vunpack.c.l.b16 %v1198
    %v3894 = vunpack.c.l.b16 %v1199
    %v3895 = vunpack.c.l.b16 %v1200
    %v3896 = vunpack.c.l.b16 %v1201
    %v3897 = vunpack.c.l.b16 %v1202
    %v3898 = vunpack.c.l.b16 %v1203
    %v3899 = vunpack.c.l.b16 %v1204
    %v3900 = vunpack.c.l.b16 %v1205
    %v3901 = vunpack.c.l.b16 %v1206
    %v3902 = vpack.c.b16 %v2879, %v2878
    %v3903 = vpack.c.b16 %v2881, %v2880
    %v3904 = vpack.c.b16 %v2883, %v2882
    %v3905 = vpack.c.b16 %v2885, %v2884
    %v3906 = vpack.c.b16 %v2887, %v2886
    %v3907 = vpack.c.b16 %v2889, %v2888
    %v3908 = vpack.c.b16 %v2891, %v2890
    %v3909 = vpack.c.b16 %v2893, %v2892
    %v3910 = vpack.c.b16 %v2895, %v2894
    %v3911 = vpack.c.b16 %v2897, %v2896
    %v3912 = vpack.c.b16 %v2899, %v2898
    %v3913 = vpack.c.b16 %v2901, %v2900
    %v3914 = vpack.c.b16 %v2903, %v2902
    %v3915 = vpack.c.b16 %v2905, %v2904
    %v3916 = vpack.c.b16 %v2907, %v2906
    %v3917 = vpack.c.b16 %v2909, %v2908
    %v3918 = vpack.c.b16 %v2911, %v2910
    %v3919 = vpack.c.b16 %v2913, %v2912
    %v3920 = vpack.c.b16 %v2915, %v2914
    %v3921 = vpack.c.b16 %v2917, %v2916
    %v3922 = vpack.c.b16 %v2919, %v2918
    %v3923 = vpack.c.b16 %v2921, %v2920
    %v3924 = vpack.c.b16 %v2923, %v2922
    %v3925 = vpack.c.b16 %v2925, %v2924
    %v3926 = vpack.c.b16 %v2927, %v2926
    %v3927 = vpack.c.b16 %v2929, %v2928
    %v3928 = vpack.c.b16 %v2931, %v2930
    %v3929 = vpack.c.b16 %v2933, %v2932
    %v3930 = vpack.c.b16 %v2935, %v2934
    %v3931 = vpack.c.b16 %v2937, %v2936
    %v3932 = vpack.c.b16 %v2939, %v2938
    %v3933 = vpack.c.b16 %v2941, %v2940
    %v3934 = vpack.c.b16 %v2943, %v2942
    %v3935 = vpack.c.b16 %v2945, %v2944
    %v3936 = vpack.c.b16 %v2947, %v2946
    %v3937 = vpack.c.b16 %v2949, %v2948
    %v3938 = vpack.c.b16 %v2951, %v2950
    %v3939 = vpack.c.b16 %v2953, %v2952
    %v3940 = vpack.c.b16 %v2955, %v2954
    %v3941 = vpack.c.b16 %v2957, %v2956
    %v3942 = vpack.c.b16 %v2959, %v2958
    %v3943 = vpack.c.b16 %v2961, %v2960
    %v3944 = vpack.c.b16 %v2963, %v2962
    %v3945 = vpack.c.b16 %v2965, %v2964
    %v3946 = vpack.c.b16 %v2967, %v2966
    %v3947 = vpack.c.b16 %v2969, %v2968
    %v3948 = vpack.c.b16 %v2971, %v2970
    %v3949 = vpack.c.b16 %v2973, %v2972
    %v3950 = vpack.c.b16 %v2975, %v2974
    %v3951 = vpack.c.b16 %v2977, %v2976
    %v3952 = vpack.c.b16 %v2979, %v2978
    %v3953 = vpack.c.b16 %v2981, %v2980
    %v3954 = vpack.c.b16 %v2983, %v2982
    %v3955 = vpack.c.b16 %v2985, %v2984
    %v3956 = vpack.c.b16 %v2987, %v2986
    %v3957 = vpack.c.b16 %v2989, %v2988
    %v3958 = vpack.c.b16 %v2991, %v2990
    %v3959 = vpack.c.b16 %v2993, %v2992
    %v3960 = vpack.c.b16 %v2995, %v2994
    %v3961 = vpack.c.b16 %v2997, %v2996
    %v3962 = vpack.c.b16 %v2999, %v2998
    %v3963 = vpack.c.b16 %v3001, %v3000
    %v3964 = vpack.c.b16 %v3003, %v3002
    %v3965 = vpack.c.b16 %v3005, %v3004
    %v3966 = vpack.c.b16 %v3007, %v3006
    %v3967 = vpack.c.b16 %v3009, %v3008
    %v3968 = vpack.c.b16 %v3011, %v3010
    %v3969 = vpack.c.b16 %v3013, %v3012
    %v3970 = vpack.c.b16 %v3015, %v3014
    %v3971 = vpack.c.b16 %v3017, %v3016
    %v3972 = vpack.c.b16 %v3019, %v3018
    %v3973 = vpack.c.b16 %v3021, %v3020
    %v3974 = vpack.c.b16 %v3023, %v3022
    %v3975 = vpack.c.b16 %v3025, %v3024
    %v3976 = vpack.c.b16 %v3027, %v3026
    %v3977 = vpack.c.b16 %v3029, %v3028
    %v3978 = vpack.c.b16 %v3031, %v3030
    %v3979 = vpack.c.b16 %v3033, %v3032
    %v3980 = vpack.c.b16 %v3035, %v3034
    %v3981 = vpack.c.b16 %v3037, %v3036
    %v3982 = vpack.c.b16 %v3039, %v3038
    %v3983 = vpack.c.b16 %v3041, %v3040
    %v3984 = vpack.c.b16 %v3043, %v3042
    %v3985 = vpack.c.b16 %v3045, %v3044
    %v3986 = vpack.c.b16 %v3047, %v3046
    %v3987 = vpack.c.b16 %v3049, %v3048
    %v3988 = vpack.c.b16 %v3051, %v3050
    %v3989 = vpack.c.b16 %v3053, %v3052
    %v3990 = vpack.c.b16 %v3055, %v3054
    %v3991 = vpack.c.b16 %v3057, %v3056
    %v3992 = vpack.c.b16 %v3059, %v3058
    %v3993 = vpack.c.b16 %v3061, %v3060
    %v3994 = vpack.c.b16 %v3063, %v3062
    %v3995 = vpack.c.b16 %v3065, %v3064
    %v3996 = vpack.c.b16 %v3067, %v3066
    %v3997 = vpack.c.b16 %v3069, %v3068
    %v3998 = vpack.c.b16 %v3071, %v3070
    %v3999 = vpack.c.b16 %v3073, %v3072
    %v4000 = vpack.c.b16 %v3075, %v3074
    %v4001 = vpack.c.b16 %v3077, %v3076
    %v4002 = vpack.c.b16 %v3079, %v3078
    %v4003 = vpack.c.b16 %v3081, %v3080
    %v4004 = vpack.c.b16 %v3083, %v3082
    %v4005 = vpack.c.b16 %v3085, %v3084
    %v4006 = vpack.c.b16 %v3087, %v3086
    %v4007 = vpack.c.b16 %v3089, %v3088
    %v4008 = vpack.c.b16 %v3091, %v3090
    %v4009 = vpack.c.b16 %v3093, %v3092
    %v4010 = vpack.c.b16 %v3095, %v3094
    %v4011 = vpack.c.b16 %v3097, %v3096
    %v4012 = vpack.c.b16 %v3099, %v3098
    %v4013 = vpack.c.b16 %v3101, %v3100
    %v4014 = vpack.c.b16 %v3103, %v3102
    %v4015 = vpack.c.b16 %v3105, %v3104
    %v4016 = vpack.c.b16 %v3107, %v3106
    %v4017 = vpack.c.b16 %v3109, %v3108
    %v4018 = vpack.c.b16 %v3111, %v3110
    %v4019 = vpack.c.b16 %v3113, %v3112
    %v4020 = vpack.c.b16 %v3115, %v3114
    %v4021 = vpack.c.b16 %v3117, %v3116
    %v4022 = vpack.c.b16 %v3119, %v3118
    %v4023 = vpack.c.b16 %v3121, %v3120
    %v4024 = vpack.c.b16 %v3123, %v3122
    %v4025 = vpack.c.b16 %v3125, %v3124
    %v4026 = vpack.c.b16 %v3127, %v3126
    %v4027 = vpack.c.b16 %v3129, %v3128
    %v4028 = vpack.c.b16 %v3131, %v3130
    %v4029 = vpack.c.b16 %v3133, %v3132
    %v4030 = vpack.c.b16 %v3135, %v3134
    %v4031 = vpack.c.b16 %v3137, %v3136
    %v4032 = vpack.c.b16 %v3139, %v3138
    %v4033 = vpack.c.b16 %v3141, %v3140
    %v4034 = vpack.c.b16 %v3143, %v3142
    %v4035 = vpack.c.b16 %v3145, %v3144
    %v4036 = vpack.c.b16 %v3147, %v3146
    %v4037 = vpack.c.b16 %v3149, %v3148
    %v4038 = vpack.c.b16 %v3151, %v3150
    %v4039 = vpack.c.b16 %v3153, %v3152
    %v4040 = vpack.c.b16 %v3155, %v3154
    %v4041 = vpack.c.b16 %v3157, %v3156
    %v4042 = vpack.c.b16 %v3159, %v3158
    %v4043 = vpack.c.b16 %v3161, %v3160
    %v4044 = vpack.c.b16 %v3163, %v3162
    %v4045 = vpack.c.b16 %v3165, %v3164
    %v4046 = vpack.c.b16 %v3167, %v3166
    %v4047 = vpack.c.b16 %v3169, %v3168
    %v4048 = vpack.c.b16 %v3171, %v3170
    %v4049 = vpack.c.b16 %v3173, %v3172
    %v4050 = vpack.c.b16 %v3175, %v3174
    %v4051 = vpack.c.b16 %v3177, %v3176
    %v4052 = vpack.c.b16 %v3179, %v3178
    %v4053 = vpack.c.b16 %v3181, %v3180
    %v4054 = vpack.c.b16 %v3183, %v3182
    %v4055 = vpack.c.b16 %v3185, %v3184
    %v4056 = vpack.c.b16 %v3187, %v3186
    %v4057 = vpack.c.b16 %v3189, %v3188
    %v4058 = vpack.c.b16 %v3191, %v3190
    %v4059 = vpack.c.b16 %v3193, %v3192
    %v4060 = vpack.c.b16 %v3195, %v3194
    %v4061 = vpack.c.b16 %v3197, %v3196
    %v4062 = vpack.c.b16 %v3199, %v3198
    %v4063 = vpack.c.b16 %v3201, %v3200
    %v4064 = vpack.c.b16 %v3203, %v3202
    %v4065 = vpack.c.b16 %v3205, %v3204
    %v4066 = vpack.c.b16 %v3207, %v3206
    %v4067 = vpack.c.b16 %v3209, %v3208
    %v4068 = vpack.c.b16 %v3211, %v3210
    %v4069 = vpack.c.b16 %v3213, %v3212
    %v4070 = vpack.c.b16 %v3215, %v3214
    %v4071 = vpack.c.b16 %v3217, %v3216
    %v4072 = vpack.c.b16 %v3219, %v3218
    %v4073 = vpack.c.b16 %v3221, %v3220
    %v4074 = vpack.c.b16 %v3223, %v3222
    %v4075 = vpack.c.b16 %v3225, %v3224
    %v4076 = vpack.c.b16 %v3227, %v3226
    %v4077 = vpack.c.b16 %v3229, %v3228
    %v4078 = vpack.c.b16 %v3231, %v3230
    %v4079 = vpack.c.b16 %v3233, %v3232
    %v4080 = vpack.c.b16 %v3235, %v3234
    %v4081 = vpack.c.b16 %v3237, %v3236
    %v4082 = vpack.c.b16 %v3239, %v3238
    %v4083 = vpack.c.b16 %v3241, %v3240
    %v4084 = vpack.c.b16 %v3243, %v3242
    %v4085 = vpack.c.b16 %v3245, %v3244
    %v4086 = vpack.c.b16 %v3247, %v3246
    %v4087 = vpack.c.b16 %v3249, %v3248
    %v4088 = vpack.c.b16 %v3251, %v3250
    %v4089 = vpack.c.b16 %v3253, %v3252
    %v4090 = vpack.c.b16 %v3255, %v3254
    %v4091 = vpack.c.b16 %v3257, %v3256
    %v4092 = vpack.c.b16 %v3259, %v3258
    %v4093 = vpack.c.b16 %v3261, %v3260
    %v4094 = vpack.c.b16 %v3263, %v3262
    %v4095 = vpack.c.b16 %v3265, %v3264
    %v4096 = vpack.c.b16 %v3267, %v3266
    %v4097 = vpack.c.b16 %v3269, %v3268
    %v4098 = vpack.c.b16 %v3271, %v3270
    %v4099 = vpack.c.b16 %v3273, %v3272
    %v4100 = vpack.c.b16 %v3275, %v3274
    %v4101 = vpack.c.b16 %v3277, %v3276
    %v4102 = vpack.c.b16 %v3279, %v3278
    %v4103 = vpack.c.b16 %v3281, %v3280
    %v4104 = vpack.c.b16 %v3283, %v3282
    %v4105 = vpack.c.b16 %v3285, %v3284
    %v4106 = vpack.c.b16 %v3287, %v3286
    %v4107 = vpack.c.b16 %v3289, %v3288
    %v4108 = vpack.c.b16 %v3291, %v3290
    %v4109 = vpack.c.b16 %v3293, %v3292
    %v4110 = vpack.c.b16 %v3295, %v3294
    %v4111 = vpack.c.b16 %v3297, %v3296
    %v4112 = vpack.c.b16 %v3299, %v3298
    %v4113 = vpack.c.b16 %v3301, %v3300
    %v4114 = vpack.c.b16 %v3303, %v3302
    %v4115 = vpack.c.b16 %v3305, %v3304
    %v4116 = vpack.c.b16 %v3307, %v3306
    %v4117 = vpack.c.b16 %v3309, %v3308
    %v4118 = vpack.c.b16 %v3311, %v3310
    %v4119 = vpack.c.b16 %v3313, %v3312
    %v4120 = vpack.c.b16 %v3315, %v3314
    %v4121 = vpack.c.b16 %v3317, %v3316
    %v4122 = vpack.c.b16 %v3319, %v3318
    %v4123 = vpack.c.b16 %v3321, %v3320
    %v4124 = vpack.c.b16 %v3323, %v3322
    %v4125 = vpack.c.b16 %v3325, %v3324
    %v4126 = vpack.c.b16 %v3327, %v3326
    %v4127 = vpack.c.b16 %v3329, %v3328
    %v4128 = vpack.c.b16 %v3331, %v3330
    %v4129 = vpack.c.b16 %v3333, %v3332
    %v4130 = vpack.c.b16 %v3335, %v3334
    %v4131 = vpack.c.b16 %v3337, %v3336
    %v4132 = vpack.c.b16 %v3339, %v3338
    %v4133 = vpack.c.b16 %v3341, %v3340
    %v4134 = vpack.c.b16 %v3343, %v3342
    %v4135 = vpack.c.b16 %v3345, %v3344
    %v4136 = vpack.c.b16 %v3347, %v3346
    %v4137 = vpack.c.b16 %v3349, %v3348
    %v4138 = vpack.c.b16 %v3351, %v3350
    %v4139 = vpack.c.b16 %v3353, %v3352
    %v4140 = vpack.c.b16 %v3355, %v3354
    %v4141 = vpack.c.b16 %v3357, %v3356
    %v4142 = vpack.c.b16 %v3359, %v3358
    %v4143 = vpack.c.b16 %v3361, %v3360
    %v4144 = vpack.c.b16 %v3363, %v3362
    %v4145 = vpack.c.b16 %v3365, %v3364
    %v4146 = vpack.c.b16 %v3367, %v3366
    %v4147 = vpack.c.b16 %v3369, %v3368
    %v4148 = vpack.c.b16 %v3371, %v3370
    %v4149 = vpack.c.b16 %v3373, %v3372
    %v4150 = vpack.c.b16 %v3375, %v3374
    %v4151 = vpack.c.b16 %v3377, %v3376
    %v4152 = vpack.c.b16 %v3379, %v3378
    %v4153 = vpack.c.b16 %v3381, %v3380
    %v4154 = vpack.c.b16 %v3383, %v3382
    %v4155 = vpack.c.b16 %v3385, %v3384
    %v4156 = vpack.c.b16 %v3387, %v3386
    %v4157 = vpack.c.b16 %v3389, %v3388
    %v4158 = vpack.c.b16 %v3391, %v3390
    %v4159 = vpack.c.b16 %v3393, %v3392
    %v4160 = vpack.c.b16 %v3395, %v3394
    %v4161 = vpack.c.b16 %v3397, %v3396
    %v4162 = vpack.c.b16 %v3399, %v3398
    %v4163 = vpack.c.b16 %v3401, %v3400
    %v4164 = vpack.c.b16 %v3403, %v3402
    %v4165 = vpack.c.b16 %v3405, %v3404
    %v4166 = vpack.c.b16 %v3407, %v3406
    %v4167 = vpack.c.b16 %v3409, %v3408
    %v4168 = vpack.c.b16 %v3411, %v3410
    %v4169 = vpack.c.b16 %v3413, %v3412
    %v4170 = vpack.c.b16 %v3415, %v3414
    %v4171 = vpack.c.b16 %v3417, %v3416
    %v4172 = vpack.c.b16 %v3419, %v3418
    %v4173 = vpack.c.b16 %v3421, %v3420
    %v4174 = vpack.c.b16 %v3423, %v3422
    %v4175 = vpack.c.b16 %v3425, %v3424
    %v4176 = vpack.c.b16 %v3427, %v3426
    %v4177 = vpack.c.b16 %v3429, %v3428
    %v4178 = vpack.c.b16 %v3431, %v3430
    %v4179 = vpack.c.b16 %v3433, %v3432
    %v4180 = vpack.c.b16 %v3435, %v3434
    %v4181 = vpack.c.b16 %v3437, %v3436
    %v4182 = vpack.c.b16 %v3439, %v3438
    %v4183 = vpack.c.b16 %v3441, %v3440
    %v4184 = vpack.c.b16 %v3443, %v3442
    %v4185 = vpack.c.b16 %v3445, %v3444
    %v4186 = vpack.c.b16 %v3447, %v3446
    %v4187 = vpack.c.b16 %v3449, %v3448
    %v4188 = vpack.c.b16 %v3451, %v3450
    %v4189 = vpack.c.b16 %v3453, %v3452
    %v4190 = vpack.c.b16 %v3455, %v3454
    %v4191 = vpack.c.b16 %v3457, %v3456
    %v4192 = vpack.c.b16 %v3459, %v3458
    %v4193 = vpack.c.b16 %v3461, %v3460
    %v4194 = vpack.c.b16 %v3463, %v3462
    %v4195 = vpack.c.b16 %v3465, %v3464
    %v4196 = vpack.c.b16 %v3467, %v3466
    %v4197 = vpack.c.b16 %v3469, %v3468
    %v4198 = vpack.c.b16 %v3471, %v3470
    %v4199 = vpack.c.b16 %v3473, %v3472
    %v4200 = vpack.c.b16 %v3475, %v3474
    %v4201 = vpack.c.b16 %v3477, %v3476
    %v4202 = vpack.c.b16 %v3479, %v3478
    %v4203 = vpack.c.b16 %v3481, %v3480
    %v4204 = vpack.c.b16 %v3483, %v3482
    %v4205 = vpack.c.b16 %v3485, %v3484
    %v4206 = vpack.c.b16 %v3487, %v3486
    %v4207 = vpack.c.b16 %v3489, %v3488
    %v4208 = vpack.c.b16 %v3491, %v3490
    %v4209 = vpack.c.b16 %v3493, %v3492
    %v4210 = vpack.c.b16 %v3495, %v3494
    %v4211 = vpack.c.b16 %v3497, %v3496
    %v4212 = vpack.c.b16 %v3499, %v3498
    %v4213 = vpack.c.b16 %v3501, %v3500
    %v4214 = vpack.c.b16 %v3503, %v3502
    %v4215 = vpack.c.b16 %v3505, %v3504
    %v4216 = vpack.c.b16 %v3507, %v3506
    %v4217 = vpack.c.b16 %v3509, %v3508
    %v4218 = vpack.c.b16 %v3511, %v3510
    %v4219 = vpack.c.b16 %v3513, %v3512
    %v4220 = vpack.c.b16 %v3515, %v3514
    %v4221 = vpack.c.b16 %v3517, %v3516
    %v4222 = vpack.c.b16 %v3519, %v3518
    %v4223 = vpack.c.b16 %v3521, %v3520
    %v4224 = vpack.c.b16 %v3523, %v3522
    %v4225 = vpack.c.b16 %v3525, %v3524
    %v4226 = vpack.c.b16 %v3527, %v3526
    %v4227 = vpack.c.b16 %v3529, %v3528
    %v4228 = vpack.c.b16 %v3531, %v3530
    %v4229 = vpack.c.b16 %v3533, %v3532
    %v4230 = vpack.c.b16 %v3535, %v3534
    %v4231 = vpack.c.b16 %v3537, %v3536
    %v4232 = vpack.c.b16 %v3539, %v3538
    %v4233 = vpack.c.b16 %v3541, %v3540
    %v4234 = vpack.c.b16 %v3543, %v3542
    %v4235 = vpack.c.b16 %v3545, %v3544
    %v4236 = vpack.c.b16 %v3547, %v3546
    %v4237 = vpack.c.b16 %v3549, %v3548
    %v4238 = vpack.c.b16 %v3551, %v3550
    %v4239 = vpack.c.b16 %v3553, %v3552
    %v4240 = vpack.c.b16 %v3555, %v3554
    %v4241 = vpack.c.b16 %v3557, %v3556
    %v4242 = vpack.c.b16 %v3559, %v3558
    %v4243 = vpack.c.b16 %v3561, %v3560
    %v4244 = vpack.c.b16 %v3563, %v3562
    %v4245 = vpack.c.b16 %v3565, %v3564
    %v4246 = vpack.c.b16 %v3567, %v3566
    %v4247 = vpack.c.b16 %v3569, %v3568
    %v4248 = vpack.c.b16 %v3571, %v3570
    %v4249 = vpack.c.b16 %v3573, %v3572
    %v4250 = vpack.c.b16 %v3575, %v3574
    %v4251 = vpack.c.b16 %v3577, %v3576
    %v4252 = vpack.c.b16 %v3579, %v3578
    %v4253 = vpack.c.b16 %v3581, %v3580
    %v4254 = vpack.c.b16 %v3583, %v3582
    %v4255 = vpack.c.b16 %v3585, %v3584
    %v4256 = vpack.c.b16 %v3587, %v3586
    %v4257 = vpack.c.b16 %v3589, %v3588
    %v4258 = vpack.c.b16 %v3591, %v3590
    %v4259 = vpack.c.b16 %v3593, %v3592
    %v4260 = vpack.c.b16 %v3595, %v3594
    %v4261 = vpack.c.b16 %v3597, %v3596
    %v4262 = vpack.c.b16 %v3599, %v3598
    %v4263 = vpack.c.b16 %v3601, %v3600
    %v4264 = vpack.c.b16 %v3603, %v3602
    %v4265 = vpack.c.b16 %v3605, %v3604
    %v4266 = vpack.c.b16 %v3607, %v3606
    %v4267 = vpack.c.b16 %v3609, %v3608
    %v4268 = vpack.c.b16 %v3611, %v3610
    %v4269 = vpack.c.b16 %v3613, %v3612
    %v4270 = vpack.c.b16 %v3615, %v3614
    %v4271 = vpack.c.b16 %v3617, %v3616
    %v4272 = vpack.c.b16 %v3619, %v3618
    %v4273 = vpack.c.b16 %v3621, %v3620
    %v4274 = vpack.c.b16 %v3623, %v3622
    %v4275 = vpack.c.b16 %v3625, %v3624
    %v4276 = vpack.c.b16 %v3627, %v3626
    %v4277 = vpack.c.b16 %v3629, %v3628
    %v4278 = vpack.c.b16 %v3631, %v3630
    %v4279 = vpack.c.b16 %v3633, %v3632
    %v4280 = vpack.c.b16 %v3635, %v3634
    %v4281 = vpack.c.b16 %v3637, %v3636
    %v4282 = vpack.c.b16 %v3639, %v3638
    %v4283 = vpack.c.b16 %v3641, %v3640
    %v4284 = vpack.c.b16 %v3643, %v3642
    %v4285 = vpack.c.b16 %v3645, %v3644
    %v4286 = vpack.c.b16 %v3647, %v3646
    %v4287 = vpack.c.b16 %v3649, %v3648
    %v4288 = vpack.c.b16 %v3651, %v3650
    %v4289 = vpack.c.b16 %v3653, %v3652
    %v4290 = vpack.c.b16 %v3655, %v3654
    %v4291 = vpack.c.b16 %v3657, %v3656
    %v4292 = vpack.c.b16 %v3659, %v3658
    %v4293 = vpack.c.b16 %v3661, %v3660
    %v4294 = vpack.c.b16 %v3663, %v3662
    %v4295 = vpack.c.b16 %v3665, %v3664
    %v4296 = vpack.c.b16 %v3667, %v3666
    %v4297 = vpack.c.b16 %v3669, %v3668
    %v4298 = vpack.c.b16 %v3671, %v3670
    %v4299 = vpack.c.b16 %v3673, %v3672
    %v4300 = vpack.c.b16 %v3675, %v3674
    %v4301 = vpack.c.b16 %v3677, %v3676
    %v4302 = vpack.c.b16 %v3679, %v3678
    %v4303 = vpack.c.b16 %v3681, %v3680
    %v4304 = vpack.c.b16 %v3683, %v3682
    %v4305 = vpack.c.b16 %v3685, %v3684
    %v4306 = vpack.c.b16 %v3687, %v3686
    %v4307 = vpack.c.b16 %v3689, %v3688
    %v4308 = vpack.c.b16 %v3691, %v3690
    %v4309 = vpack.c.b16 %v3693, %v3692
    %v4310 = vpack.c.b16 %v3695, %v3694
    %v4311 = vpack.c.b16 %v3697, %v3696
    %v4312 = vpack.c.b16 %v3699, %v3698
    %v4313 = vpack.c.b16 %v3701, %v3700
    %v4314 = vpack.c.b16 %v3703, %v3702
    %v4315 = vpack.c.b16 %v3705, %v3704
    %v4316 = vpack.c.b16 %v3707, %v3706
    %v4317 = vpack.c.b16 %v3709, %v3708
    %v4318 = vpack.c.b16 %v3711, %v3710
    %v4319 = vpack.c.b16 %v3713, %v3712
    %v4320 = vpack.c.b16 %v3715, %v3714
    %v4321 = vpack.c.b16 %v3717, %v3716
    %v4322 = vpack.c.b16 %v3719, %v3718
    %v4323 = vpack.c.b16 %v3721, %v3720
    %v4324 = vpack.c.b16 %v3723, %v3722
    %v4325 = vpack.c.b16 %v3725, %v3724
    %v4326 = vpack.c.b16 %v3727, %v3726
    %v4327 = vpack.c.b16 %v3729, %v3728
    %v4328 = vpack.c.b16 %v3731, %v3730
    %v4329 = vpack.c.b16 %v3733, %v3732
    %v4330 = vpack.c.b16 %v3735, %v3734
    %v4331 = vpack.c.b16 %v3737, %v3736
    %v4332 = vpack.c.b16 %v3739, %v3738
    %v4333 = vpack.c.b16 %v3741, %v3740
    %v4334 = vpack.c.b16 %v3743, %v3742
    %v4335 = vpack.c.b16 %v3745, %v3744
    %v4336 = vpack.c.b16 %v3747, %v3746
    %v4337 = vpack.c.b16 %v3749, %v3748
    %v4338 = vpack.c.b16 %v3751, %v3750
    %v4339 = vpack.c.b16 %v3753, %v3752
    %v4340 = vpack.c.b16 %v3755, %v3754
    %v4341 = vpack.c.b16 %v3757, %v3756
    %v4342 = vpack.c.b16 %v3759, %v3758
    %v4343 = vpack.c.b16 %v3761, %v3760
    %v4344 = vpack.c.b16 %v3763, %v3762
    %v4345 = vpack.c.b16 %v3765, %v3764
    %v4346 = vpack.c.b16 %v3767, %v3766
    %v4347 = vpack.c.b16 %v3769, %v3768
    %v4348 = vpack.c.b16 %v3771, %v3770
    %v4349 = vpack.c.b16 %v3773, %v3772
    %v4350 = vpack.c.b16 %v3775, %v3774
    %v4351 = vpack.c.b16 %v3777, %v3776
    %v4352 = vpack.c.b16 %v3779, %v3778
    %v4353 = vpack.c.b16 %v3781, %v3780
    %v4354 = vpack.c.b16 %v3783, %v3782
    %v4355 = vpack.c.b16 %v3785, %v3784
    %v4356 = vpack.c.b16 %v3787, %v3786
    %v4357 = vpack.c.b16 %v3789, %v3788
    %v4358 = vpack.c.b16 %v3791, %v3790
    %v4359 = vpack.c.b16 %v3793, %v3792
    %v4360 = vpack.c.b16 %v3795, %v3794
    %v4361 = vpack.c.b16 %v3797, %v3796
    %v4362 = vpack.c.b16 %v3799, %v3798
    %v4363 = vpack.c.b16 %v3801, %v3800
    %v4364 = vpack.c.b16 %v3803, %v3802
    %v4365 = vpack.c.b16 %v3805, %v3804
    %v4366 = vpack.c.b16 %v3807, %v3806
    %v4367 = vpack.c.b16 %v3809, %v3808
    %v4368 = vpack.c.b16 %v3811, %v3810
    %v4369 = vpack.c.b16 %v3813, %v3812
    %v4370 = vpack.c.b16 %v3815, %v3814
    %v4371 = vpack.c.b16 %v3817, %v3816
    %v4372 = vpack.c.b16 %v3819, %v3818
    %v4373 = vpack.c.b16 %v3821, %v3820
    %v4374 = vpack.c.b16 %v3823, %v3822
    %v4375 = vpack.c.b16 %v3825, %v3824
    %v4376 = vpack.c.b16 %v3827, %v3826
    %v4377 = vpack.c.b16 %v3829, %v3828
    %v4378 = vpack.c.b16 %v3831, %v3830
    %v4379 = vpack.c.b16 %v3833, %v3832
    %v4380 = vpack.c.b16 %v3835, %v3834
    %v4381 = vpack.c.b16 %v3837, %v3836
    %v4382 = vpack.c.b16 %v3839, %v3838
    %v4383 = vpack.c.b16 %v3841, %v3840
    %v4384 = vpack.c.b16 %v3843, %v3842
    %v4385 = vpack.c.b16 %v3845, %v3844
    %v4386 = vpack.c.b16 %v3847, %v3846
    %v4387 = vpack.c.b16 %v3849, %v3848
    %v4388 = vpack.c.b16 %v3851, %v3850
    %v4389 = vpack.c.b16 %v3853, %v3852
    %v4390 = vpack.c.b16 %v3855, %v3854
    %v4391 = vpack.c.b16 %v3857, %v3856
    %v4392 = vpack.c.b16 %v3859, %v3858
    %v4393 = vpack.c.b16 %v3861, %v3860
    %v4394 = vpack.c.b16 %v3863, %v3862
    %v4395 = vpack.c.b16 %v3865, %v3864
    %v4396 = vpack.c.b16 %v3867, %v3866
    %v4397 = vpack.c.b16 %v3869, %v3868
    %v4398 = vpack.c.b16 %v3871, %v3870
    %v4399 = vpack.c.b16 %v3873, %v3872
    %v4400 = vpack.c.b16 %v3875, %v3874
    %v4401 = vpack.c.b16 %v3877, %v3876
    %v4402 = vpack.c.b16 %v3879, %v3878
    %v4403 = vpack.c.b16 %v3881, %v3880
    %v4404 = vpack.c.b16 %v3883, %v3882
    %v4405 = vpack.c.b16 %v3885, %v3884
    %v4406 = vpack.c.b16 %v3887, %v3886
    %v4407 = vpack.c.b16 %v3889, %v3888
    %v4408 = vpack.c.b16 %v3891, %v3890
    %v4409 = vpack.c.b16 %v3893, %v3892
    %v4410 = vpack.c.b16 %v3895, %v3894
    %v4411 = vpack.c.b16 %v3897, %v3896
    %v4412 = vpack.c.b16 %v3899, %v3898
    %v4413 = vpack.c.b16 %v3901, %v3900
    %4926 = vmatprep.subr.bf16.mxu0 0
    %4927 = vmatpush1.bf16.msra.mxu0 %v3902
    %4928 = vmatprep.subr.bf16.mxu0 0
    %4929 = vmatpush1.bf16.msra.mxu0 %v3903
    %4930 = vmatprep.subr.bf16.mxu0 0
    %4931 = vmatpush1.bf16.msra.mxu0 %v3904
    %4932 = vmatprep.subr.bf16.mxu0 0
    %4933 = vmatpush1.bf16.msra.mxu0 %v3905
    %4934 = vmatprep.subr.bf16.mxu0 0
    %4935 = vmatpush1.bf16.msra.mxu0 %v3906
    %4936 = vmatprep.subr.bf16.mxu0 0
    %4937 = vmatpush1.bf16.msra.mxu0 %v3907
    %4938 = vmatprep.subr.bf16.mxu0 0
    %4939 = vmatpush1.bf16.msra.mxu0 %v3908
    %4940 = vmatprep.subr.bf16.mxu0 0
    %4941 = vmatpush1.bf16.msra.mxu0 %v3909
    %4942 = vmatprep.subr.bf16.mxu0 0
    %4943 = vmatpush1.bf16.msra.mxu0 %v3910
    %4944 = vmatprep.subr.bf16.mxu0 0
    %4945 = vmatpush1.bf16.msra.mxu0 %v3911
    %4946 = vmatprep.subr.bf16.mxu0 0
    %4947 = vmatpush1.bf16.msra.mxu0 %v3912
    %4948 = vmatprep.subr.bf16.mxu0 0
    %4949 = vmatpush1.bf16.msra.mxu0 %v3913
    %4950 = vmatprep.subr.bf16.mxu0 0
    %4951 = vmatpush1.bf16.msra.mxu0 %v3914
    %4952 = vmatprep.subr.bf16.mxu0 0
    %4953 = vmatpush1.bf16.msra.mxu0 %v3915
    %4954 = vmatprep.subr.bf16.mxu0 0
    %4955 = vmatpush1.bf16.msra.mxu0 %v3916
    %4956 = vmatprep.subr.bf16.mxu0 0
    %4957 = vmatpush1.bf16.msra.mxu0 %v3917
    %4958 = vmatprep.mubr.bf16.mxu0 %v1599
    %4959 = vmatmul.mubr.bf16.gmra.mrb[0].mxu0 %v1598
    %v4960 = vpop.f32.mrb[0].mxu0
    %v4961 = vadd.f32 %v1212, %v4960
    %v4962 = vpop.f32.mrb[0].mxu0
    %v4963 = vpop.f32.mrb[0].mxu0
    %v4964 = vadd.f32 %v1212, %v4963
    %v4965 = vpop.f32.mrb[0].mxu0
    %4966 = vmatprep.mubr.bf16.mxu0 %v1663
    %4967 = vmatmul.mubr.bf16.gmra.mrb[0].mxu0 %v1662
    %v4968 = vpop.f32.mrb[0].mxu0
    %v4969 = vadd.f32 %v1212, %v4968
    %v4970 = vpop.f32.mrb[0].mxu0
    %v4971 = vpop.f32.mrb[0].mxu0
    %v4972 = vadd.f32 %v1212, %v4971
    %v4973 = vpop.f32.mrb[0].mxu0
    %4974 = vdwg.mxu0
    %4975 = vmatprep.subr.bf16.mxu0 0
    %4976 = vmatpush1.bf16.msra.mxu0 %v3918
    %4977 = vmatprep.subr.bf16.mxu0 0
    %4978 = vmatpush1.bf16.msra.mxu0 %v3919
    %4979 = vmatprep.subr.bf16.mxu0 0
    %4980 = vmatpush1.bf16.msra.mxu0 %v3920
    %4981 = vmatprep.subr.bf16.mxu0 0
    %4982 = vmatpush1.bf16.msra.mxu0 %v3921
    %4983 = vmatprep.subr.bf16.mxu0 0
    %4984 = vmatpush1.bf16.msra.mxu0 %v3922
    %4985 = vmatprep.subr.bf16.mxu0 0
    %4986 = vmatpush1.bf16.msra.mxu0 %v3923
    %4987 = vmatprep.subr.bf16.mxu0 0
    %4988 = vmatpush1.bf16.msra.mxu0 %v3924
    %4989 = vmatprep.subr.bf16.mxu0 0
    %4990 = vmatpush1.bf16.msra.mxu0 %v3925
    %4991 = vmatprep.subr.bf16.mxu0 0
    %4992 = vmatpush1.bf16.msra.mxu0 %v3926
    %4993 = vmatprep.subr.bf16.mxu0 0
    %4994 = vmatpush1.bf16.msra.mxu0 %v3927
    %4995 = vmatprep.subr.bf16.mxu0 0
    %4996 = vmatpush1.bf16.msra.mxu0 %v3928
    %4997 = vmatprep.subr.bf16.mxu0 0
    %4998 = vmatpush1.bf16.msra.mxu0 %v3929
    %4999 = vmatprep.subr.bf16.mxu0 0
    %5000 = vmatpush1.bf16.msra.mxu0 %v3930
    %5001 = vmatprep.subr.bf16.mxu0 0
    %5002 = vmatpush1.bf16.msra.mxu0 %v3931
    %5003 = vmatprep.subr.bf16.mxu0 0
    %5004 = vmatpush1.bf16.msra.mxu0 %v3932
    %5005 = vmatprep.subr.bf16.mxu0 0
    %5006 = vmatpush1.bf16.msra.mxu0 %v3933
    %5007 = vmatprep.mubr.bf16.mxu0 %v1601
    %5008 = vmatmul.mubr.bf16.gmra.mrb[0].mxu0 %v1600
    %v5009 = vpop.f32.mrb[0].mxu0
    %v5010 = vadd.f32 %v4961, %v5009
    %v5011 = vpop.f32.mrb[0].mxu0
    %v5012 = vpop.f32.mrb[0].mxu0
    %v5013 = vadd.f32 %v4964, %v5012
    %v5014 = vpop.f32.mrb[0].mxu0
    %5015 = vmatprep.mubr.bf16.mxu0 %v1665
    %5016 = vmatmul.mubr.bf16.gmra.mrb[0].mxu0 %v1664
    %v5017 = vpop.f32.mrb[0].mxu0
    %v5018 = vadd.f32 %v4969, %v5017
    %v5019 = vpop.f32.mrb[0].mxu0
    %v5020 = vpop.f32.mrb[0].mxu0
    %v5021 = vadd.f32 %v4972, %v5020
    %v5022 = vpop.f32.mrb[0].mxu0
    %5023 = vdwg.mxu0
    %5024 = vmatprep.subr.bf16.mxu0 0
    %5025 = vmatpush1.bf16.msra.mxu0 %v3934
    %5026 = vmatprep.subr.bf16.mxu0 0
    %5027 = vmatpush1.bf16.msra.mxu0 %v3935
    %5028 = vmatprep.subr.bf16.mxu0 0
    %5029 = vmatpush1.bf16.msra.mxu0 %v3936
    %5030 = vmatprep.subr.bf16.mxu0 0
    %5031 = vmatpush1.bf16.msra.mxu0 %v3937
    %5032 = vmatprep.subr.bf16.mxu0 0
    %5033 = vmatpush1.bf16.msra.mxu0 %v3938
    %5034 = vmatprep.subr.bf16.mxu0 0
    %5035 = vmatpush1.bf16.msra.mxu0 %v3939
    %5036 = vmatprep.subr.bf16.mxu0 0
    %5037 = vmatpush1.bf16.msra.mxu0 %v3940
    %5038 = vmatprep.subr.bf16.mxu0 0
    %5039 = vmatpush1.bf16.msra.mxu0 %v3941
    %5040 = vmatprep.subr.bf16.mxu0 0
    %5041 = vmatpush1.bf16.msra.mxu0 %v3942
    %5042 = vmatprep.subr.bf16.mxu0 0
    %5043 = vmatpush1.bf16.msra.mxu0 %v3943
    %5044 = vmatprep.subr.bf16.mxu0 0
    %5045 = vmatpush1.bf16.msra.mxu0 %v3944
    %5046 = vmatprep.subr.bf16.mxu0 0
    %5047 = vmatpush1.bf16.msra.mxu0 %v3945
    %5048 = vmatprep.subr.bf16.mxu0 0
    %5049 = vmatpush1.bf16.msra.mxu0 %v3946
    %5050 = vmatprep.subr.bf16.mxu0 0
    %5051 = vmatpush1.bf16.msra.mxu0 %v3947
    %5052 = vmatprep.subr.bf16.mxu0 0
    %5053 = vmatpush1.bf16.msra.mxu0 %v3948
    %5054 = vmatprep.subr.bf16.mxu0 0
    %5055 = vmatpush1.bf16.msra.mxu0 %v3949
    %5056 = vmatprep.mubr.bf16.mxu0 %v1603
    %5057 = vmatmul.mubr.bf16.gmra.mrb[0].mxu0 %v1602
    %v5058 = vpop.f32.mrb[0].mxu0
    %v5059 = vadd.f32 %v5010, %v5058
    %v5060 = vpop.f32.mrb[0].mxu0
    %v5061 = vpop.f32.mrb[0].mxu0
    %v5062 = vadd.f32 %v5013, %v5061
    %v5063 = vpop.f32.mrb[0].mxu0
    %5064 = vmatprep.mubr.bf16.mxu0 %v1667
    %5065 = vmatmul.mubr.bf16.gmra.mrb[0].mxu0 %v1666
    %v5066 = vpop.f32.mrb[0].mxu0
    %v5067 = vadd.f32 %v5018, %v5066
    %v5068 = vpop.f32.mrb[0].mxu0
    %v5069 = vpop.f32.mrb[0].mxu0
    %v5070 = vadd.f32 %v5021, %v5069
    %v5071 = vpop.f32.mrb[0].mxu0
    %5072 = vdwg.mxu0
    %5073 = vmatprep.subr.bf16.mxu0 0
    %5074 = vmatpush1.bf16.msra.mxu0 %v3950
    %5075 = vmatprep.subr.bf16.mxu0 0
    %5076 = vmatpush1.bf16.msra.mxu0 %v3951
    %5077 = vmatprep.subr.bf16.mxu0 0
    %5078 = vmatpush1.bf16.msra.mxu0 %v3952
    %5079 = vmatprep.subr.bf16.mxu0 0
    %5080 = vmatpush1.bf16.msra.mxu0 %v3953
    %5081 = vmatprep.subr.bf16.mxu0 0
    %5082 = vmatpush1.bf16.msra.mxu0 %v3954
    %5083 = vmatprep.subr.bf16.mxu0 0
    %5084 = vmatpush1.bf16.msra.mxu0 %v3955
    %5085 = vmatprep.subr.bf16.mxu0 0
    %5086 = vmatpush1.bf16.msra.mxu0 %v3956
    %5087 = vmatprep.subr.bf16.mxu0 0
    %5088 = vmatpush1.bf16.msra.mxu0 %v3957
    %5089 = vmatprep.subr.bf16.mxu0 0
    %5090 = vmatpush1.bf16.msra.mxu0 %v3958
    %5091 = vmatprep.subr.bf16.mxu0 0
    %5092 = vmatpush1.bf16.msra.mxu0 %v3959
    %5093 = vmatprep.subr.bf16.mxu0 0
    %5094 = vmatpush1.bf16.msra.mxu0 %v3960
    %5095 = vmatprep.subr.bf16.mxu0 0
    %5096 = vmatpush1.bf16.msra.mxu0 %v3961
    %5097 = vmatprep.subr.bf16.mxu0 0
    %5098 = vmatpush1.bf16.msra.mxu0 %v3962
    %5099 = vmatprep.subr.bf16.mxu0 0
    %5100 = vmatpush1.bf16.msra.mxu0 %v3963
    %5101 = vmatprep.subr.bf16.mxu0 0
    %5102 = vmatpush1.bf16.msra.mxu0 %v3964
    %5103 = vmatprep.subr.bf16.mxu0 0
    %5104 = vmatpush1.bf16.msra.mxu0 %v3965
    %5105 = vmatprep.mubr.bf16.mxu0 %v1605
    %5106 = vmatmul.mubr.bf16.gmra.mrb[0].mxu0 %v1604
    %v5107 = vpop.f32.mrb[0].mxu0
    %v5108 = vadd.f32 %v5059, %v5107
    %v5109 = vpop.f32.mrb[0].mxu0
    %v5110 = vpop.f32.mrb[0].mxu0
    %v5111 = vadd.f32 %v5062, %v5110
    %v5112 = vpop.f32.mrb[0].mxu0
    %5113 = vmatprep.mubr.bf16.mxu0 %v1669
    %5114 = vmatmul.mubr.bf16.gmra.mrb[0].mxu0 %v1668
    %v5115 = vpop.f32.mrb[0].mxu0
    %v5116 = vadd.f32 %v5067, %v5115
    %v5117 = vpop.f32.mrb[0].mxu0
    %v5118 = vpop.f32.mrb[0].mxu0
    %v5119 = vadd.f32 %v5070, %v5118
    %v5120 = vpop.f32.mrb[0].mxu0
    %5121 = vdwg.mxu0
    %5122 = vmatprep.subr.bf16.mxu0 0
    %5123 = vmatpush1.bf16.msra.mxu0 %v3966
    %5124 = vmatprep.subr.bf16.mxu0 0
    %5125 = vmatpush1.bf16.msra.mxu0 %v3967
    %5126 = vmatprep.subr.bf16.mxu0 0
    %5127 = vmatpush1.bf16.msra.mxu0 %v3968
    %5128 = vmatprep.subr.bf16.mxu0 0
    %5129 = vmatpush1.bf16.msra.mxu0 %v3969
    %5130 = vmatprep.subr.bf16.mxu0 0
    %5131 = vmatpush1.bf16.msra.mxu0 %v3970
    %5132 = vmatprep.subr.bf16.mxu0 0
    %5133 = vmatpush1.bf16.msra.mxu0 %v3971
    %5134 = vmatprep.subr.bf16.mxu0 0
    %5135 = vmatpush1.bf16.msra.mxu0 %v3972
    %5136 = vmatprep.subr.bf16.mxu0 0
    %5137 = vmatpush1.bf16.msra.mxu0 %v3973
    %5138 = vmatprep.subr.bf16.mxu0 0
    %5139 = vmatpush1.bf16.msra.mxu0 %v3974
    %5140 = vmatprep.subr.bf16.mxu0 0
    %5141 = vmatpush1.bf16.msra.mxu0 %v3975
    %5142 = vmatprep.subr.bf16.mxu0 0
    %5143 = vmatpush1.bf16.msra.mxu0 %v3976
    %5144 = vmatprep.subr.bf16.mxu0 0
    %5145 = vmatpush1.bf16.msra.mxu0 %v3977
    %5146 = vmatprep.subr.bf16.mxu0 0
    %5147 = vmatpush1.bf16.msra.mxu0 %v3978
    %5148 = vmatprep.subr.bf16.mxu0 0
    %5149 = vmatpush1.bf16.msra.mxu0 %v3979
    %5150 = vmatprep.subr.bf16.mxu0 0
    %5151 = vmatpush1.bf16.msra.mxu0 %v3980
    %5152 = vmatprep.subr.bf16.mxu0 0
    %5153 = vmatpush1.bf16.msra.mxu0 %v3981
    %5154 = vmatprep.mubr.bf16.mxu0 %v1607
    %5155 = vmatmul.mubr.bf16.gmra.mrb[0].mxu0 %v1606
    %v5156 = vpop.f32.mrb[0].mxu0
    %v5157 = vadd.f32 %v5108, %v5156
    %v5158 = vpop.f32.mrb[0].mxu0
    %v5159 = vpop.f32.mrb[0].mxu0
    %v5160 = vadd.f32 %v5111, %v5159
    %v5161 = vpop.f32.mrb[0].mxu0
    %5162 = vmatprep.mubr.bf16.mxu0 %v1671
    %5163 = vmatmul.mubr.bf16.gmra.mrb[0].mxu0 %v1670
    %v5164 = vpop.f32.mrb[0].mxu0
    %v5165 = vadd.f32 %v5116, %v5164
    %v5166 = vpop.f32.mrb[0].mxu0
    %v5167 = vpop.f32.mrb[0].mxu0
    %v5168 = vadd.f32 %v5119, %v5167
    %v5169 = vpop.f32.mrb[0].mxu0
    %5170 = vdwg.mxu0
    %5171 = vmatprep.subr.bf16.mxu0 0
    %5172 = vmatpush1.bf16.msra.mxu0 %v3982
    %5173 = vmatprep.subr.bf16.mxu0 0
    %5174 = vmatpush1.bf16.msra.mxu0 %v3983
    %5175 = vmatprep.subr.bf16.mxu0 0
    %5176 = vmatpush1.bf16.msra.mxu0 %v3984
    %5177 = vmatprep.subr.bf16.mxu0 0
    %5178 = vmatpush1.bf16.msra.mxu0 %v3985
    %5179 = vmatprep.subr.bf16.mxu0 0
    %5180 = vmatpush1.bf16.msra.mxu0 %v3986
    %5181 = vmatprep.subr.bf16.mxu0 0
    %5182 = vmatpush1.bf16.msra.mxu0 %v3987
    %5183 = vmatprep.subr.bf16.mxu0 0
    %5184 = vmatpush1.bf16.msra.mxu0 %v3988
    %5185 = vmatprep.subr.bf16.mxu0 0
    %5186 = vmatpush1.bf16.msra.mxu0 %v3989
    %5187 = vmatprep.subr.bf16.mxu0 0
    %5188 = vmatpush1.bf16.msra.mxu0 %v3990
    %5189 = vmatprep.subr.bf16.mxu0 0
    %5190 = vmatpush1.bf16.msra.mxu0 %v3991
    %5191 = vmatprep.subr.bf16.mxu0 0
    %5192 = vmatpush1.bf16.msra.mxu0 %v3992
    %5193 = vmatprep.subr.bf16.mxu0 0
    %5194 = vmatpush1.bf16.msra.mxu0 %v3993
    %5195 = vmatprep.subr.bf16.mxu0 0
    %5196 = vmatpush1.bf16.msra.mxu0 %v3994
    %5197 = vmatprep.subr.bf16.mxu0 0
    %5198 = vmatpush1.bf16.msra.mxu0 %v3995
    %5199 = vmatprep.subr.bf16.mxu0 0
    %5200 = vmatpush1.bf16.msra.mxu0 %v3996
    %5201 = vmatprep.subr.bf16.mxu0 0
    %5202 = vmatpush1.bf16.msra.mxu0 %v3997
    %5203 = vmatprep.mubr.bf16.mxu0 %v1609
    %5204 = vmatmul.mubr.bf16.gmra.mrb[0].mxu0 %v1608
    %v5205 = vpop.f32.mrb[0].mxu0
    %v5206 = vadd.f32 %v5157, %v5205
    %v5207 = vpop.f32.mrb[0].mxu0
    %v5208 = vpop.f32.mrb[0].mxu0
    %v5209 = vadd.f32 %v5160, %v5208
    %v5210 = vpop.f32.mrb[0].mxu0
    %5211 = vmatprep.mubr.bf16.mxu0 %v1673
    %5212 = vmatmul.mubr.bf16.gmra.mrb[0].mxu0 %v1672
    %v5213 = vpop.f32.mrb[0].mxu0
    %v5214 = vadd.f32 %v5165, %v5213
    %v5215 = vpop.f32.mrb[0].mxu0
    %v5216 = vpop.f32.mrb[0].mxu0
    %v5217 = vadd.f32 %v5168, %v5216
    %v5218 = vpop.f32.mrb[0].mxu0
    %5219 = vdwg.mxu0
    %5220 = vmatprep.subr.bf16.mxu0 0
    %5221 = vmatpush1.bf16.msra.mxu0 %v3998
    %5222 = vmatprep.subr.bf16.mxu0 0
    %5223 = vmatpush1.bf16.msra.mxu0 %v3999
    %5224 = vmatprep.subr.bf16.mxu0 0
    %5225 = vmatpush1.bf16.msra.mxu0 %v4000
    %5226 = vmatprep.subr.bf16.mxu0 0
    %5227 = vmatpush1.bf16.msra.mxu0 %v4001
    %5228 = vmatprep.subr.bf16.mxu0 0
    %5229 = vmatpush1.bf16.msra.mxu0 %v4002
    %5230 = vmatprep.subr.bf16.mxu0 0
    %5231 = vmatpush1.bf16.msra.mxu0 %v4003
    %5232 = vmatprep.subr.bf16.mxu0 0
    %5233 = vmatpush1.bf16.msra.mxu0 %v4004
    %5234 = vmatprep.subr.bf16.mxu0 0
    %5235 = vmatpush1.bf16.msra.mxu0 %v4005
    %5236 = vmatprep.subr.bf16.mxu0 0
    %5237 = vmatpush1.bf16.msra.mxu0 %v4006
    %5238 = vmatprep.subr.bf16.mxu0 0
    %5239 = vmatpush1.bf16.msra.mxu0 %v4007
    %5240 = vmatprep.subr.bf16.mxu0 0
    %5241 = vmatpush1.bf16.msra.mxu0 %v4008
    %5242 = vmatprep.subr.bf16.mxu0 0
    %5243 = vmatpush1.bf16.msra.mxu0 %v4009
    %5244 = vmatprep.subr.bf16.mxu0 0
    %5245 = vmatpush1.bf16.msra.mxu0 %v4010
    %5246 = vmatprep.subr.bf16.mxu0 0
    %5247 = vmatpush1.bf16.msra.mxu0 %v4011
    %5248 = vmatprep.subr.bf16.mxu0 0
    %5249 = vmatpush1.bf16.msra.mxu0 %v4012
    %5250 = vmatprep.subr.bf16.mxu0 0
    %5251 = vmatpush1.bf16.msra.mxu0 %v4013
    %5252 = vmatprep.mubr.bf16.mxu0 %v1611
    %5253 = vmatmul.mubr.bf16.gmra.mrb[0].mxu0 %v1610
    %v5254 = vpop.f32.mrb[0].mxu0
    %v5255 = vadd.f32 %v5206, %v5254
    %v5256 = vpop.f32.mrb[0].mxu0
    %v5257 = vpop.f32.mrb[0].mxu0
    %v5258 = vadd.f32 %v5209, %v5257
    %v5259 = vpop.f32.mrb[0].mxu0
    %5260 = vmatprep.mubr.bf16.mxu0 %v1675
    %5261 = vmatmul.mubr.bf16.gmra.mrb[0].mxu0 %v1674
    %v5262 = vpop.f32.mrb[0].mxu0
    %v5263 = vadd.f32 %v5214, %v5262
    %v5264 = vpop.f32.mrb[0].mxu0
    %v5265 = vpop.f32.mrb[0].mxu0
    %v5266 = vadd.f32 %v5217, %v5265
    %v5267 = vpop.f32.mrb[0].mxu0
    %5268 = vdwg.mxu0
    %5269 = vmatprep.subr.bf16.mxu0 0
    %5270 = vmatpush1.bf16.msra.mxu0 %v4014
    %5271 = vmatprep.subr.bf16.mxu0 0
    %5272 = vmatpush1.bf16.msra.mxu0 %v4015
    %5273 = vmatprep.subr.bf16.mxu0 0
    %5274 = vmatpush1.bf16.msra.mxu0 %v4016
    %5275 = vmatprep.subr.bf16.mxu0 0
    %5276 = vmatpush1.bf16.msra.mxu0 %v4017
    %5277 = vmatprep.subr.bf16.mxu0 0
    %5278 = vmatpush1.bf16.msra.mxu0 %v4018
    %5279 = vmatprep.subr.bf16.mxu0 0
    %5280 = vmatpush1.bf16.msra.mxu0 %v4019
    %5281 = vmatprep.subr.bf16.mxu0 0
    %5282 = vmatpush1.bf16.msra.mxu0 %v4020
    %5283 = vmatprep.subr.bf16.mxu0 0
    %5284 = vmatpush1.bf16.msra.mxu0 %v4021
    %5285 = vmatprep.subr.bf16.mxu0 0
    %5286 = vmatpush1.bf16.msra.mxu0 %v4022
    %5287 = vmatprep.subr.bf16.mxu0 0
    %5288 = vmatpush1.bf16.msra.mxu0 %v4023
    %5289 = vmatprep.subr.bf16.mxu0 0
    %5290 = vmatpush1.bf16.msra.mxu0 %v4024
    %5291 = vmatprep.subr.bf16.mxu0 0
    %5292 = vmatpush1.bf16.msra.mxu0 %v4025
    %5293 = vmatprep.subr.bf16.mxu0 0
    %5294 = vmatpush1.bf16.msra.mxu0 %v4026
    %5295 = vmatprep.subr.bf16.mxu0 0
    %5296 = vmatpush1.bf16.msra.mxu0 %v4027
    %5297 = vmatprep.subr.bf16.mxu0 0
    %5298 = vmatpush1.bf16.msra.mxu0 %v4028
    %5299 = vmatprep.subr.bf16.mxu0 0
    %5300 = vmatpush1.bf16.msra.mxu0 %v4029
    %5301 = vmatprep.mubr.bf16.mxu0 %v1613
    %5302 = vmatmul.mubr.bf16.gmra.mrb[0].mxu0 %v1612
    %v5303 = vpop.f32.mrb[0].mxu0
    %v5304 = vadd.f32 %v5255, %v5303
    %v5305 = vpop.f32.mrb[0].mxu0
    %v5306 = vpop.f32.mrb[0].mxu0
    %v5307 = vadd.f32 %v5258, %v5306
    %v5308 = vpop.f32.mrb[0].mxu0
    %5309 = vmatprep.mubr.bf16.mxu0 %v1677
    %5310 = vmatmul.mubr.bf16.gmra.mrb[0].mxu0 %v1676
    %v5311 = vpop.f32.mrb[0].mxu0
    %v5312 = vadd.f32 %v5263, %v5311
    %v5313 = vpop.f32.mrb[0].mxu0
    %v5314 = vpop.f32.mrb[0].mxu0
    %v5315 = vadd.f32 %v5266, %v5314
    %v5316 = vpop.f32.mrb[0].mxu0
    %5317 = vdwg.mxu0
    %5318 = vmatprep.subr.bf16.mxu0 0
    %5319 = vmatpush1.bf16.msra.mxu0 %v4030
    %5320 = vmatprep.subr.bf16.mxu0 0
    %5321 = vmatpush1.bf16.msra.mxu0 %v4031
    %5322 = vmatprep.subr.bf16.mxu0 0
    %5323 = vmatpush1.bf16.msra.mxu0 %v4032
    %5324 = vmatprep.subr.bf16.mxu0 0
    %5325 = vmatpush1.bf16.msra.mxu0 %v4033
    %5326 = vmatprep.subr.bf16.mxu0 0
    %5327 = vmatpush1.bf16.msra.mxu0 %v4034
    %5328 = vmatprep.subr.bf16.mxu0 0
    %5329 = vmatpush1.bf16.msra.mxu0 %v4035
    %5330 = vmatprep.subr.bf16.mxu0 0
    %5331 = vmatpush1.bf16.msra.mxu0 %v4036
    %5332 = vmatprep.subr.bf16.mxu0 0
    %5333 = vmatpush1.bf16.msra.mxu0 %v4037
    %5334 = vmatprep.subr.bf16.mxu0 0
    %5335 = vmatpush1.bf16.msra.mxu0 %v4038
    %5336 = vmatprep.subr.bf16.mxu0 0
    %5337 = vmatpush1.bf16.msra.mxu0 %v4039
    %5338 = vmatprep.subr.bf16.mxu0 0
    %5339 = vmatpush1.bf16.msra.mxu0 %v4040
    %5340 = vmatprep.subr.bf16.mxu0 0
    %5341 = vmatpush1.bf16.msra.mxu0 %v4041
    %5342 = vmatprep.subr.bf16.mxu0 0
    %5343 = vmatpush1.bf16.msra.mxu0 %v4042
    %5344 = vmatprep.subr.bf16.mxu0 0
    %5345 = vmatpush1.bf16.msra.mxu0 %v4043
    %5346 = vmatprep.subr.bf16.mxu0 0
    %5347 = vmatpush1.bf16.msra.mxu0 %v4044
    %5348 = vmatprep.subr.bf16.mxu0 0
    %5349 = vmatpush1.bf16.msra.mxu0 %v4045
    %5350 = vmatprep.mubr.bf16.mxu0 %v1615
    %5351 = vmatmul.mubr.bf16.gmra.mrb[0].mxu0 %v1614
    %v5352 = vpop.f32.mrb[0].mxu0
    %v5353 = vadd.f32 %v5304, %v5352
    %v5354 = vpop.f32.mrb[0].mxu0
    %v5355 = vpop.f32.mrb[0].mxu0
    %v5356 = vadd.f32 %v5307, %v5355
    %v5357 = vpop.f32.mrb[0].mxu0
    %5358 = vmatprep.mubr.bf16.mxu0 %v1679
    %5359 = vmatmul.mubr.bf16.gmra.mrb[0].mxu0 %v1678
    %v5360 = vpop.f32.mrb[0].mxu0
    %v5361 = vadd.f32 %v5312, %v5360
    %v5362 = vpop.f32.mrb[0].mxu0
    %v5363 = vpop.f32.mrb[0].mxu0
    %v5364 = vadd.f32 %v5315, %v5363
    %v5365 = vpop.f32.mrb[0].mxu0
    %5366 = vdwg.mxu0
    %5367 = vmatprep.subr.bf16.mxu0 0
    %5368 = vmatpush1.bf16.msra.mxu0 %v4046
    %5369 = vmatprep.subr.bf16.mxu0 0
    %5370 = vmatpush1.bf16.msra.mxu0 %v4047
    %5371 = vmatprep.subr.bf16.mxu0 0
    %5372 = vmatpush1.bf16.msra.mxu0 %v4048
    %5373 = vmatprep.subr.bf16.mxu0 0
    %5374 = vmatpush1.bf16.msra.mxu0 %v4049
    %5375 = vmatprep.subr.bf16.mxu0 0
    %5376 = vmatpush1.bf16.msra.mxu0 %v4050
    %5377 = vmatprep.subr.bf16.mxu0 0
    %5378 = vmatpush1.bf16.msra.mxu0 %v4051
    %5379 = vmatprep.subr.bf16.mxu0 0
    %5380 = vmatpush1.bf16.msra.mxu0 %v4052
    %5381 = vmatprep.subr.bf16.mxu0 0
    %5382 = vmatpush1.bf16.msra.mxu0 %v4053
    %5383 = vmatprep.subr.bf16.mxu0 0
    %5384 = vmatpush1.bf16.msra.mxu0 %v4054
    %5385 = vmatprep.subr.bf16.mxu0 0
    %5386 = vmatpush1.bf16.msra.mxu0 %v4055
    %5387 = vmatprep.subr.bf16.mxu0 0
    %5388 = vmatpush1.bf16.msra.mxu0 %v4056
    %5389 = vmatprep.subr.bf16.mxu0 0
    %5390 = vmatpush1.bf16.msra.mxu0 %v4057
    %5391 = vmatprep.subr.bf16.mxu0 0
    %5392 = vmatpush1.bf16.msra.mxu0 %v4058
    %5393 = vmatprep.subr.bf16.mxu0 0
    %5394 = vmatpush1.bf16.msra.mxu0 %v4059
    %5395 = vmatprep.subr.bf16.mxu0 0
    %5396 = vmatpush1.bf16.msra.mxu0 %v4060
    %5397 = vmatprep.subr.bf16.mxu0 0
    %5398 = vmatpush1.bf16.msra.mxu0 %v4061
    %5399 = vmatprep.mubr.bf16.mxu0 %v1617
    %5400 = vmatmul.mubr.bf16.gmra.mrb[0].mxu0 %v1616
    %v5401 = vpop.f32.mrb[0].mxu0
    %v5402 = vadd.f32 %v5353, %v5401
    %v5403 = vpop.f32.mrb[0].mxu0
    %v5404 = vpop.f32.mrb[0].mxu0
    %v5405 = vadd.f32 %v5356, %v5404
    %v5406 = vpop.f32.mrb[0].mxu0
    %5407 = vmatprep.mubr.bf16.mxu0 %v1681
    %5408 = vmatmul.mubr.bf16.gmra.mrb[0].mxu0 %v1680
    %v5409 = vpop.f32.mrb[0].mxu0
    %v5410 = vadd.f32 %v5361, %v5409
    %v5411 = vpop.f32.mrb[0].mxu0
    %v5412 = vpop.f32.mrb[0].mxu0
    %v5413 = vadd.f32 %v5364, %v5412
    %v5414 = vpop.f32.mrb[0].mxu0
    %5415 = vdwg.mxu0
    %5416 = vmatprep.subr.bf16.mxu0 0
    %5417 = vmatpush1.bf16.msra.mxu0 %v4062
    %5418 = vmatprep.subr.bf16.mxu0 0
    %5419 = vmatpush1.bf16.msra.mxu0 %v4063
    %5420 = vmatprep.subr.bf16.mxu0 0
    %5421 = vmatpush1.bf16.msra.mxu0 %v4064
    %5422 = vmatprep.subr.bf16.mxu0 0
    %5423 = vmatpush1.bf16.msra.mxu0 %v4065
    %5424 = vmatprep.subr.bf16.mxu0 0
    %5425 = vmatpush1.bf16.msra.mxu0 %v4066
    %5426 = vmatprep.subr.bf16.mxu0 0
    %5427 = vmatpush1.bf16.msra.mxu0 %v4067
    %5428 = vmatprep.subr.bf16.mxu0 0
    %5429 = vmatpush1.bf16.msra.mxu0 %v4068
    %5430 = vmatprep.subr.bf16.mxu0 0
    %5431 = vmatpush1.bf16.msra.mxu0 %v4069
    %5432 = vmatprep.subr.bf16.mxu0 0
    %5433 = vmatpush1.bf16.msra.mxu0 %v4070
    %5434 = vmatprep.subr.bf16.mxu0 0
    %5435 = vmatpush1.bf16.msra.mxu0 %v4071
    %5436 = vmatprep.subr.bf16.mxu0 0
    %5437 = vmatpush1.bf16.msra.mxu0 %v4072
    %5438 = vmatprep.subr.bf16.mxu0 0
    %5439 = vmatpush1.bf16.msra.mxu0 %v4073
    %5440 = vmatprep.subr.bf16.mxu0 0
    %5441 = vmatpush1.bf16.msra.mxu0 %v4074
    %5442 = vmatprep.subr.bf16.mxu0 0
    %5443 = vmatpush1.bf16.msra.mxu0 %v4075
    %5444 = vmatprep.subr.bf16.mxu0 0
    %5445 = vmatpush1.bf16.msra.mxu0 %v4076
    %5446 = vmatprep.subr.bf16.mxu0 0
    %5447 = vmatpush1.bf16.msra.mxu0 %v4077
    %5448 = vmatprep.mubr.bf16.mxu0 %v1619
    %5449 = vmatmul.mubr.bf16.gmra.mrb[0].mxu0 %v1618
    %v5450 = vpop.f32.mrb[0].mxu0
    %v5451 = vadd.f32 %v5402, %v5450
    %v5452 = vpop.f32.mrb[0].mxu0
    %v5453 = vpop.f32.mrb[0].mxu0
    %v5454 = vadd.f32 %v5405, %v5453
    %v5455 = vpop.f32.mrb[0].mxu0
    %5456 = vmatprep.mubr.bf16.mxu0 %v1683
    %5457 = vmatmul.mubr.bf16.gmra.mrb[0].mxu0 %v1682
    %v5458 = vpop.f32.mrb[0].mxu0
    %v5459 = vadd.f32 %v5410, %v5458
    %v5460 = vpop.f32.mrb[0].mxu0
    %v5461 = vpop.f32.mrb[0].mxu0
    %v5462 = vadd.f32 %v5413, %v5461
    %v5463 = vpop.f32.mrb[0].mxu0
    %5464 = vdwg.mxu0
    %5465 = vmatprep.subr.bf16.mxu0 0
    %5466 = vmatpush1.bf16.msra.mxu0 %v4078
    %5467 = vmatprep.subr.bf16.mxu0 0
    %5468 = vmatpush1.bf16.msra.mxu0 %v4079
    %5469 = vmatprep.subr.bf16.mxu0 0
    %5470 = vmatpush1.bf16.msra.mxu0 %v4080
    %5471 = vmatprep.subr.bf16.mxu0 0
    %5472 = vmatpush1.bf16.msra.mxu0 %v4081
    %5473 = vmatprep.subr.bf16.mxu0 0
    %5474 = vmatpush1.bf16.msra.mxu0 %v4082
    %5475 = vmatprep.subr.bf16.mxu0 0
    %5476 = vmatpush1.bf16.msra.mxu0 %v4083
    %5477 = vmatprep.subr.bf16.mxu0 0
    %5478 = vmatpush1.bf16.msra.mxu0 %v4084
    %5479 = vmatprep.subr.bf16.mxu0 0
    %5480 = vmatpush1.bf16.msra.mxu0 %v4085
    %5481 = vmatprep.subr.bf16.mxu0 0
    %5482 = vmatpush1.bf16.msra.mxu0 %v4086
    %5483 = vmatprep.subr.bf16.mxu0 0
    %5484 = vmatpush1.bf16.msra.mxu0 %v4087
    %5485 = vmatprep.subr.bf16.mxu0 0
    %5486 = vmatpush1.bf16.msra.mxu0 %v4088
    %5487 = vmatprep.subr.bf16.mxu0 0
    %5488 = vmatpush1.bf16.msra.mxu0 %v4089
    %5489 = vmatprep.subr.bf16.mxu0 0
    %5490 = vmatpush1.bf16.msra.mxu0 %v4090
    %5491 = vmatprep.subr.bf16.mxu0 0
    %5492 = vmatpush1.bf16.msra.mxu0 %v4091
    %5493 = vmatprep.subr.bf16.mxu0 0
    %5494 = vmatpush1.bf16.msra.mxu0 %v4092
    %5495 = vmatprep.subr.bf16.mxu0 0
    %5496 = vmatpush1.bf16.msra.mxu0 %v4093
    %5497 = vmatprep.mubr.bf16.mxu0 %v1621
    %5498 = vmatmul.mubr.bf16.gmra.mrb[0].mxu0 %v1620
    %v5499 = vpop.f32.mrb[0].mxu0
    %v5500 = vadd.f32 %v5451, %v5499
    %v5501 = vpop.f32.mrb[0].mxu0
    %v5502 = vpop.f32.mrb[0].mxu0
    %v5503 = vadd.f32 %v5454, %v5502
    %v5504 = vpop.f32.mrb[0].mxu0
    %5505 = vmatprep.mubr.bf16.mxu0 %v1685
    %5506 = vmatmul.mubr.bf16.gmra.mrb[0].mxu0 %v1684
    %v5507 = vpop.f32.mrb[0].mxu0
    %v5508 = vadd.f32 %v5459, %v5507
    %v5509 = vpop.f32.mrb[0].mxu0
    %v5510 = vpop.f32.mrb[0].mxu0
    %v5511 = vadd.f32 %v5462, %v5510
    %v5512 = vpop.f32.mrb[0].mxu0
    %5513 = vdwg.mxu0
    %5514 = vmatprep.subr.bf16.mxu0 0
    %5515 = vmatpush1.bf16.msra.mxu0 %v4094
    %5516 = vmatprep.subr.bf16.mxu0 0
    %5517 = vmatpush1.bf16.msra.mxu0 %v4095
    %5518 = vmatprep.subr.bf16.mxu0 0
    %5519 = vmatpush1.bf16.msra.mxu0 %v4096
    %5520 = vmatprep.subr.bf16.mxu0 0
    %5521 = vmatpush1.bf16.msra.mxu0 %v4097
    %5522 = vmatprep.subr.bf16.mxu0 0
    %5523 = vmatpush1.bf16.msra.mxu0 %v4098
    %5524 = vmatprep.subr.bf16.mxu0 0
    %5525 = vmatpush1.bf16.msra.mxu0 %v4099
    %5526 = vmatprep.subr.bf16.mxu0 0
    %5527 = vmatpush1.bf16.msra.mxu0 %v4100
    %5528 = vmatprep.subr.bf16.mxu0 0
    %5529 = vmatpush1.bf16.msra.mxu0 %v4101
    %5530 = vmatprep.subr.bf16.mxu0 0
    %5531 = vmatpush1.bf16.msra.mxu0 %v4102
    %5532 = vmatprep.subr.bf16.mxu0 0
    %5533 = vmatpush1.bf16.msra.mxu0 %v4103
    %5534 = vmatprep.subr.bf16.mxu0 0
    %5535 = vmatpush1.bf16.msra.mxu0 %v4104
    %5536 = vmatprep.subr.bf16.mxu0 0
    %5537 = vmatpush1.bf16.msra.mxu0 %v4105
    %5538 = vmatprep.subr.bf16.mxu0 0
    %5539 = vmatpush1.bf16.msra.mxu0 %v4106
    %5540 = vmatprep.subr.bf16.mxu0 0
    %5541 = vmatpush1.bf16.msra.mxu0 %v4107
    %5542 = vmatprep.subr.bf16.mxu0 0
    %5543 = vmatpush1.bf16.msra.mxu0 %v4108
    %5544 = vmatprep.subr.bf16.mxu0 0
    %5545 = vmatpush1.bf16.msra.mxu0 %v4109
    %5546 = vmatprep.mubr.bf16.mxu0 %v1623
    %5547 = vmatmul.mubr.bf16.gmra.mrb[0].mxu0 %v1622
    %v5548 = vpop.f32.mrb[0].mxu0
    %v5549 = vadd.f32 %v5500, %v5548
    %v5550 = vpop.f32.mrb[0].mxu0
    %v5551 = vpop.f32.mrb[0].mxu0
    %v5552 = vadd.f32 %v5503, %v5551
    %v5553 = vpop.f32.mrb[0].mxu0
    %5554 = vmatprep.mubr.bf16.mxu0 %v1687
    %5555 = vmatmul.mubr.bf16.gmra.mrb[0].mxu0 %v1686
    %v5556 = vpop.f32.mrb[0].mxu0
    %v5557 = vadd.f32 %v5508, %v5556
    %v5558 = vpop.f32.mrb[0].mxu0
    %v5559 = vpop.f32.mrb[0].mxu0
    %v5560 = vadd.f32 %v5511, %v5559
    %v5561 = vpop.f32.mrb[0].mxu0
    %5562 = vdwg.mxu0
    %5563 = vmatprep.subr.bf16.mxu0 0
    %5564 = vmatpush1.bf16.msra.mxu0 %v4110
    %5565 = vmatprep.subr.bf16.mxu0 0
    %5566 = vmatpush1.bf16.msra.mxu0 %v4111
    %5567 = vmatprep.subr.bf16.mxu0 0
    %5568 = vmatpush1.bf16.msra.mxu0 %v4112
    %5569 = vmatprep.subr.bf16.mxu0 0
    %5570 = vmatpush1.bf16.msra.mxu0 %v4113
    %5571 = vmatprep.subr.bf16.mxu0 0
    %5572 = vmatpush1.bf16.msra.mxu0 %v4114
    %5573 = vmatprep.subr.bf16.mxu0 0
    %5574 = vmatpush1.bf16.msra.mxu0 %v4115
    %5575 = vmatprep.subr.bf16.mxu0 0
    %5576 = vmatpush1.bf16.msra.mxu0 %v4116
    %5577 = vmatprep.subr.bf16.mxu0 0
    %5578 = vmatpush1.bf16.msra.mxu0 %v4117
    %5579 = vmatprep.subr.bf16.mxu0 0
    %5580 = vmatpush1.bf16.msra.mxu0 %v4118
    %5581 = vmatprep.subr.bf16.mxu0 0
    %5582 = vmatpush1.bf16.msra.mxu0 %v4119
    %5583 = vmatprep.subr.bf16.mxu0 0
    %5584 = vmatpush1.bf16.msra.mxu0 %v4120
    %5585 = vmatprep.subr.bf16.mxu0 0
    %5586 = vmatpush1.bf16.msra.mxu0 %v4121
    %5587 = vmatprep.subr.bf16.mxu0 0
    %5588 = vmatpush1.bf16.msra.mxu0 %v4122
    %5589 = vmatprep.subr.bf16.mxu0 0
    %5590 = vmatpush1.bf16.msra.mxu0 %v4123
    %5591 = vmatprep.subr.bf16.mxu0 0
    %5592 = vmatpush1.bf16.msra.mxu0 %v4124
    %5593 = vmatprep.subr.bf16.mxu0 0
    %5594 = vmatpush1.bf16.msra.mxu0 %v4125
    %5595 = vmatprep.mubr.bf16.mxu0 %v1625
    %5596 = vmatmul.mubr.bf16.gmra.mrb[0].mxu0 %v1624
    %v5597 = vpop.f32.mrb[0].mxu0
    %v5598 = vadd.f32 %v5549, %v5597
    %v5599 = vpop.f32.mrb[0].mxu0
    %v5600 = vpop.f32.mrb[0].mxu0
    %v5601 = vadd.f32 %v5552, %v5600
    %v5602 = vpop.f32.mrb[0].mxu0
    %5603 = vmatprep.mubr.bf16.mxu0 %v1689
    %5604 = vmatmul.mubr.bf16.gmra.mrb[0].mxu0 %v1688
    %v5605 = vpop.f32.mrb[0].mxu0
    %v5606 = vadd.f32 %v5557, %v5605
    %v5607 = vpop.f32.mrb[0].mxu0
    %v5608 = vpop.f32.mrb[0].mxu0
    %v5609 = vadd.f32 %v5560, %v5608
    %v5610 = vpop.f32.mrb[0].mxu0
    %5611 = vdwg.mxu0
    %5612 = vmatprep.subr.bf16.mxu0 0
    %5613 = vmatpush1.bf16.msra.mxu0 %v4126
    %5614 = vmatprep.subr.bf16.mxu0 0
    %5615 = vmatpush1.bf16.msra.mxu0 %v4127
    %5616 = vmatprep.subr.bf16.mxu0 0
    %5617 = vmatpush1.bf16.msra.mxu0 %v4128
    %5618 = vmatprep.subr.bf16.mxu0 0
    %5619 = vmatpush1.bf16.msra.mxu0 %v4129
    %5620 = vmatprep.subr.bf16.mxu0 0
    %5621 = vmatpush1.bf16.msra.mxu0 %v4130
    %5622 = vmatprep.subr.bf16.mxu0 0
    %5623 = vmatpush1.bf16.msra.mxu0 %v4131
    %5624 = vmatprep.subr.bf16.mxu0 0
    %5625 = vmatpush1.bf16.msra.mxu0 %v4132
    %5626 = vmatprep.subr.bf16.mxu0 0
    %5627 = vmatpush1.bf16.msra.mxu0 %v4133
    %5628 = vmatprep.subr.bf16.mxu0 0
    %5629 = vmatpush1.bf16.msra.mxu0 %v4134
    %5630 = vmatprep.subr.bf16.mxu0 0
    %5631 = vmatpush1.bf16.msra.mxu0 %v4135
    %5632 = vmatprep.subr.bf16.mxu0 0
    %5633 = vmatpush1.bf16.msra.mxu0 %v4136
    %5634 = vmatprep.subr.bf16.mxu0 0
    %5635 = vmatpush1.bf16.msra.mxu0 %v4137
    %5636 = vmatprep.subr.bf16.mxu0 0
    %5637 = vmatpush1.bf16.msra.mxu0 %v4138
    %5638 = vmatprep.subr.bf16.mxu0 0
    %5639 = vmatpush1.bf16.msra.mxu0 %v4139
    %5640 = vmatprep.subr.bf16.mxu0 0
    %5641 = vmatpush1.bf16.msra.mxu0 %v4140
    %5642 = vmatprep.subr.bf16.mxu0 0
    %5643 = vmatpush1.bf16.msra.mxu0 %v4141
    %5644 = vmatprep.mubr.bf16.mxu0 %v1627
    %5645 = vmatmul.mubr.bf16.gmra.mrb[0].mxu0 %v1626
    %v5646 = vpop.f32.mrb[0].mxu0
    %v5647 = vadd.f32 %v5598, %v5646
    %v5648 = vpop.f32.mrb[0].mxu0
    %v5649 = vpop.f32.mrb[0].mxu0
    %v5650 = vadd.f32 %v5601, %v5649
    %v5651 = vpop.f32.mrb[0].mxu0
    %5652 = vmatprep.mubr.bf16.mxu0 %v1691
    %5653 = vmatmul.mubr.bf16.gmra.mrb[0].mxu0 %v1690
    %v5654 = vpop.f32.mrb[0].mxu0
    %v5655 = vadd.f32 %v5606, %v5654
    %v5656 = vpop.f32.mrb[0].mxu0
    %v5657 = vpop.f32.mrb[0].mxu0
    %v5658 = vadd.f32 %v5609, %v5657
    %v5659 = vpop.f32.mrb[0].mxu0
    %5660 = vdwg.mxu0
    %5661 = vmatprep.subr.bf16.mxu0 0
    %5662 = vmatpush1.bf16.msra.mxu0 %v4142
    %5663 = vmatprep.subr.bf16.mxu0 0
    %5664 = vmatpush1.bf16.msra.mxu0 %v4143
    %5665 = vmatprep.subr.bf16.mxu0 0
    %5666 = vmatpush1.bf16.msra.mxu0 %v4144
    %5667 = vmatprep.subr.bf16.mxu0 0
    %5668 = vmatpush1.bf16.msra.mxu0 %v4145
    %5669 = vmatprep.subr.bf16.mxu0 0
    %5670 = vmatpush1.bf16.msra.mxu0 %v4146
    %5671 = vmatprep.subr.bf16.mxu0 0
    %5672 = vmatpush1.bf16.msra.mxu0 %v4147
    %5673 = vmatprep.subr.bf16.mxu0 0
    %5674 = vmatpush1.bf16.msra.mxu0 %v4148
    %5675 = vmatprep.subr.bf16.mxu0 0
    %5676 = vmatpush1.bf16.msra.mxu0 %v4149
    %5677 = vmatprep.subr.bf16.mxu0 0
    %5678 = vmatpush1.bf16.msra.mxu0 %v4150
    %5679 = vmatprep.subr.bf16.mxu0 0
    %5680 = vmatpush1.bf16.msra.mxu0 %v4151
    %5681 = vmatprep.subr.bf16.mxu0 0
    %5682 = vmatpush1.bf16.msra.mxu0 %v4152
    %5683 = vmatprep.subr.bf16.mxu0 0
    %5684 = vmatpush1.bf16.msra.mxu0 %v4153
    %5685 = vmatprep.subr.bf16.mxu0 0
    %5686 = vmatpush1.bf16.msra.mxu0 %v4154
    %5687 = vmatprep.subr.bf16.mxu0 0
    %5688 = vmatpush1.bf16.msra.mxu0 %v4155
    %5689 = vmatprep.subr.bf16.mxu0 0
    %5690 = vmatpush1.bf16.msra.mxu0 %v4156
    %5691 = vmatprep.subr.bf16.mxu0 0
    %5692 = vmatpush1.bf16.msra.mxu0 %v4157
    %5693 = vmatprep.mubr.bf16.mxu0 %v1629
    %5694 = vmatmul.mubr.bf16.gmra.mrb[0].mxu0 %v1628
    %v5695 = vpop.f32.mrb[0].mxu0
    %v5696 = vadd.f32 %v5647, %v5695
    %v5697 = vpop.f32.mrb[0].mxu0
    %v5698 = vpop.f32.mrb[0].mxu0
    %v5699 = vadd.f32 %v5650, %v5698
    %v5700 = vpop.f32.mrb[0].mxu0
    %5701 = vmatprep.mubr.bf16.mxu0 %v1693
    %5702 = vmatmul.mubr.bf16.gmra.mrb[0].mxu0 %v1692
    %v5703 = vpop.f32.mrb[0].mxu0
    %v5704 = vadd.f32 %v5655, %v5703
    %v5705 = vpop.f32.mrb[0].mxu0
    %v5706 = vpop.f32.mrb[0].mxu0
    %v5707 = vadd.f32 %v5658, %v5706
    %v5708 = vpop.f32.mrb[0].mxu0
    %5709 = vdwg.mxu0
    %5710 = vmatprep.subr.bf16.mxu0 0
    %5711 = vmatpush1.bf16.msra.mxu0 %v4158
    %5712 = vmatprep.subr.bf16.mxu0 0
    %5713 = vmatpush1.bf16.msra.mxu0 %v4159
    %5714 = vmatprep.subr.bf16.mxu0 0
    %5715 = vmatpush1.bf16.msra.mxu0 %v4160
    %5716 = vmatprep.subr.bf16.mxu0 0
    %5717 = vmatpush1.bf16.msra.mxu0 %v4161
    %5718 = vmatprep.subr.bf16.mxu0 0
    %5719 = vmatpush1.bf16.msra.mxu0 %v4162
    %5720 = vmatprep.subr.bf16.mxu0 0
    %5721 = vmatpush1.bf16.msra.mxu0 %v4163
    %5722 = vmatprep.subr.bf16.mxu0 0
    %5723 = vmatpush1.bf16.msra.mxu0 %v4164
    %5724 = vmatprep.subr.bf16.mxu0 0
    %5725 = vmatpush1.bf16.msra.mxu0 %v4165
    %5726 = vmatprep.subr.bf16.mxu0 0
    %5727 = vmatpush1.bf16.msra.mxu0 %v4166
    %5728 = vmatprep.subr.bf16.mxu0 0
    %5729 = vmatpush1.bf16.msra.mxu0 %v4167
    %5730 = vmatprep.subr.bf16.mxu0 0
    %5731 = vmatpush1.bf16.msra.mxu0 %v4168
    %5732 = vmatprep.subr.bf16.mxu0 0
    %5733 = vmatpush1.bf16.msra.mxu0 %v4169
    %5734 = vmatprep.subr.bf16.mxu0 0
    %5735 = vmatpush1.bf16.msra.mxu0 %v4170
    %5736 = vmatprep.subr.bf16.mxu0 0
    %5737 = vmatpush1.bf16.msra.mxu0 %v4171
    %5738 = vmatprep.subr.bf16.mxu0 0
    %5739 = vmatpush1.bf16.msra.mxu0 %v4172
    %5740 = vmatprep.subr.bf16.mxu0 0
    %5741 = vmatpush1.bf16.msra.mxu0 %v4173
    %5742 = vmatprep.mubr.bf16.mxu0 %v1631
    %5743 = vmatmul.mubr.bf16.gmra.mrb[0].mxu0 %v1630
    %v5744 = vpop.f32.mrb[0].mxu0
    %v5745 = vadd.f32 %v5696, %v5744
    %v5746 = vpop.f32.mrb[0].mxu0
    %v5747 = vpop.f32.mrb[0].mxu0
    %v5748 = vadd.f32 %v5699, %v5747
    %v5749 = vpop.f32.mrb[0].mxu0
    %5750 = vmatprep.mubr.bf16.mxu0 %v1695
    %5751 = vmatmul.mubr.bf16.gmra.mrb[0].mxu0 %v1694
    %v5752 = vpop.f32.mrb[0].mxu0
    %v5753 = vadd.f32 %v5704, %v5752
    %v5754 = vpop.f32.mrb[0].mxu0
    %v5755 = vpop.f32.mrb[0].mxu0
    %v5756 = vadd.f32 %v5707, %v5755
    %v5757 = vpop.f32.mrb[0].mxu0
    %5758 = vdwg.mxu0
    %5759 = vmatprep.subr.bf16.mxu0 0
    %5760 = vmatpush1.bf16.msra.mxu0 %v4174
    %5761 = vmatprep.subr.bf16.mxu0 0
    %5762 = vmatpush1.bf16.msra.mxu0 %v4175
    %5763 = vmatprep.subr.bf16.mxu0 0
    %5764 = vmatpush1.bf16.msra.mxu0 %v4176
    %5765 = vmatprep.subr.bf16.mxu0 0
    %5766 = vmatpush1.bf16.msra.mxu0 %v4177
    %5767 = vmatprep.subr.bf16.mxu0 0
    %5768 = vmatpush1.bf16.msra.mxu0 %v4178
    %5769 = vmatprep.subr.bf16.mxu0 0
    %5770 = vmatpush1.bf16.msra.mxu0 %v4179
    %5771 = vmatprep.subr.bf16.mxu0 0
    %5772 = vmatpush1.bf16.msra.mxu0 %v4180
    %5773 = vmatprep.subr.bf16.mxu0 0
    %5774 = vmatpush1.bf16.msra.mxu0 %v4181
    %5775 = vmatprep.subr.bf16.mxu0 0
    %5776 = vmatpush1.bf16.msra.mxu0 %v4182
    %5777 = vmatprep.subr.bf16.mxu0 0
    %5778 = vmatpush1.bf16.msra.mxu0 %v4183
    %5779 = vmatprep.subr.bf16.mxu0 0
    %5780 = vmatpush1.bf16.msra.mxu0 %v4184
    %5781 = vmatprep.subr.bf16.mxu0 0
    %5782 = vmatpush1.bf16.msra.mxu0 %v4185
    %5783 = vmatprep.subr.bf16.mxu0 0
    %5784 = vmatpush1.bf16.msra.mxu0 %v4186
    %5785 = vmatprep.subr.bf16.mxu0 0
    %5786 = vmatpush1.bf16.msra.mxu0 %v4187
    %5787 = vmatprep.subr.bf16.mxu0 0
    %5788 = vmatpush1.bf16.msra.mxu0 %v4188
    %5789 = vmatprep.subr.bf16.mxu0 0
    %5790 = vmatpush1.bf16.msra.mxu0 %v4189
    %5791 = vmatprep.mubr.bf16.mxu0 %v1633
    %5792 = vmatmul.mubr.bf16.gmra.mrb[0].mxu0 %v1632
    %v5793 = vpop.f32.mrb[0].mxu0
    %v5794 = vadd.f32 %v5745, %v5793
    %v5795 = vpop.f32.mrb[0].mxu0
    %v5796 = vpop.f32.mrb[0].mxu0
    %v5797 = vadd.f32 %v5748, %v5796
    %v5798 = vpop.f32.mrb[0].mxu0
    %5799 = vmatprep.mubr.bf16.mxu0 %v1697
    %5800 = vmatmul.mubr.bf16.gmra.mrb[0].mxu0 %v1696
    %v5801 = vpop.f32.mrb[0].mxu0
    %v5802 = vadd.f32 %v5753, %v5801
    %v5803 = vpop.f32.mrb[0].mxu0
    %v5804 = vpop.f32.mrb[0].mxu0
    %v5805 = vadd.f32 %v5756, %v5804
    %v5806 = vpop.f32.mrb[0].mxu0
    %5807 = vdwg.mxu0
    %5808 = vmatprep.subr.bf16.mxu0 0
    %5809 = vmatpush1.bf16.msra.mxu0 %v4190
    %5810 = vmatprep.subr.bf16.mxu0 0
    %5811 = vmatpush1.bf16.msra.mxu0 %v4191
    %5812 = vmatprep.subr.bf16.mxu0 0
    %5813 = vmatpush1.bf16.msra.mxu0 %v4192
    %5814 = vmatprep.subr.bf16.mxu0 0
    %5815 = vmatpush1.bf16.msra.mxu0 %v4193
    %5816 = vmatprep.subr.bf16.mxu0 0
    %5817 = vmatpush1.bf16.msra.mxu0 %v4194
    %5818 = vmatprep.subr.bf16.mxu0 0
    %5819 = vmatpush1.bf16.msra.mxu0 %v4195
    %5820 = vmatprep.subr.bf16.mxu0 0
    %5821 = vmatpush1.bf16.msra.mxu0 %v4196
    %5822 = vmatprep.subr.bf16.mxu0 0
    %5823 = vmatpush1.bf16.msra.mxu0 %v4197
    %5824 = vmatprep.subr.bf16.mxu0 0
    %5825 = vmatpush1.bf16.msra.mxu0 %v4198
    %5826 = vmatprep.subr.bf16.mxu0 0
    %5827 = vmatpush1.bf16.msra.mxu0 %v4199
    %5828 = vmatprep.subr.bf16.mxu0 0
    %5829 = vmatpush1.bf16.msra.mxu0 %v4200
    %5830 = vmatprep.subr.bf16.mxu0 0
    %5831 = vmatpush1.bf16.msra.mxu0 %v4201
    %5832 = vmatprep.subr.bf16.mxu0 0
    %5833 = vmatpush1.bf16.msra.mxu0 %v4202
    %5834 = vmatprep.subr.bf16.mxu0 0
    %5835 = vmatpush1.bf16.msra.mxu0 %v4203
    %5836 = vmatprep.subr.bf16.mxu0 0
    %5837 = vmatpush1.bf16.msra.mxu0 %v4204
    %5838 = vmatprep.subr.bf16.mxu0 0
    %5839 = vmatpush1.bf16.msra.mxu0 %v4205
    %5840 = vmatprep.mubr.bf16.mxu0 %v1635
    %5841 = vmatmul.mubr.bf16.gmra.mrb[0].mxu0 %v1634
    %v5842 = vpop.f32.mrb[0].mxu0
    %v5843 = vadd.f32 %v5794, %v5842
    %v5844 = vpop.f32.mrb[0].mxu0
    %v5845 = vpop.f32.mrb[0].mxu0
    %v5846 = vadd.f32 %v5797, %v5845
    %v5847 = vpop.f32.mrb[0].mxu0
    %5848 = vmatprep.mubr.bf16.mxu0 %v1699
    %5849 = vmatmul.mubr.bf16.gmra.mrb[0].mxu0 %v1698
    %v5850 = vpop.f32.mrb[0].mxu0
    %v5851 = vadd.f32 %v5802, %v5850
    %v5852 = vpop.f32.mrb[0].mxu0
    %v5853 = vpop.f32.mrb[0].mxu0
    %v5854 = vadd.f32 %v5805, %v5853
    %v5855 = vpop.f32.mrb[0].mxu0
    %5856 = vdwg.mxu0
    %5857 = vmatprep.subr.bf16.mxu0 0
    %5858 = vmatpush1.bf16.msra.mxu0 %v4206
    %5859 = vmatprep.subr.bf16.mxu0 0
    %5860 = vmatpush1.bf16.msra.mxu0 %v4207
    %5861 = vmatprep.subr.bf16.mxu0 0
    %5862 = vmatpush1.bf16.msra.mxu0 %v4208
    %5863 = vmatprep.subr.bf16.mxu0 0
    %5864 = vmatpush1.bf16.msra.mxu0 %v4209
    %5865 = vmatprep.subr.bf16.mxu0 0
    %5866 = vmatpush1.bf16.msra.mxu0 %v4210
    %5867 = vmatprep.subr.bf16.mxu0 0
    %5868 = vmatpush1.bf16.msra.mxu0 %v4211
    %5869 = vmatprep.subr.bf16.mxu0 0
    %5870 = vmatpush1.bf16.msra.mxu0 %v4212
    %5871 = vmatprep.subr.bf16.mxu0 0
    %5872 = vmatpush1.bf16.msra.mxu0 %v4213
    %5873 = vmatprep.subr.bf16.mxu0 0
    %5874 = vmatpush1.bf16.msra.mxu0 %v4214
    %5875 = vmatprep.subr.bf16.mxu0 0
    %5876 = vmatpush1.bf16.msra.mxu0 %v4215
    %5877 = vmatprep.subr.bf16.mxu0 0
    %5878 = vmatpush1.bf16.msra.mxu0 %v4216
    %5879 = vmatprep.subr.bf16.mxu0 0
    %5880 = vmatpush1.bf16.msra.mxu0 %v4217
    %5881 = vmatprep.subr.bf16.mxu0 0
    %5882 = vmatpush1.bf16.msra.mxu0 %v4218
    %5883 = vmatprep.subr.bf16.mxu0 0
    %5884 = vmatpush1.bf16.msra.mxu0 %v4219
    %5885 = vmatprep.subr.bf16.mxu0 0
    %5886 = vmatpush1.bf16.msra.mxu0 %v4220
    %5887 = vmatprep.subr.bf16.mxu0 0
    %5888 = vmatpush1.bf16.msra.mxu0 %v4221
    %5889 = vmatprep.mubr.bf16.mxu0 %v1637
    %5890 = vmatmul.mubr.bf16.gmra.mrb[0].mxu0 %v1636
    %v5891 = vpop.f32.mrb[0].mxu0
    %v5892 = vadd.f32 %v5843, %v5891
    %v5893 = vpop.f32.mrb[0].mxu0
    %v5894 = vpop.f32.mrb[0].mxu0
    %v5895 = vadd.f32 %v5846, %v5894
    %v5896 = vpop.f32.mrb[0].mxu0
    %5897 = vmatprep.mubr.bf16.mxu0 %v1701
    %5898 = vmatmul.mubr.bf16.gmra.mrb[0].mxu0 %v1700
    %v5899 = vpop.f32.mrb[0].mxu0
    %v5900 = vadd.f32 %v5851, %v5899
    %v5901 = vpop.f32.mrb[0].mxu0
    %v5902 = vpop.f32.mrb[0].mxu0
    %v5903 = vadd.f32 %v5854, %v5902
    %v5904 = vpop.f32.mrb[0].mxu0
    %5905 = vdwg.mxu0
    %5906 = vmatprep.subr.bf16.mxu0 0
    %5907 = vmatpush1.bf16.msra.mxu0 %v4222
    %5908 = vmatprep.subr.bf16.mxu0 0
    %5909 = vmatpush1.bf16.msra.mxu0 %v4223
    %5910 = vmatprep.subr.bf16.mxu0 0
    %5911 = vmatpush1.bf16.msra.mxu0 %v4224
    %5912 = vmatprep.subr.bf16.mxu0 0
    %5913 = vmatpush1.bf16.msra.mxu0 %v4225
    %5914 = vmatprep.subr.bf16.mxu0 0
    %5915 = vmatpush1.bf16.msra.mxu0 %v4226
    %5916 = vmatprep.subr.bf16.mxu0 0
    %5917 = vmatpush1.bf16.msra.mxu0 %v4227
    %5918 = vmatprep.subr.bf16.mxu0 0
    %5919 = vmatpush1.bf16.msra.mxu0 %v4228
    %5920 = vmatprep.subr.bf16.mxu0 0
    %5921 = vmatpush1.bf16.msra.mxu0 %v4229
    %5922 = vmatprep.subr.bf16.mxu0 0
    %5923 = vmatpush1.bf16.msra.mxu0 %v4230
    %5924 = vmatprep.subr.bf16.mxu0 0
    %5925 = vmatpush1.bf16.msra.mxu0 %v4231
    %5926 = vmatprep.subr.bf16.mxu0 0
    %5927 = vmatpush1.bf16.msra.mxu0 %v4232
    %5928 = vmatprep.subr.bf16.mxu0 0
    %5929 = vmatpush1.bf16.msra.mxu0 %v4233
    %5930 = vmatprep.subr.bf16.mxu0 0
    %5931 = vmatpush1.bf16.msra.mxu0 %v4234
    %5932 = vmatprep.subr.bf16.mxu0 0
    %5933 = vmatpush1.bf16.msra.mxu0 %v4235
    %5934 = vmatprep.subr.bf16.mxu0 0
    %5935 = vmatpush1.bf16.msra.mxu0 %v4236
    %5936 = vmatprep.subr.bf16.mxu0 0
    %5937 = vmatpush1.bf16.msra.mxu0 %v4237
    %5938 = vmatprep.mubr.bf16.mxu0 %v1639
    %5939 = vmatmul.mubr.bf16.gmra.mrb[0].mxu0 %v1638
    %v5940 = vpop.f32.mrb[0].mxu0
    %v5941 = vadd.f32 %v5892, %v5940
    %v5942 = vpop.f32.mrb[0].mxu0
    %v5943 = vpop.f32.mrb[0].mxu0
    %v5944 = vadd.f32 %v5895, %v5943
    %v5945 = vpop.f32.mrb[0].mxu0
    %5946 = vmatprep.mubr.bf16.mxu0 %v1703
    %5947 = vmatmul.mubr.bf16.gmra.mrb[0].mxu0 %v1702
    %v5948 = vpop.f32.mrb[0].mxu0
    %v5949 = vadd.f32 %v5900, %v5948
    %v5950 = vpop.f32.mrb[0].mxu0
    %v5951 = vpop.f32.mrb[0].mxu0
    %v5952 = vadd.f32 %v5903, %v5951
    %v5953 = vpop.f32.mrb[0].mxu0
    %5954 = vdwg.mxu0
    %5955 = vmatprep.subr.bf16.mxu0 0
    %5956 = vmatpush1.bf16.msra.mxu0 %v4238
    %5957 = vmatprep.subr.bf16.mxu0 0
    %5958 = vmatpush1.bf16.msra.mxu0 %v4239
    %5959 = vmatprep.subr.bf16.mxu0 0
    %5960 = vmatpush1.bf16.msra.mxu0 %v4240
    %5961 = vmatprep.subr.bf16.mxu0 0
    %5962 = vmatpush1.bf16.msra.mxu0 %v4241
    %5963 = vmatprep.subr.bf16.mxu0 0
    %5964 = vmatpush1.bf16.msra.mxu0 %v4242
    %5965 = vmatprep.subr.bf16.mxu0 0
    %5966 = vmatpush1.bf16.msra.mxu0 %v4243
    %5967 = vmatprep.subr.bf16.mxu0 0
    %5968 = vmatpush1.bf16.msra.mxu0 %v4244
    %5969 = vmatprep.subr.bf16.mxu0 0
    %5970 = vmatpush1.bf16.msra.mxu0 %v4245
    %5971 = vmatprep.subr.bf16.mxu0 0
    %5972 = vmatpush1.bf16.msra.mxu0 %v4246
    %5973 = vmatprep.subr.bf16.mxu0 0
    %5974 = vmatpush1.bf16.msra.mxu0 %v4247
    %5975 = vmatprep.subr.bf16.mxu0 0
    %5976 = vmatpush1.bf16.msra.mxu0 %v4248
    %5977 = vmatprep.subr.bf16.mxu0 0
    %5978 = vmatpush1.bf16.msra.mxu0 %v4249
    %5979 = vmatprep.subr.bf16.mxu0 0
    %5980 = vmatpush1.bf16.msra.mxu0 %v4250
    %5981 = vmatprep.subr.bf16.mxu0 0
    %5982 = vmatpush1.bf16.msra.mxu0 %v4251
    %5983 = vmatprep.subr.bf16.mxu0 0
    %5984 = vmatpush1.bf16.msra.mxu0 %v4252
    %5985 = vmatprep.subr.bf16.mxu0 0
    %5986 = vmatpush1.bf16.msra.mxu0 %v4253
    %5987 = vmatprep.mubr.bf16.mxu0 %v1641
    %5988 = vmatmul.mubr.bf16.gmra.mrb[0].mxu0 %v1640
    %v5989 = vpop.f32.mrb[0].mxu0
    %v5990 = vadd.f32 %v5941, %v5989
    %v5991 = vpop.f32.mrb[0].mxu0
    %v5992 = vpop.f32.mrb[0].mxu0
    %v5993 = vadd.f32 %v5944, %v5992
    %v5994 = vpop.f32.mrb[0].mxu0
    %5995 = vmatprep.mubr.bf16.mxu0 %v1705
    %5996 = vmatmul.mubr.bf16.gmra.mrb[0].mxu0 %v1704
    %v5997 = vpop.f32.mrb[0].mxu0
    %v5998 = vadd.f32 %v5949, %v5997
    %v5999 = vpop.f32.mrb[0].mxu0
    %v6000 = vpop.f32.mrb[0].mxu0
    %v6001 = vadd.f32 %v5952, %v6000
    %v6002 = vpop.f32.mrb[0].mxu0
    %6003 = vdwg.mxu0
    %6004 = vmatprep.subr.bf16.mxu0 0
    %6005 = vmatpush1.bf16.msra.mxu0 %v4254
    %6006 = vmatprep.subr.bf16.mxu0 0
    %6007 = vmatpush1.bf16.msra.mxu0 %v4255
    %6008 = vmatprep.subr.bf16.mxu0 0
    %6009 = vmatpush1.bf16.msra.mxu0 %v4256
    %6010 = vmatprep.subr.bf16.mxu0 0
    %6011 = vmatpush1.bf16.msra.mxu0 %v4257
    %6012 = vmatprep.subr.bf16.mxu0 0
    %6013 = vmatpush1.bf16.msra.mxu0 %v4258
    %6014 = vmatprep.subr.bf16.mxu0 0
    %6015 = vmatpush1.bf16.msra.mxu0 %v4259
    %6016 = vmatprep.subr.bf16.mxu0 0
    %6017 = vmatpush1.bf16.msra.mxu0 %v4260
    %6018 = vmatprep.subr.bf16.mxu0 0
    %6019 = vmatpush1.bf16.msra.mxu0 %v4261
    %6020 = vmatprep.subr.bf16.mxu0 0
    %6021 = vmatpush1.bf16.msra.mxu0 %v4262
    %6022 = vmatprep.subr.bf16.mxu0 0
    %6023 = vmatpush1.bf16.msra.mxu0 %v4263
    %6024 = vmatprep.subr.bf16.mxu0 0
    %6025 = vmatpush1.bf16.msra.mxu0 %v4264
    %6026 = vmatprep.subr.bf16.mxu0 0
    %6027 = vmatpush1.bf16.msra.mxu0 %v4265
    %6028 = vmatprep.subr.bf16.mxu0 0
    %6029 = vmatpush1.bf16.msra.mxu0 %v4266
    %6030 = vmatprep.subr.bf16.mxu0 0
    %6031 = vmatpush1.bf16.msra.mxu0 %v4267
    %6032 = vmatprep.subr.bf16.mxu0 0
    %6033 = vmatpush1.bf16.msra.mxu0 %v4268
    %6034 = vmatprep.subr.bf16.mxu0 0
    %6035 = vmatpush1.bf16.msra.mxu0 %v4269
    %6036 = vmatprep.mubr.bf16.mxu0 %v1643
    %6037 = vmatmul.mubr.bf16.gmra.mrb[0].mxu0 %v1642
    %v6038 = vpop.f32.mrb[0].mxu0
    %v6039 = vadd.f32 %v5990, %v6038
    %v6040 = vpop.f32.mrb[0].mxu0
    %v6041 = vpop.f32.mrb[0].mxu0
    %v6042 = vadd.f32 %v5993, %v6041
    %v6043 = vpop.f32.mrb[0].mxu0
    %6044 = vmatprep.mubr.bf16.mxu0 %v1707
    %6045 = vmatmul.mubr.bf16.gmra.mrb[0].mxu0 %v1706
    %v6046 = vpop.f32.mrb[0].mxu0
    %v6047 = vadd.f32 %v5998, %v6046
    %v6048 = vpop.f32.mrb[0].mxu0
    %v6049 = vpop.f32.mrb[0].mxu0
    %v6050 = vadd.f32 %v6001, %v6049
    %v6051 = vpop.f32.mrb[0].mxu0
    %6052 = vdwg.mxu0
    %6053 = vmatprep.subr.bf16.mxu0 0
    %6054 = vmatpush1.bf16.msra.mxu0 %v4270
    %6055 = vmatprep.subr.bf16.mxu0 0
    %6056 = vmatpush1.bf16.msra.mxu0 %v4271
    %6057 = vmatprep.subr.bf16.mxu0 0
    %6058 = vmatpush1.bf16.msra.mxu0 %v4272
    %6059 = vmatprep.subr.bf16.mxu0 0
    %6060 = vmatpush1.bf16.msra.mxu0 %v4273
    %6061 = vmatprep.subr.bf16.mxu0 0
    %6062 = vmatpush1.bf16.msra.mxu0 %v4274
    %6063 = vmatprep.subr.bf16.mxu0 0
    %6064 = vmatpush1.bf16.msra.mxu0 %v4275
    %6065 = vmatprep.subr.bf16.mxu0 0
    %6066 = vmatpush1.bf16.msra.mxu0 %v4276
    %6067 = vmatprep.subr.bf16.mxu0 0
    %6068 = vmatpush1.bf16.msra.mxu0 %v4277
    %6069 = vmatprep.subr.bf16.mxu0 0
    %6070 = vmatpush1.bf16.msra.mxu0 %v4278
    %6071 = vmatprep.subr.bf16.mxu0 0
    %6072 = vmatpush1.bf16.msra.mxu0 %v4279
    %6073 = vmatprep.subr.bf16.mxu0 0
    %6074 = vmatpush1.bf16.msra.mxu0 %v4280
    %6075 = vmatprep.subr.bf16.mxu0 0
    %6076 = vmatpush1.bf16.msra.mxu0 %v4281
    %6077 = vmatprep.subr.bf16.mxu0 0
    %6078 = vmatpush1.bf16.msra.mxu0 %v4282
    %6079 = vmatprep.subr.bf16.mxu0 0
    %6080 = vmatpush1.bf16.msra.mxu0 %v4283
    %6081 = vmatprep.subr.bf16.mxu0 0
    %6082 = vmatpush1.bf16.msra.mxu0 %v4284
    %6083 = vmatprep.subr.bf16.mxu0 0
    %6084 = vmatpush1.bf16.msra.mxu0 %v4285
    %6085 = vmatprep.mubr.bf16.mxu0 %v1645
    %6086 = vmatmul.mubr.bf16.gmra.mrb[0].mxu0 %v1644
    %v6087 = vpop.f32.mrb[0].mxu0
    %v6088 = vadd.f32 %v6039, %v6087
    %v6089 = vpop.f32.mrb[0].mxu0
    %v6090 = vpop.f32.mrb[0].mxu0
    %v6091 = vadd.f32 %v6042, %v6090
    %v6092 = vpop.f32.mrb[0].mxu0
    %6093 = vmatprep.mubr.bf16.mxu0 %v1709
    %6094 = vmatmul.mubr.bf16.gmra.mrb[0].mxu0 %v1708
    %v6095 = vpop.f32.mrb[0].mxu0
    %v6096 = vadd.f32 %v6047, %v6095
    %v6097 = vpop.f32.mrb[0].mxu0
    %v6098 = vpop.f32.mrb[0].mxu0
    %v6099 = vadd.f32 %v6050, %v6098
    %v6100 = vpop.f32.mrb[0].mxu0
    %6101 = vdwg.mxu0
    %6102 = vmatprep.subr.bf16.mxu0 0
    %6103 = vmatpush1.bf16.msra.mxu0 %v4286
    %6104 = vmatprep.subr.bf16.mxu0 0
    %6105 = vmatpush1.bf16.msra.mxu0 %v4287
    %6106 = vmatprep.subr.bf16.mxu0 0
    %6107 = vmatpush1.bf16.msra.mxu0 %v4288
    %6108 = vmatprep.subr.bf16.mxu0 0
    %6109 = vmatpush1.bf16.msra.mxu0 %v4289
    %6110 = vmatprep.subr.bf16.mxu0 0
    %6111 = vmatpush1.bf16.msra.mxu0 %v4290
    %6112 = vmatprep.subr.bf16.mxu0 0
    %6113 = vmatpush1.bf16.msra.mxu0 %v4291
    %6114 = vmatprep.subr.bf16.mxu0 0
    %6115 = vmatpush1.bf16.msra.mxu0 %v4292
    %6116 = vmatprep.subr.bf16.mxu0 0
    %6117 = vmatpush1.bf16.msra.mxu0 %v4293
    %6118 = vmatprep.subr.bf16.mxu0 0
    %6119 = vmatpush1.bf16.msra.mxu0 %v4294
    %6120 = vmatprep.subr.bf16.mxu0 0
    %6121 = vmatpush1.bf16.msra.mxu0 %v4295
    %6122 = vmatprep.subr.bf16.mxu0 0
    %6123 = vmatpush1.bf16.msra.mxu0 %v4296
    %6124 = vmatprep.subr.bf16.mxu0 0
    %6125 = vmatpush1.bf16.msra.mxu0 %v4297
    %6126 = vmatprep.subr.bf16.mxu0 0
    %6127 = vmatpush1.bf16.msra.mxu0 %v4298
    %6128 = vmatprep.subr.bf16.mxu0 0
    %6129 = vmatpush1.bf16.msra.mxu0 %v4299
    %6130 = vmatprep.subr.bf16.mxu0 0
    %6131 = vmatpush1.bf16.msra.mxu0 %v4300
    %6132 = vmatprep.subr.bf16.mxu0 0
    %6133 = vmatpush1.bf16.msra.mxu0 %v4301
    %6134 = vmatprep.mubr.bf16.mxu0 %v1647
    %6135 = vmatmul.mubr.bf16.gmra.mrb[0].mxu0 %v1646
    %v6136 = vpop.f32.mrb[0].mxu0
    %v6137 = vadd.f32 %v6088, %v6136
    %v6138 = vpop.f32.mrb[0].mxu0
    %v6139 = vpop.f32.mrb[0].mxu0
    %v6140 = vadd.f32 %v6091, %v6139
    %v6141 = vpop.f32.mrb[0].mxu0
    %6142 = vmatprep.mubr.bf16.mxu0 %v1711
    %6143 = vmatmul.mubr.bf16.gmra.mrb[0].mxu0 %v1710
    %v6144 = vpop.f32.mrb[0].mxu0
    %v6145 = vadd.f32 %v6096, %v6144
    %v6146 = vpop.f32.mrb[0].mxu0
    %v6147 = vpop.f32.mrb[0].mxu0
    %v6148 = vadd.f32 %v6099, %v6147
    %v6149 = vpop.f32.mrb[0].mxu0
    %6150 = vdwg.mxu0
    %6151 = vmatprep.subr.bf16.mxu0 0
    %6152 = vmatpush1.bf16.msra.mxu0 %v4302
    %6153 = vmatprep.subr.bf16.mxu0 0
    %6154 = vmatpush1.bf16.msra.mxu0 %v4303
    %6155 = vmatprep.subr.bf16.mxu0 0
    %6156 = vmatpush1.bf16.msra.mxu0 %v4304
    %6157 = vmatprep.subr.bf16.mxu0 0
    %6158 = vmatpush1.bf16.msra.mxu0 %v4305
    %6159 = vmatprep.subr.bf16.mxu0 0
    %6160 = vmatpush1.bf16.msra.mxu0 %v4306
    %6161 = vmatprep.subr.bf16.mxu0 0
    %6162 = vmatpush1.bf16.msra.mxu0 %v4307
    %6163 = vmatprep.subr.bf16.mxu0 0
    %6164 = vmatpush1.bf16.msra.mxu0 %v4308
    %6165 = vmatprep.subr.bf16.mxu0 0
    %6166 = vmatpush1.bf16.msra.mxu0 %v4309
    %6167 = vmatprep.subr.bf16.mxu0 0
    %6168 = vmatpush1.bf16.msra.mxu0 %v4310
    %6169 = vmatprep.subr.bf16.mxu0 0
    %6170 = vmatpush1.bf16.msra.mxu0 %v4311
    %6171 = vmatprep.subr.bf16.mxu0 0
    %6172 = vmatpush1.bf16.msra.mxu0 %v4312
    %6173 = vmatprep.subr.bf16.mxu0 0
    %6174 = vmatpush1.bf16.msra.mxu0 %v4313
    %6175 = vmatprep.subr.bf16.mxu0 0
    %6176 = vmatpush1.bf16.msra.mxu0 %v4314
    %6177 = vmatprep.subr.bf16.mxu0 0
    %6178 = vmatpush1.bf16.msra.mxu0 %v4315
    %6179 = vmatprep.subr.bf16.mxu0 0
    %6180 = vmatpush1.bf16.msra.mxu0 %v4316
    %6181 = vmatprep.subr.bf16.mxu0 0
    %6182 = vmatpush1.bf16.msra.mxu0 %v4317
    %6183 = vmatprep.mubr.bf16.mxu0 %v1649
    %6184 = vmatmul.mubr.bf16.gmra.mrb[0].mxu0 %v1648
    %v6185 = vpop.f32.mrb[0].mxu0
    %v6186 = vadd.f32 %v6137, %v6185
    %v6187 = vpop.f32.mrb[0].mxu0
    %v6188 = vpop.f32.mrb[0].mxu0
    %v6189 = vadd.f32 %v6140, %v6188
    %v6190 = vpop.f32.mrb[0].mxu0
    %6191 = vmatprep.mubr.bf16.mxu0 %v1713
    %6192 = vmatmul.mubr.bf16.gmra.mrb[0].mxu0 %v1712
    %v6193 = vpop.f32.mrb[0].mxu0
    %v6194 = vadd.f32 %v6145, %v6193
    %v6195 = vpop.f32.mrb[0].mxu0
    %v6196 = vpop.f32.mrb[0].mxu0
    %v6197 = vadd.f32 %v6148, %v6196
    %v6198 = vpop.f32.mrb[0].mxu0
    %6199 = vdwg.mxu0
    %6200 = vmatprep.subr.bf16.mxu0 0
    %6201 = vmatpush1.bf16.msra.mxu0 %v4318
    %6202 = vmatprep.subr.bf16.mxu0 0
    %6203 = vmatpush1.bf16.msra.mxu0 %v4319
    %6204 = vmatprep.subr.bf16.mxu0 0
    %6205 = vmatpush1.bf16.msra.mxu0 %v4320
    %6206 = vmatprep.subr.bf16.mxu0 0
    %6207 = vmatpush1.bf16.msra.mxu0 %v4321
    %6208 = vmatprep.subr.bf16.mxu0 0
    %6209 = vmatpush1.bf16.msra.mxu0 %v4322
    %6210 = vmatprep.subr.bf16.mxu0 0
    %6211 = vmatpush1.bf16.msra.mxu0 %v4323
    %6212 = vmatprep.subr.bf16.mxu0 0
    %6213 = vmatpush1.bf16.msra.mxu0 %v4324
    %6214 = vmatprep.subr.bf16.mxu0 0
    %6215 = vmatpush1.bf16.msra.mxu0 %v4325
    %6216 = vmatprep.subr.bf16.mxu0 0
    %6217 = vmatpush1.bf16.msra.mxu0 %v4326
    %6218 = vmatprep.subr.bf16.mxu0 0
    %6219 = vmatpush1.bf16.msra.mxu0 %v4327
    %6220 = vmatprep.subr.bf16.mxu0 0
    %6221 = vmatpush1.bf16.msra.mxu0 %v4328
    %6222 = vmatprep.subr.bf16.mxu0 0
    %6223 = vmatpush1.bf16.msra.mxu0 %v4329
    %6224 = vmatprep.subr.bf16.mxu0 0
    %6225 = vmatpush1.bf16.msra.mxu0 %v4330
    %6226 = vmatprep.subr.bf16.mxu0 0
    %6227 = vmatpush1.bf16.msra.mxu0 %v4331
    %6228 = vmatprep.subr.bf16.mxu0 0
    %6229 = vmatpush1.bf16.msra.mxu0 %v4332
    %6230 = vmatprep.subr.bf16.mxu0 0
    %6231 = vmatpush1.bf16.msra.mxu0 %v4333
    %6232 = vmatprep.mubr.bf16.mxu0 %v1651
    %6233 = vmatmul.mubr.bf16.gmra.mrb[0].mxu0 %v1650
    %v6234 = vpop.f32.mrb[0].mxu0
    %v6235 = vadd.f32 %v6186, %v6234
    %v6236 = vpop.f32.mrb[0].mxu0
    %v6237 = vpop.f32.mrb[0].mxu0
    %v6238 = vadd.f32 %v6189, %v6237
    %v6239 = vpop.f32.mrb[0].mxu0
    %6240 = vmatprep.mubr.bf16.mxu0 %v1715
    %6241 = vmatmul.mubr.bf16.gmra.mrb[0].mxu0 %v1714
    %v6242 = vpop.f32.mrb[0].mxu0
    %v6243 = vadd.f32 %v6194, %v6242
    %v6244 = vpop.f32.mrb[0].mxu0
    %v6245 = vpop.f32.mrb[0].mxu0
    %v6246 = vadd.f32 %v6197, %v6245
    %v6247 = vpop.f32.mrb[0].mxu0
    %6248 = vdwg.mxu0
    %6249 = vmatprep.subr.bf16.mxu0 0
    %6250 = vmatpush1.bf16.msra.mxu0 %v4334
    %6251 = vmatprep.subr.bf16.mxu0 0
    %6252 = vmatpush1.bf16.msra.mxu0 %v4335
    %6253 = vmatprep.subr.bf16.mxu0 0
    %6254 = vmatpush1.bf16.msra.mxu0 %v4336
    %6255 = vmatprep.subr.bf16.mxu0 0
    %6256 = vmatpush1.bf16.msra.mxu0 %v4337
    %6257 = vmatprep.subr.bf16.mxu0 0
    %6258 = vmatpush1.bf16.msra.mxu0 %v4338
    %6259 = vmatprep.subr.bf16.mxu0 0
    %6260 = vmatpush1.bf16.msra.mxu0 %v4339
    %6261 = vmatprep.subr.bf16.mxu0 0
    %6262 = vmatpush1.bf16.msra.mxu0 %v4340
    %6263 = vmatprep.subr.bf16.mxu0 0
    %6264 = vmatpush1.bf16.msra.mxu0 %v4341
    %6265 = vmatprep.subr.bf16.mxu0 0
    %6266 = vmatpush1.bf16.msra.mxu0 %v4342
    %6267 = vmatprep.subr.bf16.mxu0 0
    %6268 = vmatpush1.bf16.msra.mxu0 %v4343
    %6269 = vmatprep.subr.bf16.mxu0 0
    %6270 = vmatpush1.bf16.msra.mxu0 %v4344
    %6271 = vmatprep.subr.bf16.mxu0 0
    %6272 = vmatpush1.bf16.msra.mxu0 %v4345
    %6273 = vmatprep.subr.bf16.mxu0 0
    %6274 = vmatpush1.bf16.msra.mxu0 %v4346
    %6275 = vmatprep.subr.bf16.mxu0 0
    %6276 = vmatpush1.bf16.msra.mxu0 %v4347
    %6277 = vmatprep.subr.bf16.mxu0 0
    %6278 = vmatpush1.bf16.msra.mxu0 %v4348
    %6279 = vmatprep.subr.bf16.mxu0 0
    %6280 = vmatpush1.bf16.msra.mxu0 %v4349
    %6281 = vmatprep.mubr.bf16.mxu0 %v1653
    %6282 = vmatmul.mubr.bf16.gmra.mrb[0].mxu0 %v1652
    %v6283 = vpop.f32.mrb[0].mxu0
    %v6284 = vadd.f32 %v6235, %v6283
    %v6285 = vpop.f32.mrb[0].mxu0
    %v6286 = vpop.f32.mrb[0].mxu0
    %v6287 = vadd.f32 %v6238, %v6286
    %v6288 = vpop.f32.mrb[0].mxu0
    %6289 = vmatprep.mubr.bf16.mxu0 %v1717
    %6290 = vmatmul.mubr.bf16.gmra.mrb[0].mxu0 %v1716
    %v6291 = vpop.f32.mrb[0].mxu0
    %v6292 = vadd.f32 %v6243, %v6291
    %v6293 = vpop.f32.mrb[0].mxu0
    %v6294 = vpop.f32.mrb[0].mxu0
    %v6295 = vadd.f32 %v6246, %v6294
    %v6296 = vpop.f32.mrb[0].mxu0
    %6297 = vdwg.mxu0
    %6298 = vmatprep.subr.bf16.mxu0 0
    %6299 = vmatpush1.bf16.msra.mxu0 %v4350
    %6300 = vmatprep.subr.bf16.mxu0 0
    %6301 = vmatpush1.bf16.msra.mxu0 %v4351
    %6302 = vmatprep.subr.bf16.mxu0 0
    %6303 = vmatpush1.bf16.msra.mxu0 %v4352
    %6304 = vmatprep.subr.bf16.mxu0 0
    %6305 = vmatpush1.bf16.msra.mxu0 %v4353
    %6306 = vmatprep.subr.bf16.mxu0 0
    %6307 = vmatpush1.bf16.msra.mxu0 %v4354
    %6308 = vmatprep.subr.bf16.mxu0 0
    %6309 = vmatpush1.bf16.msra.mxu0 %v4355
    %6310 = vmatprep.subr.bf16.mxu0 0
    %6311 = vmatpush1.bf16.msra.mxu0 %v4356
    %6312 = vmatprep.subr.bf16.mxu0 0
    %6313 = vmatpush1.bf16.msra.mxu0 %v4357
    %6314 = vmatprep.subr.bf16.mxu0 0
    %6315 = vmatpush1.bf16.msra.mxu0 %v4358
    %6316 = vmatprep.subr.bf16.mxu0 0
    %6317 = vmatpush1.bf16.msra.mxu0 %v4359
    %6318 = vmatprep.subr.bf16.mxu0 0
    %6319 = vmatpush1.bf16.msra.mxu0 %v4360
    %6320 = vmatprep.subr.bf16.mxu0 0
    %6321 = vmatpush1.bf16.msra.mxu0 %v4361
    %6322 = vmatprep.subr.bf16.mxu0 0
    %6323 = vmatpush1.bf16.msra.mxu0 %v4362
    %6324 = vmatprep.subr.bf16.mxu0 0
    %6325 = vmatpush1.bf16.msra.mxu0 %v4363
    %6326 = vmatprep.subr.bf16.mxu0 0
    %6327 = vmatpush1.bf16.msra.mxu0 %v4364
    %6328 = vmatprep.subr.bf16.mxu0 0
    %6329 = vmatpush1.bf16.msra.mxu0 %v4365
    %6330 = vmatprep.mubr.bf16.mxu0 %v1655
    %6331 = vmatmul.mubr.bf16.gmra.mrb[0].mxu0 %v1654
    %v6332 = vpop.f32.mrb[0].mxu0
    %v6333 = vadd.f32 %v6284, %v6332
    %v6334 = vpop.f32.mrb[0].mxu0
    %v6335 = vpop.f32.mrb[0].mxu0
    %v6336 = vadd.f32 %v6287, %v6335
    %v6337 = vpop.f32.mrb[0].mxu0
    %6338 = vmatprep.mubr.bf16.mxu0 %v1719
    %6339 = vmatmul.mubr.bf16.gmra.mrb[0].mxu0 %v1718
    %v6340 = vpop.f32.mrb[0].mxu0
    %v6341 = vadd.f32 %v6292, %v6340
    %v6342 = vpop.f32.mrb[0].mxu0
    %v6343 = vpop.f32.mrb[0].mxu0
    %v6344 = vadd.f32 %v6295, %v6343
    %v6345 = vpop.f32.mrb[0].mxu0
    %6346 = vdwg.mxu0
    %6347 = vmatprep.subr.bf16.mxu0 0
    %6348 = vmatpush1.bf16.msra.mxu0 %v4366
    %6349 = vmatprep.subr.bf16.mxu0 0
    %6350 = vmatpush1.bf16.msra.mxu0 %v4367
    %6351 = vmatprep.subr.bf16.mxu0 0
    %6352 = vmatpush1.bf16.msra.mxu0 %v4368
    %6353 = vmatprep.subr.bf16.mxu0 0
    %6354 = vmatpush1.bf16.msra.mxu0 %v4369
    %6355 = vmatprep.subr.bf16.mxu0 0
    %6356 = vmatpush1.bf16.msra.mxu0 %v4370
    %6357 = vmatprep.subr.bf16.mxu0 0
    %6358 = vmatpush1.bf16.msra.mxu0 %v4371
    %6359 = vmatprep.subr.bf16.mxu0 0
    %6360 = vmatpush1.bf16.msra.mxu0 %v4372
    %6361 = vmatprep.subr.bf16.mxu0 0
    %6362 = vmatpush1.bf16.msra.mxu0 %v4373
    %6363 = vmatprep.subr.bf16.mxu0 0
    %6364 = vmatpush1.bf16.msra.mxu0 %v4374
    %6365 = vmatprep.subr.bf16.mxu0 0
    %6366 = vmatpush1.bf16.msra.mxu0 %v4375
    %6367 = vmatprep.subr.bf16.mxu0 0
    %6368 = vmatpush1.bf16.msra.mxu0 %v4376
    %6369 = vmatprep.subr.bf16.mxu0 0
    %6370 = vmatpush1.bf16.msra.mxu0 %v4377
    %6371 = vmatprep.subr.bf16.mxu0 0
    %6372 = vmatpush1.bf16.msra.mxu0 %v4378
    %6373 = vmatprep.subr.bf16.mxu0 0
    %6374 = vmatpush1.bf16.msra.mxu0 %v4379
    %6375 = vmatprep.subr.bf16.mxu0 0
    %6376 = vmatpush1.bf16.msra.mxu0 %v4380
    %6377 = vmatprep.subr.bf16.mxu0 0
    %6378 = vmatpush1.bf16.msra.mxu0 %v4381
    %6379 = vmatprep.mubr.bf16.mxu0 %v1657
    %6380 = vmatmul.mubr.bf16.gmra.mrb[0].mxu0 %v1656
    %v6381 = vpop.f32.mrb[0].mxu0
    %v6382 = vadd.f32 %v6333, %v6381
    %v6383 = vpop.f32.mrb[0].mxu0
    %v6384 = vpop.f32.mrb[0].mxu0
    %v6385 = vadd.f32 %v6336, %v6384
    %v6386 = vpop.f32.mrb[0].mxu0
    %6387 = vmatprep.mubr.bf16.mxu0 %v1721
    %6388 = vmatmul.mubr.bf16.gmra.mrb[0].mxu0 %v1720
    %v6389 = vpop.f32.mrb[0].mxu0
    %v6390 = vadd.f32 %v6341, %v6389
    %v6391 = vpop.f32.mrb[0].mxu0
    %v6392 = vpop.f32.mrb[0].mxu0
    %v6393 = vadd.f32 %v6344, %v6392
    %v6394 = vpop.f32.mrb[0].mxu0
    %6395 = vdwg.mxu0
    %6396 = vmatprep.subr.bf16.mxu0 0
    %6397 = vmatpush1.bf16.msra.mxu0 %v4382
    %6398 = vmatprep.subr.bf16.mxu0 0
    %6399 = vmatpush1.bf16.msra.mxu0 %v4383
    %6400 = vmatprep.subr.bf16.mxu0 0
    %6401 = vmatpush1.bf16.msra.mxu0 %v4384
    %6402 = vmatprep.subr.bf16.mxu0 0
    %6403 = vmatpush1.bf16.msra.mxu0 %v4385
    %6404 = vmatprep.subr.bf16.mxu0 0
    %6405 = vmatpush1.bf16.msra.mxu0 %v4386
    %6406 = vmatprep.subr.bf16.mxu0 0
    %6407 = vmatpush1.bf16.msra.mxu0 %v4387
    %6408 = vmatprep.subr.bf16.mxu0 0
    %6409 = vmatpush1.bf16.msra.mxu0 %v4388
    %6410 = vmatprep.subr.bf16.mxu0 0
    %6411 = vmatpush1.bf16.msra.mxu0 %v4389
    %6412 = vmatprep.subr.bf16.mxu0 0
    %6413 = vmatpush1.bf16.msra.mxu0 %v4390
    %6414 = vmatprep.subr.bf16.mxu0 0
    %6415 = vmatpush1.bf16.msra.mxu0 %v4391
    %6416 = vmatprep.subr.bf16.mxu0 0
    %6417 = vmatpush1.bf16.msra.mxu0 %v4392
    %6418 = vmatprep.subr.bf16.mxu0 0
    %6419 = vmatpush1.bf16.msra.mxu0 %v4393
    %6420 = vmatprep.subr.bf16.mxu0 0
    %6421 = vmatpush1.bf16.msra.mxu0 %v4394
    %6422 = vmatprep.subr.bf16.mxu0 0
    %6423 = vmatpush1.bf16.msra.mxu0 %v4395
    %6424 = vmatprep.subr.bf16.mxu0 0
    %6425 = vmatpush1.bf16.msra.mxu0 %v4396
    %6426 = vmatprep.subr.bf16.mxu0 0
    %6427 = vmatpush1.bf16.msra.mxu0 %v4397
    %6428 = vmatprep.mubr.bf16.mxu0 %v1659
    %6429 = vmatmul.mubr.bf16.gmra.mrb[0].mxu0 %v1658
    %v6430 = vpop.f32.mrb[0].mxu0
    %v6431 = vadd.f32 %v6382, %v6430
    %v6432 = vpop.f32.mrb[0].mxu0
    %v6433 = vpop.f32.mrb[0].mxu0
    %v6434 = vadd.f32 %v6385, %v6433
    %v6435 = vpop.f32.mrb[0].mxu0
    %6436 = vmatprep.mubr.bf16.mxu0 %v1723
    %6437 = vmatmul.mubr.bf16.gmra.mrb[0].mxu0 %v1722
    %v6438 = vpop.f32.mrb[0].mxu0
    %v6439 = vadd.f32 %v6390, %v6438
    %v6440 = vpop.f32.mrb[0].mxu0
    %v6441 = vpop.f32.mrb[0].mxu0
    %v6442 = vadd.f32 %v6393, %v6441
    %v6443 = vpop.f32.mrb[0].mxu0
    %6444 = vdwg.mxu0
    %6445 = vmatprep.subr.bf16.mxu0 0
    %6446 = vmatpush1.bf16.msra.mxu0 %v4398
    %6447 = vmatprep.subr.bf16.mxu0 0
    %6448 = vmatpush1.bf16.msra.mxu0 %v4399
    %6449 = vmatprep.subr.bf16.mxu0 0
    %6450 = vmatpush1.bf16.msra.mxu0 %v4400
    %6451 = vmatprep.subr.bf16.mxu0 0
    %6452 = vmatpush1.bf16.msra.mxu0 %v4401
    %6453 = vmatprep.subr.bf16.mxu0 0
    %6454 = vmatpush1.bf16.msra.mxu0 %v4402
    %6455 = vmatprep.subr.bf16.mxu0 0
    %6456 = vmatpush1.bf16.msra.mxu0 %v4403
    %6457 = vmatprep.subr.bf16.mxu0 0
    %6458 = vmatpush1.bf16.msra.mxu0 %v4404
    %6459 = vmatprep.subr.bf16.mxu0 0
    %6460 = vmatpush1.bf16.msra.mxu0 %v4405
    %6461 = vmatprep.subr.bf16.mxu0 0
    %6462 = vmatpush1.bf16.msra.mxu0 %v4406
    %6463 = vmatprep.subr.bf16.mxu0 0
    %6464 = vmatpush1.bf16.msra.mxu0 %v4407
    %6465 = vmatprep.subr.bf16.mxu0 0
    %6466 = vmatpush1.bf16.msra.mxu0 %v4408
    %6467 = vmatprep.subr.bf16.mxu0 0
    %6468 = vmatpush1.bf16.msra.mxu0 %v4409
    %6469 = vmatprep.subr.bf16.mxu0 0
    %6470 = vmatpush1.bf16.msra.mxu0 %v4410
    %6471 = vmatprep.subr.bf16.mxu0 0
    %6472 = vmatpush1.bf16.msra.mxu0 %v4411
    %6473 = vmatprep.subr.bf16.mxu0 0
    %6474 = vmatpush1.bf16.msra.mxu0 %v4412
    %6475 = vmatprep.subr.bf16.mxu0 0
    %6476 = vmatpush1.bf16.msra.mxu0 %v4413
    %6477 = vmatprep.mubr.bf16.mxu0 %v1661
    %6478 = vmatmul.mubr.bf16.gmra.mrb[0].mxu0 %v1660
    %v6479 = vpop.f32.mrb[0].mxu0
    %v6480 = vadd.f32 %v6431, %v6479
    %v6481 = vpop.f32.mrb[0].mxu0
    %v6482 = vpop.f32.mrb[0].mxu0
    %v6483 = vadd.f32 %v6434, %v6482
    %v6484 = vpop.f32.mrb[0].mxu0
    %6485 = vmatprep.mubr.bf16.mxu0 %v1725
    %6486 = vmatmul.mubr.bf16.gmra.mrb[0].mxu0 %v1724
    %v6487 = vpop.f32.mrb[0].mxu0
    %v6488 = vadd.f32 %v6439, %v6487
    %v6489 = vpop.f32.mrb[0].mxu0
    %v6490 = vpop.f32.mrb[0].mxu0
    %v6491 = vadd.f32 %v6442, %v6490
    %v6492 = vpop.f32.mrb[0].mxu0
    %6493 = vdwg.mxu0
    %6494 = vst [vmem:[#allocation8] sm:$0xff] %v6480
    %6495 = vst [vmem:[#allocation8 + $0x8] sm:$0xff] %v6483
    %6496 = vst [vmem:[#allocation8 + $0x10] sm:$0xff] %v6488
    %6497 = vst [vmem:[#allocation8 + $0x18] sm:$0xff] %v6491
    // Predicated region
    $region26: #{tpu_custom_call.1} parent=1 // pred_check
      _
    $region27: #{tpu_custom_call.1} parent=1 // pred_check_branch
      %6499 = sbr.rel (0) target = $region29
    $region28: #{tpu_custom_call.1} parent=1 // pred_region
      %s6501 = ssub.s32 512, 512
      %6502 = vsyncadd [#allocation4], %s6501
      %s6503 = sshll.u32 [#allocation8], 4
      %s6504 = int_to_ptr.vmem [resolvable:$true] %s6503
      %6509 = dma.vmem_to_hbm [thread:$0]  %s6504, 512, %s3, [#allocation4], 128, 128, 8
    $region29: #{tpu_custom_call.1} parent=1 // pred_fallthru
      _
    // Predicated region
    $region30: #{tpu_custom_call.1} parent=1 // pred_check
      _
    $region31: #{tpu_custom_call.1} parent=1 // pred_check_branch
      %6511 = sbr.rel (0) target = $region33
    $region32: #{tpu_custom_call.1} parent=1 // pred_region
      %6512 = dma.done [#allocation4], 512
    $region33: #{tpu_custom_call.1} parent=1 // pred_fallthru
      _
    %6513 = vsyncpa [#allocation3], 1
    %6514 = vsyncpa [#allocation6], 1
    %6515 = vsyncpa [#allocation4], 1

</llo_original>
